<compile_context>
chip_gen: v7x
topology: tpu7x:2x2x1
jax: 0.10.0
libtpu: 0.0.40
codegen_flags: <defaults>
</compile_context>

<pallas_src>
import functools
import math

import jax
import jax.numpy as jnp
import numpy as np
from jax.experimental import pallas as pl
from jax.experimental.pallas import tpu as pltpu


# ----------------------------------------------------------------------------
# Pallas plumbing
# ----------------------------------------------------------------------------
def _full_spec(shape):
    nd = len(shape)
    return pl.BlockSpec(shape, lambda i, _nd=nd: (0,) * _nd)


def _call(kernel, out_shape, *args):
    """Single-block pallas_call: all (small) operands live fully in VMEM."""
    single = not isinstance(out_shape, (tuple, list))
    out_shapes = (out_shape,) if single else tuple(out_shape)
    res = pl.pallas_call(
        kernel,
        out_shape=out_shapes,
        grid=(1,),
        in_specs=[_full_spec(a.shape) for a in args],
        out_specs=tuple(_full_spec(o.shape) for o in out_shapes),
        compiler_params=pltpu.CompilerParams(
            dimension_semantics=("arbitrary",)),
    )(*args)
    return res[0] if single else res


# ----------------------------------------------------------------------------
# In-kernel helpers
# ----------------------------------------------------------------------------
def _mm_bf16(a, b):
    """MXU matmul: bf16 operands, f32 accumulation."""
    return jnp.dot(a.astype(jnp.bfloat16), b.astype(jnp.bfloat16),
                   preferred_element_type=jnp.float32)


def _mm_f32(a, b):
    """Exact f32 matmul (used for the 0/1*rate row-scatter matrices)."""
    return jnp.dot(a, b, preferred_element_type=jnp.float32)


def _leaky(x, alpha):
    return jnp.where(x >= 0, x, alpha * x)


def _gcn(x, adj, w, b, alpha):
    # leaky_relu(adj @ (x @ w) + b)  -- torch.spmm with dense adj.
    support = _mm_bf16(x, w)
    return _leaky(_mm_bf16(adj, support) + b, alpha)


# ----------------------------------------------------------------------------
# Fused layer kernels
# ----------------------------------------------------------------------------
def _dgcn_layer_kernel(
        src_u_ref, tgt_u_ref, s_uv_ref, s_vu_ref, t_uv_ref, t_vu_ref,
        gc1_w_ref, gc1_b_ref, gc2_w_ref, gc2_b_ref,
        gc3_w_ref, gc3_b_ref, gc4_w_ref, gc4_b_ref,
        su_w1_ref, su_w2_ref, su_b_ref, tu_w1_ref, tu_w2_ref, tu_b_ref,
        a_st_ref, a_ts_ref,
        src_out_ref, tgt_out_ref,
        *, alpha, rate):
    src_u = src_u_ref[...]
    tgt_u = tgt_u_ref[...]

    # Two stacked GCN hops per domain (intermediates never leave the chip).
    s_ho = _gcn(src_u, s_vu_ref[...], gc1_w_ref[...], gc1_b_ref[...], alpha)
    s_ho = _gcn(s_ho, s_uv_ref[...], gc3_w_ref[...], gc3_b_ref[...], alpha)
    t_ho = _gcn(tgt_u, t_vu_ref[...], gc2_w_ref[...], gc2_b_ref[...], alpha)
    t_ho = _gcn(t_ho, t_uv_ref[...], gc4_w_ref[...], gc4_b_ref[...], alpha)

    # union Linear on cat(ho, ufea):  ho @ W1 + ufea @ W2 + b  (pre-split W).
    s_user = (_mm_bf16(s_ho, su_w1_ref[...]) + _mm_bf16(src_u, su_w2_ref[...])
              + su_b_ref[...])
    t_user = (_mm_bf16(t_ho, tu_w1_ref[...]) + _mm_bf16(tgt_u, tu_w2_ref[...])
              + tu_b_ref[...])

    rs = jnp.maximum(s_user, 0.0)
    rt = jnp.maximum(t_user, 0.0)

    # recbole_padding + rate-combine + crossVBGE inter-layer slicing, fused:
    #   next_src[j] = rate*relu(s)[j] + (1-rate)*relu(t)[j]   (overlapped rows)
    #               = rate*relu(s)[j]                          (source-only)
    #   next_tgt[i] = (1-rate)*relu(t)[i] + rate*relu(s)[i]    (overlapped rows)
    #               = (1-rate)*relu(t)[i]                      (target-only)
    # a_st / a_ts are static scaled selection matrices; f32 dot => exact copies.
    src_out_ref[...] = rate * rs + _mm_f32(a_st_ref[...], rt)
    tgt_out_ref[...] = (1.0 - rate) * rt + _mm_f32(a_ts_ref[...], rs)


def _last_layer_kernel(
        src_u_ref, tgt_u_ref, s_uv_ref, s_vu_ref, t_uv_ref, t_vu_ref,
        gc1_w_ref, gc1_b_ref, gc2_w_ref, gc2_b_ref,
        gc3_w_ref, gc3_b_ref, gc4_w_ref, gc4_b_ref,
        su_w1_ref, su_w2_ref, su_b_ref, tu_w1_ref, tu_w2_ref, tu_b_ref,
        p_s_ref, p_t_ref,
        out_ref,
        *, alpha):
    src_u = src_u_ref[...]
    tgt_u = tgt_u_ref[...]

    # First GCN hop per domain.
    s_ho = _gcn(src_u, s_vu_ref[...], gc1_w_ref[...], gc1_b_ref[...], alpha)
    t_ho = _gcn(tgt_u, t_vu_ref[...], gc2_w_ref[...], gc2_b_ref[...], alpha)

    # Second hop with mean||logstd weights concatenated -> 64-lane outputs.
    s_ms = _gcn(s_ho, s_uv_ref[...], gc3_w_ref[...], gc3_b_ref[...], alpha)
    t_ms = _gcn(t_ho, t_uv_ref[...], gc4_w_ref[...], gc4_b_ref[...], alpha)

    # Fused (mean, logstd) union Linear: block-diag W1 on [mean||logstd],
    # concatenated W2 on ufea, concatenated bias.
    su = (_mm_bf16(s_ms, su_w1_ref[...]) + _mm_bf16(src_u, su_w2_ref[...])
          + su_b_ref[...])
    tu = (_mm_bf16(t_ms, tu_w1_ref[...]) + _mm_bf16(tgt_u, tu_w2_ref[...])
          + tu_b_ref[...])

    # recbole_padding + rate-combine via static scaled scatter matrices (exact).
    out_ref[...] = _mm_f32(p_s_ref[...], su) + _mm_f32(p_t_ref[...], tu)


# ----------------------------------------------------------------------------
# Layer wrappers
# ----------------------------------------------------------------------------
def dgcn_layer(p, src_u, tgt_u, s_uv, s_vu, t_uv, t_vu, mats, alpha, rate):
    n_src, fd = src_u.shape
    n_tgt = tgt_u.shape[0]
    out_shapes = (jax.ShapeDtypeStruct((n_src, fd), jnp.float32),
                  jax.ShapeDtypeStruct((n_tgt, fd), jnp.float32))
    kernel = functools.partial(_dgcn_layer_kernel, alpha=alpha, rate=rate)
    return _call(
        kernel, out_shapes,
        src_u, tgt_u, s_uv, s_vu, t_uv, t_vu,
        p["gc1_w"], p["gc1_b"], p["gc2_w"], p["gc2_b"],
        p["gc3_w"], p["gc3_b"], p["gc4_w"], p["gc4_b"],
        p["su_w1"], p["su_w2"], p["su_b"],
        p["tu_w1"], p["tu_w2"], p["tu_b"],
        mats["a_st"], mats["a_ts"])


def last_layer(p, src_u, tgt_u, s_uv, s_vu, t_uv, t_vu, mats, alpha, total, fd):
    out_shape = jax.ShapeDtypeStruct((total, 2 * fd), jnp.float32)
    kernel = functools.partial(_last_layer_kernel, alpha=alpha)
    return _call(
        kernel, out_shape,
        src_u, tgt_u, s_uv, s_vu, t_uv, t_vu,
        p["gc1_w"], p["gc1_b"], p["gc2_w"], p["gc2_b"],
        p["gc3_w"], p["gc3_b"], p["gc4_w"], p["gc4_b"],
        p["su_w1"], p["su_w2"], p["su_b"],
        p["tu_w1"], p["tu_w2"], p["tu_b"],
        mats["p_s"], mats["p_t"])


def cross_vbge_forward(prepped, src_u, tgt_u, s_uv, s_vu, t_uv, t_vu, opt):
    alpha, rate, fd = opt["leakey"], opt["rate"], opt["feature_dim"]
    total = opt["total_num_users"]
    mats = prepped["mats"]
    ls, lt = src_u, tgt_u
    for p in prepped["dgcn"]:
        # F.dropout in eval mode == identity.
        ls, lt = dgcn_layer(p, ls, lt, s_uv, s_vu, t_uv, t_vu, mats, alpha, rate)
    out = last_layer(prepped["last"], ls, lt, s_uv, s_vu, t_uv, t_vu, mats,
                     alpha, total, fd)
    return out[:, :fd], out[:, fd:]            # mean, sigma (logstd)


# ----------------------------------------------------------------------------
# Parameter init (PyTorch-matching distributions) and one-time prep
# ----------------------------------------------------------------------------
def _uniform(key, shape, scale):
    return jax.random.uniform(key, shape, jnp.float32, minval=-scale, maxval=scale)


def init_gcn_params(key, nin, nout):
    k1, k2 = jax.random.split(key)
    stdv = 1.0 / math.sqrt(nout)
    return _uniform(k1, (nin, nout), stdv), _uniform(k2, (nout,), stdv)


def init_linear_params(key, nin, nout):
    k1, k2 = jax.random.split(key)
    s = 1.0 / math.sqrt(nin)
    return _uniform(k1, (nout, nin), s), _uniform(k2, (nout,), s)


def init_dgcn_layer(key, fd, hd):
    ks = jax.random.split(key, 6)
    p = {}
    p["gc1_w"], p["gc1_b"] = init_gcn_params(ks[0], fd, hd)
    p["gc2_w"], p["gc2_b"] = init_gcn_params(ks[1], fd, hd)
    p["gc3_w"], p["gc3_b"] = init_gcn_params(ks[2], hd, fd)
    p["gc4_w"], p["gc4_b"] = init_gcn_params(ks[3], hd, fd)
    p["su_w"], p["su_b"] = init_linear_params(ks[4], 2 * fd, fd)
    p["tu_w"], p["tu_b"] = init_linear_params(ks[5], 2 * fd, fd)
    return p


def init_last_layer(key, fd, hd):
    ks = jax.random.split(key, 10)
    p = {}
    p["gc1_w"], p["gc1_b"] = init_gcn_params(ks[0], fd, hd)
    p["gc2_w"], p["gc2_b"] = init_gcn_params(ks[1], fd, hd)
    p["gc3m_w"], p["gc3m_b"] = init_gcn_params(ks[2], hd, fd)
    p["gc3s_w"], p["gc3s_b"] = init_gcn_params(ks[3], hd, fd)
    p["gc4m_w"], p["gc4m_b"] = init_gcn_params(ks[4], hd, fd)
    p["gc4s_w"], p["gc4s_b"] = init_gcn_params(ks[5], hd, fd)
    p["sum_w"], p["sum_b"] = init_linear_params(ks[6], 2 * fd, fd)
    p["sus_w"], p["sus_b"] = init_linear_params(ks[7], 2 * fd, fd)
    p["tum_w"], p["tum_b"] = init_linear_params(ks[8], 2 * fd, fd)
    p["tus_w"], p["tus_b"] = init_linear_params(ks[9], 2 * fd, fd)
    return p


def _block_diag(a, b):
    za = jnp.zeros((a.shape[0], b.shape[1]), a.dtype)
    zb = jnp.zeros((b.shape[0], a.shape[1]), b.dtype)
    return jnp.concatenate(
        [jnp.concatenate([a, za], axis=1), jnp.concatenate([zb, b], axis=1)],
        axis=0)


def prep_dgcn_layer(p, fd):
    su_wt = p["su_w"].T          # (2fd, fd) : cat(ho, ufea) @ W.T == ho@W1 + ufea@W2
    tu_wt = p["tu_w"].T
    return dict(
        gc1_w=p["gc1_w"], gc1_b=p["gc1_b"].reshape(1, -1),
        gc2_w=p["gc2_w"], gc2_b=p["gc2_b"].reshape(1, -1),
        gc3_w=p["gc3_w"], gc3_b=p["gc3_b"].reshape(1, -1),
        gc4_w=p["gc4_w"], gc4_b=p["gc4_b"].reshape(1, -1),
        su_w1=su_wt[:fd], su_w2=su_wt[fd:], su_b=p["su_b"].reshape(1, -1),
        tu_w1=tu_wt[:fd], tu_w2=tu_wt[fd:], tu_b=p["tu_b"].reshape(1, -1),
    )


def prep_last_layer(p, fd):
    # mean||logstd GCN weights share the same LHS -> concatenate (64 lanes).
    gc3_w = jnp.concatenate([p["gc3m_w"], p["gc3s_w"]], axis=1)
    gc3_b = jnp.concatenate([p["gc3m_b"], p["gc3s_b"]]).reshape(1, -1)
    gc4_w = jnp.concatenate([p["gc4m_w"], p["gc4s_w"]], axis=1)
    gc4_b = jnp.concatenate([p["gc4m_b"], p["gc4s_b"]]).reshape(1, -1)
    sum_wt, sus_wt = p["sum_w"].T, p["sus_w"].T          # (2fd, fd) each
    tum_wt, tus_wt = p["tum_w"].T, p["tus_w"].T
    # Fused union: [mean||logstd] @ blockdiag(W1m, W1s) + ufea @ [W2m||W2s] + [bm||bs]
    su_w1 = _block_diag(sum_wt[:fd], sus_wt[:fd])
    su_w2 = jnp.concatenate([sum_wt[fd:], sus_wt[fd:]], axis=1)
    su_b = jnp.concatenate([p["sum_b"], p["sus_b"]]).reshape(1, -1)
    tu_w1 = _block_diag(tum_wt[:fd], tus_wt[:fd])
    tu_w2 = jnp.concatenate([tum_wt[fd:], tus_wt[fd:]], axis=1)
    tu_b = jnp.concatenate([p["tum_b"], p["tus_b"]]).reshape(1, -1)
    return dict(
        gc1_w=p["gc1_w"], gc1_b=p["gc1_b"].reshape(1, -1),
        gc2_w=p["gc2_w"], gc2_b=p["gc2_b"].reshape(1, -1),
        gc3_w=gc3_w, gc3_b=gc3_b, gc4_w=gc4_w, gc4_b=gc4_b,
        su_w1=su_w1, su_w2=su_w2, su_b=su_b,
        tu_w1=tu_w1, tu_w2=tu_w2, tu_b=tu_b,
    )


def build_combine_mats(opt):
    """Static (0/1 * rate) matrices encoding recbole_padding + rate-combine."""
    ov = opt["overlapped_num_users"]
    tn = opt["target_num_users"]
    total = opt["total_num_users"]
    rate = float(opt["rate"])
    n_src = (ov - 1) + (total - tn)
    n_tgt = tn - 1
    a_st = np.zeros((n_src, n_tgt), np.float32)   # adds (1-rate)*relu(t) to overlapped src rows
    a_ts = np.zeros((n_tgt, n_src), np.float32)   # adds rate*relu(s) to overlapped tgt rows
    for j in range(ov - 1):
        a_st[j, j] = 1.0 - rate
        a_ts[j, j] = rate
    p_s = np.zeros((total, n_src), np.float32)    # rate * (recbole source-user pad)
    for j in range(ov - 1):
        p_s[1 + j, j] = rate
    for j in range(ov - 1, n_src):
        p_s[tn + (j - (ov - 1)), j] = rate
    p_t = np.zeros((total, n_tgt), np.float32)    # (1-rate) * (recbole target-user pad)
    for i in range(n_tgt):
        p_t[1 + i, i] = 1.0 - rate
    return dict(a_st=jnp.asarray(a_st), a_ts=jnp.asarray(a_ts),
                p_s=jnp.asarray(p_s), p_t=jnp.asarray(p_t))


def prepare_params(params, opt):
    fd = opt["feature_dim"]
    return dict(
        dgcn=[prep_dgcn_layer(p, fd) for p in params["dgcn"]],
        last=prep_last_layer(params["last"], fd),
        mats=build_combine_mats(opt),
    )


# ----------------------------------------------------------------------------
# Main
# ----------------------------------------------------------------------------
if __name__ == "__main__":
    opt = dict(
        GNN=3,                     # 2 DGCN layers + 1 LastLayer
        feature_dim=32,
        hidden_dim=32,
        dropout=0.3,
        leakey=0.2,
        rate=0.7,
        overlapped_num_users=5,
        target_num_users=9,
        total_num_users=13,
        overlapped_num_items=3,
        target_num_items=7,
        total_num_items=11,
    )
    fd, hd = opt["feature_dim"], opt["hidden_dim"]
    # source users (no pad row): (overlapped-1) + (total - target) = 4 + 4 = 8
    n_src_users = (opt["overlapped_num_users"] - 1) + (
        opt["total_num_users"] - opt["target_num_users"]
    )
    n_tgt_users = opt["target_num_users"] - 1          # 8
    n_src_items, n_tgt_items = 10, 12

    key = jax.random.PRNGKey(0)
    k_param, k_in = jax.random.split(key)

    kd = jax.random.split(k_param, opt["GNN"])
    params = {
        "dgcn": [init_dgcn_layer(kd[i], fd, hd) for i in range(opt["GNN"] - 1)],
        "last": init_last_layer(kd[-1], fd, hd),
    }
    prepped = prepare_params(params, opt)

    ki = jax.random.split(k_in, 6)
    source_ufea = jax.random.normal(ki[0], (n_src_users, fd), jnp.float32)
    target_ufea = jax.random.normal(ki[1], (n_tgt_users, fd), jnp.float32)
    source_UV_adj = jax.random.uniform(ki[2], (n_src_users, n_src_items), jnp.float32)
    source_VU_adj = jax.random.uniform(ki[3], (n_src_items, n_src_users), jnp.float32)
    target_UV_adj = jax.random.uniform(ki[4], (n_tgt_users, n_tgt_items), jnp.float32)
    target_VU_adj = jax.random.uniform(ki[5], (n_tgt_items, n_tgt_users), jnp.float32)

    fwd = jax.jit(functools.partial(cross_vbge_forward, opt=opt))
    mean, sigma = fwd(prepped, source_ufea, target_ufea,
                      source_UV_adj, source_VU_adj, target_UV_adj, target_VU_adj)
    mean = jax.block_until_ready(mean)
    sigma = jax.block_until_ready(sigma)

    assert mean.shape == (opt["total_num_users"], fd)
    assert sigma.shape == (opt["total_num_users"], fd)
    assert bool(jnp.all(jnp.isfinite(mean))) and bool(jnp.all(jnp.isfinite(sigma)))
    print("KERNEL_OK")
</pallas_src>

<mosaic_0001>
module attributes {stable_mosaic.version = 11 : i64} {
  func.func @_dgcn_layer_kernel(%arg0: i32, %arg1: memref<8x32xf32, #tpu.memory_space<vmem>>, %arg2: memref<8x32xf32, #tpu.memory_space<vmem>>, %arg3: memref<8x10xf32, #tpu.memory_space<vmem>>, %arg4: memref<10x8xf32, #tpu.memory_space<vmem>>, %arg5: memref<8x12xf32, #tpu.memory_space<vmem>>, %arg6: memref<12x8xf32, #tpu.memory_space<vmem>>, %arg7: memref<32x32xf32, #tpu.memory_space<vmem>>, %arg8: memref<1x32xf32, #tpu.memory_space<vmem>>, %arg9: memref<32x32xf32, #tpu.memory_space<vmem>>, %arg10: memref<1x32xf32, #tpu.memory_space<vmem>>, %arg11: memref<32x32xf32, #tpu.memory_space<vmem>>, %arg12: memref<1x32xf32, #tpu.memory_space<vmem>>, %arg13: memref<32x32xf32, #tpu.memory_space<vmem>>, %arg14: memref<1x32xf32, #tpu.memory_space<vmem>>, %arg15: memref<32x32xf32, #tpu.memory_space<vmem>>, %arg16: memref<32x32xf32, #tpu.memory_space<vmem>>, %arg17: memref<1x32xf32, #tpu.memory_space<vmem>>, %arg18: memref<32x32xf32, #tpu.memory_space<vmem>>, %arg19: memref<32x32xf32, #tpu.memory_space<vmem>>, %arg20: memref<1x32xf32, #tpu.memory_space<vmem>>, %arg21: memref<8x8xf32, #tpu.memory_space<vmem>>, %arg22: memref<8x8xf32, #tpu.memory_space<vmem>>, %arg23: memref<8x32xf32, #tpu.memory_space<vmem>>, %arg24: memref<8x32xf32, #tpu.memory_space<vmem>>) attributes {dimension_semantics = [#tpu.dimension_semantics<arbitrary>], iteration_bounds = array<i64: 1>, scalar_prefetch = 0 : i64, scratch_operands = 0 : i64, tpu.core_type = #tpu.core_type<tc>, window_params = [{pipeline_mode = #tpu.pipeline_mode<synchronous>, transform_indices = @transform_0, window_bounds = array<i64: 8, 32>}, {pipeline_mode = #tpu.pipeline_mode<synchronous>, transform_indices = @transform_1, window_bounds = array<i64: 8, 32>}, {pipeline_mode = #tpu.pipeline_mode<synchronous>, transform_indices = @transform_2, window_bounds = array<i64: 8, 10>}, {pipeline_mode = #tpu.pipeline_mode<synchronous>, transform_indices = @transform_3, window_bounds = array<i64: 10, 8>}, {pipeline_mode = #tpu.pipeline_mode<synchronous>, transform_indices = @transform_4, window_bounds = array<i64: 8, 12>}, {pipeline_mode = #tpu.pipeline_mode<synchronous>, transform_indices = @transform_5, window_bounds = array<i64: 12, 8>}, {pipeline_mode = #tpu.pipeline_mode<synchronous>, transform_indices = @transform_6, window_bounds = array<i64: 32, 32>}, {pipeline_mode = #tpu.pipeline_mode<synchronous>, transform_indices = @transform_7, window_bounds = array<i64: 1, 32>}, {pipeline_mode = #tpu.pipeline_mode<synchronous>, transform_indices = @transform_8, window_bounds = array<i64: 32, 32>}, {pipeline_mode = #tpu.pipeline_mode<synchronous>, transform_indices = @transform_9, window_bounds = array<i64: 1, 32>}, {pipeline_mode = #tpu.pipeline_mode<synchronous>, transform_indices = @transform_10, window_bounds = array<i64: 32, 32>}, {pipeline_mode = #tpu.pipeline_mode<synchronous>, transform_indices = @transform_11, window_bounds = array<i64: 1, 32>}, {pipeline_mode = #tpu.pipeline_mode<synchronous>, transform_indices = @transform_12, window_bounds = array<i64: 32, 32>}, {pipeline_mode = #tpu.pipeline_mode<synchronous>, transform_indices = @transform_13, window_bounds = array<i64: 1, 32>}, {pipeline_mode = #tpu.pipeline_mode<synchronous>, transform_indices = @transform_14, window_bounds = array<i64: 32, 32>}, {pipeline_mode = #tpu.pipeline_mode<synchronous>, transform_indices = @transform_15, window_bounds = array<i64: 32, 32>}, {pipeline_mode = #tpu.pipeline_mode<synchronous>, transform_indices = @transform_16, window_bounds = array<i64: 1, 32>}, {pipeline_mode = #tpu.pipeline_mode<synchronous>, transform_indices = @transform_17, window_bounds = array<i64: 32, 32>}, {pipeline_mode = #tpu.pipeline_mode<synchronous>, transform_indices = @transform_18, window_bounds = array<i64: 32, 32>}, {pipeline_mode = #tpu.pipeline_mode<synchronous>, transform_indices = @transform_19, window_bounds = array<i64: 1, 32>}, {pipeline_mode = #tpu.pipeline_mode<synchronous>, transform_indices = @transform_20, window_bounds = array<i64: 8, 8>}, {pipeline_mode = #tpu.pipeline_mode<synchronous>, transform_indices = @transform_21, window_bounds = array<i64: 8, 8>}, {pipeline_mode = #tpu.pipeline_mode<synchronous>, transform_indices = @transform_22, window_bounds = array<i64: 8, 32>}, {pipeline_mode = #tpu.pipeline_mode<synchronous>, transform_indices = @transform_23, window_bounds = array<i64: 8, 32>}]} {
    %c0 = arith.constant 0 : index
    %c0_0 = arith.constant 0 : index
    %0 = vector.load %arg1[%c0, %c0_0] : memref<8x32xf32, #tpu.memory_space<vmem>>, vector<8x32xf32>
    %c0_1 = arith.constant 0 : index
    %c0_2 = arith.constant 0 : index
    %1 = vector.load %arg2[%c0_1, %c0_2] : memref<8x32xf32, #tpu.memory_space<vmem>>, vector<8x32xf32>
    %c0_3 = arith.constant 0 : index
    %c0_4 = arith.constant 0 : index
    %2 = vector.load %arg4[%c0_3, %c0_4] : memref<10x8xf32, #tpu.memory_space<vmem>>, vector<10x8xf32>
    %c0_5 = arith.constant 0 : index
    %c0_6 = arith.constant 0 : index
    %3 = vector.load %arg7[%c0_5, %c0_6] : memref<32x32xf32, #tpu.memory_space<vmem>>, vector<32x32xf32>
    %c0_7 = arith.constant 0 : index
    %c0_8 = arith.constant 0 : index
    %4 = vector.load %arg8[%c0_7, %c0_8] : memref<1x32xf32, #tpu.memory_space<vmem>>, vector<1x32xf32>
    %5 = arith.truncf %0 : vector<8x32xf32> to vector<8x32xbf16>
    %6 = arith.truncf %3 : vector<32x32xf32> to vector<32x32xbf16>
    %cst = arith.constant dense<0.000000e+00> : vector<8x32xf32>
    %7 = tpu.matmul %5, %6, %cst {dimension_numbers = #tpu.dot_dimension_numbers<[1], [0], [0], [1], [0, 0, 1, 1], [], []>} : vector<8x32xbf16>, vector<32x32xbf16>, vector<8x32xf32> -> vector<8x32xf32>
    %8 = arith.truncf %2 : vector<10x8xf32> to vector<10x8xbf16>
    %9 = arith.truncf %7 : vector<8x32xf32> to vector<8x32xbf16>
    %cst_9 = arith.constant dense<0.000000e+00> : vector<10x32xf32>
    %10 = tpu.matmul %8, %9, %cst_9 {dimension_numbers = #tpu.dot_dimension_numbers<[1], [0], [0], [1], [0, 0, 1, 1], [], []>} : vector<10x8xbf16>, vector<8x32xbf16>, vector<10x32xf32> -> vector<10x32xf32>
    %11 = vector.broadcast %4 : vector<1x32xf32> to vector<10x32xf32>
    %12 = arith.addf %10, %11 : vector<10x32xf32>
    %cst_10 = arith.constant 0.000000e+00 : f32
    %13 = vector.broadcast %cst_10 : f32 to vector<10x32xf32>
    %14 = arith.cmpf oge, %12, %13 : vector<10x32xf32>
    %cst_11 = arith.constant 2.000000e-01 : f32
    %15 = vector.broadcast %cst_11 : f32 to vector<10x32xf32>
    %16 = arith.mulf %15, %12 : vector<10x32xf32>
    %17 = arith.select %14, %12, %16 : vector<10x32xi1>, vector<10x32xf32>
    %c0_12 = arith.constant 0 : index
    %c0_13 = arith.constant 0 : index
    %18 = vector.load %arg3[%c0_12, %c0_13] : memref<8x10xf32, #tpu.memory_space<vmem>>, vector<8x10xf32>
    %c0_14 = arith.constant 0 : index
    %c0_15 = arith.constant 0 : index
    %19 = vector.load %arg11[%c0_14, %c0_15] : memref<32x32xf32, #tpu.memory_space<vmem>>, vector<32x32xf32>
    %c0_16 = arith.constant 0 : index
    %c0_17 = arith.constant 0 : index
    %20 = vector.load %arg12[%c0_16, %c0_17] : memref<1x32xf32, #tpu.memory_space<vmem>>, vector<1x32xf32>
    %21 = arith.truncf %17 : vector<10x32xf32> to vector<10x32xbf16>
    %22 = arith.truncf %19 : vector<32x32xf32> to vector<32x32xbf16>
    %cst_18 = arith.constant dense<0.000000e+00> : vector<10x32xf32>
    %23 = tpu.matmul %21, %22, %cst_18 {dimension_numbers = #tpu.dot_dimension_numbers<[1], [0], [0], [1], [0, 0, 1, 1], [], []>} : vector<10x32xbf16>, vector<32x32xbf16>, vector<10x32xf32> -> vector<10x32xf32>
    %24 = arith.truncf %18 : vector<8x10xf32> to vector<8x10xbf16>
    %25 = arith.truncf %23 : vector<10x32xf32> to vector<10x32xbf16>
    %cst_19 = arith.constant dense<0.000000e+00> : vector<8x32xf32>
    %26 = tpu.matmul %24, %25, %cst_19 {dimension_numbers = #tpu.dot_dimension_numbers<[1], [0], [0], [1], [0, 0, 1, 1], [], []>} : vector<8x10xbf16>, vector<10x32xbf16>, vector<8x32xf32> -> vector<8x32xf32>
    %27 = vector.broadcast %20 : vector<1x32xf32> to vector<8x32xf32>
    %28 = arith.addf %26, %27 : vector<8x32xf32>
    %cst_20 = arith.constant 0.000000e+00 : f32
    %29 = vector.broadcast %cst_20 : f32 to vector<8x32xf32>
    %30 = arith.cmpf oge, %28, %29 : vector<8x32xf32>
    %cst_21 = arith.constant 2.000000e-01 : f32
    %31 = vector.broadcast %cst_21 : f32 to vector<8x32xf32>
    %32 = arith.mulf %31, %28 : vector<8x32xf32>
    %33 = arith.select %30, %28, %32 : vector<8x32xi1>, vector<8x32xf32>
    %c0_22 = arith.constant 0 : index
    %c0_23 = arith.constant 0 : index
    %34 = vector.load %arg6[%c0_22, %c0_23] : memref<12x8xf32, #tpu.memory_space<vmem>>, vector<12x8xf32>
    %c0_24 = arith.constant 0 : index
    %c0_25 = arith.constant 0 : index
    %35 = vector.load %arg9[%c0_24, %c0_25] : memref<32x32xf32, #tpu.memory_space<vmem>>, vector<32x32xf32>
    %c0_26 = arith.constant 0 : index
    %c0_27 = arith.constant 0 : index
    %36 = vector.load %arg10[%c0_26, %c0_27] : memref<1x32xf32, #tpu.memory_space<vmem>>, vector<1x32xf32>
    %37 = arith.truncf %1 : vector<8x32xf32> to vector<8x32xbf16>
    %38 = arith.truncf %35 : vector<32x32xf32> to vector<32x32xbf16>
    %cst_28 = arith.constant dense<0.000000e+00> : vector<8x32xf32>
    %39 = tpu.matmul %37, %38, %cst_28 {dimension_numbers = #tpu.dot_dimension_numbers<[1], [0], [0], [1], [0, 0, 1, 1], [], []>} : vector<8x32xbf16>, vector<32x32xbf16>, vector<8x32xf32> -> vector<8x32xf32>
    %40 = arith.truncf %34 : vector<12x8xf32> to vector<12x8xbf16>
    %41 = arith.truncf %39 : vector<8x32xf32> to vector<8x32xbf16>
    %cst_29 = arith.constant dense<0.000000e+00> : vector<12x32xf32>
    %42 = tpu.matmul %40, %41, %cst_29 {dimension_numbers = #tpu.dot_dimension_numbers<[1], [0], [0], [1], [0, 0, 1, 1], [], []>} : vector<12x8xbf16>, vector<8x32xbf16>, vector<12x32xf32> -> vector<12x32xf32>
    %43 = vector.broadcast %36 : vector<1x32xf32> to vector<12x32xf32>
    %44 = arith.addf %42, %43 : vector<12x32xf32>
    %cst_30 = arith.constant 0.000000e+00 : f32
    %45 = vector.broadcast %cst_30 : f32 to vector<12x32xf32>
    %46 = arith.cmpf oge, %44, %45 : vector<12x32xf32>
    %cst_31 = arith.constant 2.000000e-01 : f32
    %47 = vector.broadcast %cst_31 : f32 to vector<12x32xf32>
    %48 = arith.mulf %47, %44 : vector<12x32xf32>
    %49 = arith.select %46, %44, %48 : vector<12x32xi1>, vector<12x32xf32>
    %c0_32 = arith.constant 0 : index
    %c0_33 = arith.constant 0 : index
    %50 = vector.load %arg5[%c0_32, %c0_33] : memref<8x12xf32, #tpu.memory_space<vmem>>, vector<8x12xf32>
    %c0_34 = arith.constant 0 : index
    %c0_35 = arith.constant 0 : index
    %51 = vector.load %arg13[%c0_34, %c0_35] : memref<32x32xf32, #tpu.memory_space<vmem>>, vector<32x32xf32>
    %c0_36 = arith.constant 0 : index
    %c0_37 = arith.constant 0 : index
    %52 = vector.load %arg14[%c0_36, %c0_37] : memref<1x32xf32, #tpu.memory_space<vmem>>, vector<1x32xf32>
    %53 = arith.truncf %49 : vector<12x32xf32> to vector<12x32xbf16>
    %54 = arith.truncf %51 : vector<32x32xf32> to vector<32x32xbf16>
    %cst_38 = arith.constant dense<0.000000e+00> : vector<12x32xf32>
    %55 = tpu.matmul %53, %54, %cst_38 {dimension_numbers = #tpu.dot_dimension_numbers<[1], [0], [0], [1], [0, 0, 1, 1], [], []>} : vector<12x32xbf16>, vector<32x32xbf16>, vector<12x32xf32> -> vector<12x32xf32>
    %56 = arith.truncf %50 : vector<8x12xf32> to vector<8x12xbf16>
    %57 = arith.truncf %55 : vector<12x32xf32> to vector<12x32xbf16>
    %cst_39 = arith.constant dense<0.000000e+00> : vector<8x32xf32>
    %58 = tpu.matmul %56, %57, %cst_39 {dimension_numbers = #tpu.dot_dimension_numbers<[1], [0], [0], [1], [0, 0, 1, 1], [], []>} : vector<8x12xbf16>, vector<12x32xbf16>, vector<8x32xf32> -> vector<8x32xf32>
    %59 = vector.broadcast %52 : vector<1x32xf32> to vector<8x32xf32>
    %60 = arith.addf %58, %59 : vector<8x32xf32>
    %cst_40 = arith.constant 0.000000e+00 : f32
    %61 = vector.broadcast %cst_40 : f32 to vector<8x32xf32>
    %62 = arith.cmpf oge, %60, %61 : vector<8x32xf32>
    %cst_41 = arith.constant 2.000000e-01 : f32
    %63 = vector.broadcast %cst_41 : f32 to vector<8x32xf32>
    %64 = arith.mulf %63, %60 : vector<8x32xf32>
    %65 = arith.select %62, %60, %64 : vector<8x32xi1>, vector<8x32xf32>
    %c0_42 = arith.constant 0 : index
    %c0_43 = arith.constant 0 : index
    %66 = vector.load %arg15[%c0_42, %c0_43] : memref<32x32xf32, #tpu.memory_space<vmem>>, vector<32x32xf32>
    %67 = arith.truncf %33 : vector<8x32xf32> to vector<8x32xbf16>
    %68 = arith.truncf %66 : vector<32x32xf32> to vector<32x32xbf16>
    %cst_44 = arith.constant dense<0.000000e+00> : vector<8x32xf32>
    %69 = tpu.matmul %67, %68, %cst_44 {dimension_numbers = #tpu.dot_dimension_numbers<[1], [0], [0], [1], [0, 0, 1, 1], [], []>} : vector<8x32xbf16>, vector<32x32xbf16>, vector<8x32xf32> -> vector<8x32xf32>
    %c0_45 = arith.constant 0 : index
    %c0_46 = arith.constant 0 : index
    %70 = vector.load %arg16[%c0_45, %c0_46] : memref<32x32xf32, #tpu.memory_space<vmem>>, vector<32x32xf32>
    %71 = arith.truncf %0 : vector<8x32xf32> to vector<8x32xbf16>
    %72 = arith.truncf %70 : vector<32x32xf32> to vector<32x32xbf16>
    %cst_47 = arith.constant dense<0.000000e+00> : vector<8x32xf32>
    %73 = tpu.matmul %71, %72, %cst_47 {dimension_numbers = #tpu.dot_dimension_numbers<[1], [0], [0], [1], [0, 0, 1, 1], [], []>} : vector<8x32xbf16>, vector<32x32xbf16>, vector<8x32xf32> -> vector<8x32xf32>
    %74 = arith.addf %69, %73 : vector<8x32xf32>
    %c0_48 = arith.constant 0 : index
    %c0_49 = arith.constant 0 : index
    %75 = vector.load %arg17[%c0_48, %c0_49] : memref<1x32xf32, #tpu.memory_space<vmem>>, vector<1x32xf32>
    %76 = vector.broadcast %75 : vector<1x32xf32> to vector<8x32xf32>
    %77 = arith.addf %74, %76 : vector<8x32xf32>
    %c0_50 = arith.constant 0 : index
    %c0_51 = arith.constant 0 : index
    %78 = vector.load %arg18[%c0_50, %c0_51] : memref<32x32xf32, #tpu.memory_space<vmem>>, vector<32x32xf32>
    %79 = arith.truncf %65 : vector<8x32xf32> to vector<8x32xbf16>
    %80 = arith.truncf %78 : vector<32x32xf32> to vector<32x32xbf16>
    %cst_52 = arith.constant dense<0.000000e+00> : vector<8x32xf32>
    %81 = tpu.matmul %79, %80, %cst_52 {dimension_numbers = #tpu.dot_dimension_numbers<[1], [0], [0], [1], [0, 0, 1, 1], [], []>} : vector<8x32xbf16>, vector<32x32xbf16>, vector<8x32xf32> -> vector<8x32xf32>
    %c0_53 = arith.constant 0 : index
    %c0_54 = arith.constant 0 : index
    %82 = vector.load %arg19[%c0_53, %c0_54] : memref<32x32xf32, #tpu.memory_space<vmem>>, vector<32x32xf32>
    %83 = arith.truncf %1 : vector<8x32xf32> to vector<8x32xbf16>
    %84 = arith.truncf %82 : vector<32x32xf32> to vector<32x32xbf16>
    %cst_55 = arith.constant dense<0.000000e+00> : vector<8x32xf32>
    %85 = tpu.matmul %83, %84, %cst_55 {dimension_numbers = #tpu.dot_dimension_numbers<[1], [0], [0], [1], [0, 0, 1, 1], [], []>} : vector<8x32xbf16>, vector<32x32xbf16>, vector<8x32xf32> -> vector<8x32xf32>
    %86 = arith.addf %81, %85 : vector<8x32xf32>
    %c0_56 = arith.constant 0 : index
    %c0_57 = arith.constant 0 : index
    %87 = vector.load %arg20[%c0_56, %c0_57] : memref<1x32xf32, #tpu.memory_space<vmem>>, vector<1x32xf32>
    %88 = vector.broadcast %87 : vector<1x32xf32> to vector<8x32xf32>
    %89 = arith.addf %86, %88 : vector<8x32xf32>
    %cst_58 = arith.constant 0.000000e+00 : f32
    %90 = vector.broadcast %cst_58 : f32 to vector<8x32xf32>
    %91 = arith.maximumf %77, %90 : vector<8x32xf32>
    %cst_59 = arith.constant 0.000000e+00 : f32
    %92 = vector.broadcast %cst_59 : f32 to vector<8x32xf32>
    %93 = arith.maximumf %89, %92 : vector<8x32xf32>
    %cst_60 = arith.constant 0.699999988 : f32
    %94 = vector.broadcast %cst_60 : f32 to vector<8x32xf32>
    %95 = arith.mulf %94, %91 : vector<8x32xf32>
    %c0_61 = arith.constant 0 : index
    %c0_62 = arith.constant 0 : index
    %96 = vector.load %arg21[%c0_61, %c0_62] : memref<8x8xf32, #tpu.memory_space<vmem>>, vector<8x8xf32>
    %cst_63 = arith.constant dense<0.000000e+00> : vector<8x32xf32>
    %97 = tpu.matmul %96, %93, %cst_63 {dimension_numbers = #tpu.dot_dimension_numbers<[1], [0], [0], [1], [0, 0, 1, 1], [], []>} : vector<8x8xf32>, vector<8x32xf32>, vector<8x32xf32> -> vector<8x32xf32>
    %98 = arith.addf %95, %97 : vector<8x32xf32>
    %c0_64 = arith.constant 0 : index
    %c0_65 = arith.constant 0 : index
    %99 = vector.load %arg23[%c0_64, %c0_65] : memref<8x32xf32, #tpu.memory_space<vmem>>, vector<8x32xf32>
    tpu.vector_store %arg23[%c0_64, %c0_65], %98 {strides = array<i32>} : memref<8x32xf32, #tpu.memory_space<vmem>>, vector<8x32xf32>,
    %cst_66 = arith.constant 3.000000e-01 : f32
    %100 = vector.broadcast %cst_66 : f32 to vector<8x32xf32>
    %101 = arith.mulf %100, %93 : vector<8x32xf32>
    %c0_67 = arith.constant 0 : index
    %c0_68 = arith.constant 0 : index
    %102 = vector.load %arg22[%c0_67, %c0_68] : memref<8x8xf32, #tpu.memory_space<vmem>>, vector<8x8xf32>
    %cst_69 = arith.constant dense<0.000000e+00> : vector<8x32xf32>
    %103 = tpu.matmul %102, %91, %cst_69 {dimension_numbers = #tpu.dot_dimension_numbers<[1], [0], [0], [1], [0, 0, 1, 1], [], []>} : vector<8x8xf32>, vector<8x32xf32>, vector<8x32xf32> -> vector<8x32xf32>
    %104 = arith.addf %101, %103 : vector<8x32xf32>
    %c0_70 = arith.constant 0 : index
    %c0_71 = arith.constant 0 : index
    %105 = vector.load %arg24[%c0_70, %c0_71] : memref<8x32xf32, #tpu.memory_space<vmem>>, vector<8x32xf32>
    tpu.vector_store %arg24[%c0_70, %c0_71], %104 {strides = array<i32>} : memref<8x32xf32, #tpu.memory_space<vmem>>, vector<8x32xf32>,
    return
  }
  func.func @transform_0(%arg0: i32) -> (i32, i32) {
    %c0_i32 = arith.constant 0 : i32
    %c0_i32_0 = arith.constant 0 : i32
    %c0_i32_1 = arith.constant 0 : i32
    return %c0_i32, %c0_i32_0 : i32, i32
  }
  func.func @transform_1(%arg0: i32) -> (i32, i32) {
    %c0_i32 = arith.constant 0 : i32
    %c0_i32_0 = arith.constant 0 : i32
    %c0_i32_1 = arith.constant 0 : i32
    return %c0_i32, %c0_i32_0 : i32, i32
  }
  func.func @transform_2(%arg0: i32) -> (i32, i32) {
    %c0_i32 = arith.constant 0 : i32
    %c0_i32_0 = arith.constant 0 : i32
    %c0_i32_1 = arith.constant 0 : i32
    return %c0_i32, %c0_i32_0 : i32, i32
  }
  func.func @transform_3(%arg0: i32) -> (i32, i32) {
    %c0_i32 = arith.constant 0 : i32
    %c0_i32_0 = arith.constant 0 : i32
    %c0_i32_1 = arith.constant 0 : i32
    return %c0_i32, %c0_i32_0 : i32, i32
  }
  func.func @transform_4(%arg0: i32) -> (i32, i32) {
    %c0_i32 = arith.constant 0 : i32
    %c0_i32_0 = arith.constant 0 : i32
    %c0_i32_1 = arith.constant 0 : i32
    return %c0_i32, %c0_i32_0 : i32, i32
  }
  func.func @transform_5(%arg0: i32) -> (i32, i32) {
    %c0_i32 = arith.constant 0 : i32
    %c0_i32_0 = arith.constant 0 : i32
    %c0_i32_1 = arith.constant 0 : i32
    return %c0_i32, %c0_i32_0 : i32, i32
  }
  func.func @transform_6(%arg0: i32) -> (i32, i32) {
    %c0_i32 = arith.constant 0 : i32
    %c0_i32_0 = arith.constant 0 : i32
    %c0_i32_1 = arith.constant 0 : i32
    return %c0_i32, %c0_i32_0 : i32, i32
  }
  func.func @transform_7(%arg0: i32) -> (i32, i32) {
    %c0_i32 = arith.constant 0 : i32
    %c0_i32_0 = arith.constant 0 : i32
    %c0_i32_1 = arith.constant 0 : i32
    return %c0_i32, %c0_i32_0 : i32, i32
  }
  func.func @transform_8(%arg0: i32) -> (i32, i32) {
    %c0_i32 = arith.constant 0 : i32
    %c0_i32_0 = arith.constant 0 : i32
    %c0_i32_1 = arith.constant 0 : i32
    return %c0_i32, %c0_i32_0 : i32, i32
  }
  func.func @transform_9(%arg0: i32) -> (i32, i32) {
    %c0_i32 = arith.constant 0 : i32
    %c0_i32_0 = arith.constant 0 : i32
    %c0_i32_1 = arith.constant 0 : i32
    return %c0_i32, %c0_i32_0 : i32, i32
  }
  func.func @transform_10(%arg0: i32) -> (i32, i32) {
    %c0_i32 = arith.constant 0 : i32
    %c0_i32_0 = arith.constant 0 : i32
    %c0_i32_1 = arith.constant 0 : i32
    return %c0_i32, %c0_i32_0 : i32, i32
  }
  func.func @transform_11(%arg0: i32) -> (i32, i32) {
    %c0_i32 = arith.constant 0 : i32
    %c0_i32_0 = arith.constant 0 : i32
    %c0_i32_1 = arith.constant 0 : i32
    return %c0_i32, %c0_i32_0 : i32, i32
  }
  func.func @transform_12(%arg0: i32) -> (i32, i32) {
    %c0_i32 = arith.constant 0 : i32
    %c0_i32_0 = arith.constant 0 : i32
    %c0_i32_1 = arith.constant 0 : i32
    return %c0_i32, %c0_i32_0 : i32, i32
  }
  func.func @transform_13(%arg0: i32) -> (i32, i32) {
    %c0_i32 = arith.constant 0 : i32
    %c0_i32_0 = arith.constant 0 : i32
    %c0_i32_1 = arith.constant 0 : i32
    return %c0_i32, %c0_i32_0 : i32, i32
  }
  func.func @transform_14(%arg0: i32) -> (i32, i32) {
    %c0_i32 = arith.constant 0 : i32
    %c0_i32_0 = arith.constant 0 : i32
    %c0_i32_1 = arith.constant 0 : i32
    return %c0_i32, %c0_i32_0 : i32, i32
  }
  func.func @transform_15(%arg0: i32) -> (i32, i32) {
    %c0_i32 = arith.constant 0 : i32
    %c0_i32_0 = arith.constant 0 : i32
    %c0_i32_1 = arith.constant 0 : i32
    return %c0_i32, %c0_i32_0 : i32, i32
  }
  func.func @transform_16(%arg0: i32) -> (i32, i32) {
    %c0_i32 = arith.constant 0 : i32
    %c0_i32_0 = arith.constant 0 : i32
    %c0_i32_1 = arith.constant 0 : i32
    return %c0_i32, %c0_i32_0 : i32, i32
  }
  func.func @transform_17(%arg0: i32) -> (i32, i32) {
    %c0_i32 = arith.constant 0 : i32
    %c0_i32_0 = arith.constant 0 : i32
    %c0_i32_1 = arith.constant 0 : i32
    return %c0_i32, %c0_i32_0 : i32, i32
  }
  func.func @transform_18(%arg0: i32) -> (i32, i32) {
    %c0_i32 = arith.constant 0 : i32
    %c0_i32_0 = arith.constant 0 : i32
    %c0_i32_1 = arith.constant 0 : i32
    return %c0_i32, %c0_i32_0 : i32, i32
  }
  func.func @transform_19(%arg0: i32) -> (i32, i32) {
    %c0_i32 = arith.constant 0 : i32
    %c0_i32_0 = arith.constant 0 : i32
    %c0_i32_1 = arith.constant 0 : i32
    return %c0_i32, %c0_i32_0 : i32, i32
  }
  func.func @transform_20(%arg0: i32) -> (i32, i32) {
    %c0_i32 = arith.constant 0 : i32
    %c0_i32_0 = arith.constant 0 : i32
    %c0_i32_1 = arith.constant 0 : i32
    return %c0_i32, %c0_i32_0 : i32, i32
  }
  func.func @transform_21(%arg0: i32) -> (i32, i32) {
    %c0_i32 = arith.constant 0 : i32
    %c0_i32_0 = arith.constant 0 : i32
    %c0_i32_1 = arith.constant 0 : i32
    return %c0_i32, %c0_i32_0 : i32, i32
  }
  func.func @transform_22(%arg0: i32) -> (i32, i32) {
    %c0_i32 = arith.constant 0 : i32
    %c0_i32_0 = arith.constant 0 : i32
    %c0_i32_1 = arith.constant 0 : i32
    return %c0_i32, %c0_i32_0 : i32, i32
  }
  func.func @transform_23(%arg0: i32) -> (i32, i32) {
    %c0_i32 = arith.constant 0 : i32
    %c0_i32_0 = arith.constant 0 : i32
    %c0_i32_1 = arith.constant 0 : i32
    return %c0_i32, %c0_i32_0 : i32, i32
  }
}

module attributes {stable_mosaic.version = 11 : i64} {
  func.func @_dgcn_layer_kernel(%arg0: i32, %arg1: memref<8x32xf32, #tpu.memory_space<vmem>>, %arg2: memref<8x32xf32, #tpu.memory_space<vmem>>, %arg3: memref<8x10xf32, #tpu.memory_space<vmem>>, %arg4: memref<10x8xf32, #tpu.memory_space<vmem>>, %arg5: memref<8x12xf32, #tpu.memory_space<vmem>>, %arg6: memref<12x8xf32, #tpu.memory_space<vmem>>, %arg7: memref<32x32xf32, #tpu.memory_space<vmem>>, %arg8: memref<1x32xf32, #tpu.memory_space<vmem>>, %arg9: memref<32x32xf32, #tpu.memory_space<vmem>>, %arg10: memref<1x32xf32, #tpu.memory_space<vmem>>, %arg11: memref<32x32xf32, #tpu.memory_space<vmem>>, %arg12: memref<1x32xf32, #tpu.memory_space<vmem>>, %arg13: memref<32x32xf32, #tpu.memory_space<vmem>>, %arg14: memref<1x32xf32, #tpu.memory_space<vmem>>, %arg15: memref<32x32xf32, #tpu.memory_space<vmem>>, %arg16: memref<32x32xf32, #tpu.memory_space<vmem>>, %arg17: memref<1x32xf32, #tpu.memory_space<vmem>>, %arg18: memref<32x32xf32, #tpu.memory_space<vmem>>, %arg19: memref<32x32xf32, #tpu.memory_space<vmem>>, %arg20: memref<1x32xf32, #tpu.memory_space<vmem>>, %arg21: memref<8x8xf32, #tpu.memory_space<vmem>>, %arg22: memref<8x8xf32, #tpu.memory_space<vmem>>, %arg23: memref<8x32xf32, #tpu.memory_space<vmem>>, %arg24: memref<8x32xf32, #tpu.memory_space<vmem>>) attributes {dimension_semantics = [#tpu.dimension_semantics<arbitrary>], iteration_bounds = array<i64: 1>, scalar_prefetch = 0 : i64, scratch_operands = 0 : i64, tpu.core_type = #tpu.core_type<tc>, window_params = [{pipeline_mode = #tpu.pipeline_mode<synchronous>, transform_indices = @transform_0, window_bounds = array<i64: 8, 32>}, {pipeline_mode = #tpu.pipeline_mode<synchronous>, transform_indices = @transform_1, window_bounds = array<i64: 8, 32>}, {pipeline_mode = #tpu.pipeline_mode<synchronous>, transform_indices = @transform_2, window_bounds = array<i64: 8, 10>}, {pipeline_mode = #tpu.pipeline_mode<synchronous>, transform_indices = @transform_3, window_bounds = array<i64: 10, 8>}, {pipeline_mode = #tpu.pipeline_mode<synchronous>, transform_indices = @transform_4, window_bounds = array<i64: 8, 12>}, {pipeline_mode = #tpu.pipeline_mode<synchronous>, transform_indices = @transform_5, window_bounds = array<i64: 12, 8>}, {pipeline_mode = #tpu.pipeline_mode<synchronous>, transform_indices = @transform_6, window_bounds = array<i64: 32, 32>}, {pipeline_mode = #tpu.pipeline_mode<synchronous>, transform_indices = @transform_7, window_bounds = array<i64: 1, 32>}, {pipeline_mode = #tpu.pipeline_mode<synchronous>, transform_indices = @transform_8, window_bounds = array<i64: 32, 32>}, {pipeline_mode = #tpu.pipeline_mode<synchronous>, transform_indices = @transform_9, window_bounds = array<i64: 1, 32>}, {pipeline_mode = #tpu.pipeline_mode<synchronous>, transform_indices = @transform_10, window_bounds = array<i64: 32, 32>}, {pipeline_mode = #tpu.pipeline_mode<synchronous>, transform_indices = @transform_11, window_bounds = array<i64: 1, 32>}, {pipeline_mode = #tpu.pipeline_mode<synchronous>, transform_indices = @transform_12, window_bounds = array<i64: 32, 32>}, {pipeline_mode = #tpu.pipeline_mode<synchronous>, transform_indices = @transform_13, window_bounds = array<i64: 1, 32>}, {pipeline_mode = #tpu.pipeline_mode<synchronous>, transform_indices = @transform_14, window_bounds = array<i64: 32, 32>}, {pipeline_mode = #tpu.pipeline_mode<synchronous>, transform_indices = @transform_15, window_bounds = array<i64: 32, 32>}, {pipeline_mode = #tpu.pipeline_mode<synchronous>, transform_indices = @transform_16, window_bounds = array<i64: 1, 32>}, {pipeline_mode = #tpu.pipeline_mode<synchronous>, transform_indices = @transform_17, window_bounds = array<i64: 32, 32>}, {pipeline_mode = #tpu.pipeline_mode<synchronous>, transform_indices = @transform_18, window_bounds = array<i64: 32, 32>}, {pipeline_mode = #tpu.pipeline_mode<synchronous>, transform_indices = @transform_19, window_bounds = array<i64: 1, 32>}, {pipeline_mode = #tpu.pipeline_mode<synchronous>, transform_indices = @transform_20, window_bounds = array<i64: 8, 8>}, {pipeline_mode = #tpu.pipeline_mode<synchronous>, transform_indices = @transform_21, window_bounds = array<i64: 8, 8>}, {pipeline_mode = #tpu.pipeline_mode<synchronous>, transform_indices = @transform_22, window_bounds = array<i64: 8, 32>}, {pipeline_mode = #tpu.pipeline_mode<synchronous>, transform_indices = @transform_23, window_bounds = array<i64: 8, 32>}]} {
    %c0 = arith.constant 0 : index
    %c0_0 = arith.constant 0 : index
    %0 = vector.load %arg1[%c0, %c0_0] : memref<8x32xf32, #tpu.memory_space<vmem>>, vector<8x32xf32>
    %c0_1 = arith.constant 0 : index
    %c0_2 = arith.constant 0 : index
    %1 = vector.load %arg2[%c0_1, %c0_2] : memref<8x32xf32, #tpu.memory_space<vmem>>, vector<8x32xf32>
    %c0_3 = arith.constant 0 : index
    %c0_4 = arith.constant 0 : index
    %2 = vector.load %arg4[%c0_3, %c0_4] : memref<10x8xf32, #tpu.memory_space<vmem>>, vector<10x8xf32>
    %c0_5 = arith.constant 0 : index
    %c0_6 = arith.constant 0 : index
    %3 = vector.load %arg7[%c0_5, %c0_6] : memref<32x32xf32, #tpu.memory_space<vmem>>, vector<32x32xf32>
    %c0_7 = arith.constant 0 : index
    %c0_8 = arith.constant 0 : index
    %4 = vector.load %arg8[%c0_7, %c0_8] : memref<1x32xf32, #tpu.memory_space<vmem>>, vector<1x32xf32>
    %5 = arith.truncf %0 : vector<8x32xf32> to vector<8x32xbf16>
    %6 = arith.truncf %3 : vector<32x32xf32> to vector<32x32xbf16>
    %cst = arith.constant dense<0.000000e+00> : vector<8x32xf32>
    %7 = tpu.matmul %5, %6, %cst {dimension_numbers = #tpu.dot_dimension_numbers<[1], [0], [0], [1], [0, 0, 1, 1], [], []>} : vector<8x32xbf16>, vector<32x32xbf16>, vector<8x32xf32> -> vector<8x32xf32>
    %8 = arith.truncf %2 : vector<10x8xf32> to vector<10x8xbf16>
    %9 = arith.truncf %7 : vector<8x32xf32> to vector<8x32xbf16>
    %cst_9 = arith.constant dense<0.000000e+00> : vector<10x32xf32>
    %10 = tpu.matmul %8, %9, %cst_9 {dimension_numbers = #tpu.dot_dimension_numbers<[1], [0], [0], [1], [0, 0, 1, 1], [], []>} : vector<10x8xbf16>, vector<8x32xbf16>, vector<10x32xf32> -> vector<10x32xf32>
    %11 = vector.broadcast %4 : vector<1x32xf32> to vector<10x32xf32>
    %12 = arith.addf %10, %11 : vector<10x32xf32>
    %cst_10 = arith.constant 0.000000e+00 : f32
    %13 = vector.broadcast %cst_10 : f32 to vector<10x32xf32>
    %14 = arith.cmpf oge, %12, %13 : vector<10x32xf32>
    %cst_11 = arith.constant 2.000000e-01 : f32
    %15 = vector.broadcast %cst_11 : f32 to vector<10x32xf32>
    %16 = arith.mulf %15, %12 : vector<10x32xf32>
    %17 = arith.select %14, %12, %16 : vector<10x32xi1>, vector<10x32xf32>
    %c0_12 = arith.constant 0 : index
    %c0_13 = arith.constant 0 : index
    %18 = vector.load %arg3[%c0_12, %c0_13] : memref<8x10xf32, #tpu.memory_space<vmem>>, vector<8x10xf32>
    %c0_14 = arith.constant 0 : index
    %c0_15 = arith.constant 0 : index
    %19 = vector.load %arg11[%c0_14, %c0_15] : memref<32x32xf32, #tpu.memory_space<vmem>>, vector<32x32xf32>
    %c0_16 = arith.constant 0 : index
    %c0_17 = arith.constant 0 : index
    %20 = vector.load %arg12[%c0_16, %c0_17] : memref<1x32xf32, #tpu.memory_space<vmem>>, vector<1x32xf32>
    %21 = arith.truncf %17 : vector<10x32xf32> to vector<10x32xbf16>
    %22 = arith.truncf %19 : vector<32x32xf32> to vector<32x32xbf16>
    %cst_18 = arith.constant dense<0.000000e+00> : vector<10x32xf32>
    %23 = tpu.matmul %21, %22, %cst_18 {dimension_numbers = #tpu.dot_dimension_numbers<[1], [0], [0], [1], [0, 0, 1, 1], [], []>} : vector<10x32xbf16>, vector<32x32xbf16>, vector<10x32xf32> -> vector<10x32xf32>
    %24 = arith.truncf %18 : vector<8x10xf32> to vector<8x10xbf16>
    %25 = arith.truncf %23 : vector<10x32xf32> to vector<10x32xbf16>
    %cst_19 = arith.constant dense<0.000000e+00> : vector<8x32xf32>
    %26 = tpu.matmul %24, %25, %cst_19 {dimension_numbers = #tpu.dot_dimension_numbers<[1], [0], [0], [1], [0, 0, 1, 1], [], []>} : vector<8x10xbf16>, vector<10x32xbf16>, vector<8x32xf32> -> vector<8x32xf32>
    %27 = vector.broadcast %20 : vector<1x32xf32> to vector<8x32xf32>
    %28 = arith.addf %26, %27 : vector<8x32xf32>
    %cst_20 = arith.constant 0.000000e+00 : f32
    %29 = vector.broadcast %cst_20 : f32 to vector<8x32xf32>
    %30 = arith.cmpf oge, %28, %29 : vector<8x32xf32>
    %cst_21 = arith.constant 2.000000e-01 : f32
    %31 = vector.broadcast %cst_21 : f32 to vector<8x32xf32>
    %32 = arith.mulf %31, %28 : vector<8x32xf32>
    %33 = arith.select %30, %28, %32 : vector<8x32xi1>, vector<8x32xf32>
    %c0_22 = arith.constant 0 : index
    %c0_23 = arith.constant 0 : index
    %34 = vector.load %arg6[%c0_22, %c0_23] : memref<12x8xf32, #tpu.memory_space<vmem>>, vector<12x8xf32>
    %c0_24 = arith.constant 0 : index
    %c0_25 = arith.constant 0 : index
    %35 = vector.load %arg9[%c0_24, %c0_25] : memref<32x32xf32, #tpu.memory_space<vmem>>, vector<32x32xf32>
    %c0_26 = arith.constant 0 : index
    %c0_27 = arith.constant 0 : index
    %36 = vector.load %arg10[%c0_26, %c0_27] : memref<1x32xf32, #tpu.memory_space<vmem>>, vector<1x32xf32>
    %37 = arith.truncf %1 : vector<8x32xf32> to vector<8x32xbf16>
    %38 = arith.truncf %35 : vector<32x32xf32> to vector<32x32xbf16>
    %cst_28 = arith.constant dense<0.000000e+00> : vector<8x32xf32>
    %39 = tpu.matmul %37, %38, %cst_28 {dimension_numbers = #tpu.dot_dimension_numbers<[1], [0], [0], [1], [0, 0, 1, 1], [], []>} : vector<8x32xbf16>, vector<32x32xbf16>, vector<8x32xf32> -> vector<8x32xf32>
    %40 = arith.truncf %34 : vector<12x8xf32> to vector<12x8xbf16>
    %41 = arith.truncf %39 : vector<8x32xf32> to vector<8x32xbf16>
    %cst_29 = arith.constant dense<0.000000e+00> : vector<12x32xf32>
    %42 = tpu.matmul %40, %41, %cst_29 {dimension_numbers = #tpu.dot_dimension_numbers<[1], [0], [0], [1], [0, 0, 1, 1], [], []>} : vector<12x8xbf16>, vector<8x32xbf16>, vector<12x32xf32> -> vector<12x32xf32>
    %43 = vector.broadcast %36 : vector<1x32xf32> to vector<12x32xf32>
    %44 = arith.addf %42, %43 : vector<12x32xf32>
    %cst_30 = arith.constant 0.000000e+00 : f32
    %45 = vector.broadcast %cst_30 : f32 to vector<12x32xf32>
    %46 = arith.cmpf oge, %44, %45 : vector<12x32xf32>
    %cst_31 = arith.constant 2.000000e-01 : f32
    %47 = vector.broadcast %cst_31 : f32 to vector<12x32xf32>
    %48 = arith.mulf %47, %44 : vector<12x32xf32>
    %49 = arith.select %46, %44, %48 : vector<12x32xi1>, vector<12x32xf32>
    %c0_32 = arith.constant 0 : index
    %c0_33 = arith.constant 0 : index
    %50 = vector.load %arg5[%c0_32, %c0_33] : memref<8x12xf32, #tpu.memory_space<vmem>>, vector<8x12xf32>
    %c0_34 = arith.constant 0 : index
    %c0_35 = arith.constant 0 : index
    %51 = vector.load %arg13[%c0_34, %c0_35] : memref<32x32xf32, #tpu.memory_space<vmem>>, vector<32x32xf32>
    %c0_36 = arith.constant 0 : index
    %c0_37 = arith.constant 0 : index
    %52 = vector.load %arg14[%c0_36, %c0_37] : memref<1x32xf32, #tpu.memory_space<vmem>>, vector<1x32xf32>
    %53 = arith.truncf %49 : vector<12x32xf32> to vector<12x32xbf16>
    %54 = arith.truncf %51 : vector<32x32xf32> to vector<32x32xbf16>
    %cst_38 = arith.constant dense<0.000000e+00> : vector<12x32xf32>
    %55 = tpu.matmul %53, %54, %cst_38 {dimension_numbers = #tpu.dot_dimension_numbers<[1], [0], [0], [1], [0, 0, 1, 1], [], []>} : vector<12x32xbf16>, vector<32x32xbf16>, vector<12x32xf32> -> vector<12x32xf32>
    %56 = arith.truncf %50 : vector<8x12xf32> to vector<8x12xbf16>
    %57 = arith.truncf %55 : vector<12x32xf32> to vector<12x32xbf16>
    %cst_39 = arith.constant dense<0.000000e+00> : vector<8x32xf32>
    %58 = tpu.matmul %56, %57, %cst_39 {dimension_numbers = #tpu.dot_dimension_numbers<[1], [0], [0], [1], [0, 0, 1, 1], [], []>} : vector<8x12xbf16>, vector<12x32xbf16>, vector<8x32xf32> -> vector<8x32xf32>
    %59 = vector.broadcast %52 : vector<1x32xf32> to vector<8x32xf32>
    %60 = arith.addf %58, %59 : vector<8x32xf32>
    %cst_40 = arith.constant 0.000000e+00 : f32
    %61 = vector.broadcast %cst_40 : f32 to vector<8x32xf32>
    %62 = arith.cmpf oge, %60, %61 : vector<8x32xf32>
    %cst_41 = arith.constant 2.000000e-01 : f32
    %63 = vector.broadcast %cst_41 : f32 to vector<8x32xf32>
    %64 = arith.mulf %63, %60 : vector<8x32xf32>
    %65 = arith.select %62, %60, %64 : vector<8x32xi1>, vector<8x32xf32>
    %c0_42 = arith.constant 0 : index
    %c0_43 = arith.constant 0 : index
    %66 = vector.load %arg15[%c0_42, %c0_43] : memref<32x32xf32, #tpu.memory_space<vmem>>, vector<32x32xf32>
    %67 = arith.truncf %33 : vector<8x32xf32> to vector<8x32xbf16>
    %68 = arith.truncf %66 : vector<32x32xf32> to vector<32x32xbf16>
    %cst_44 = arith.constant dense<0.000000e+00> : vector<8x32xf32>
    %69 = tpu.matmul %67, %68, %cst_44 {dimension_numbers = #tpu.dot_dimension_numbers<[1], [0], [0], [1], [0, 0, 1, 1], [], []>} : vector<8x32xbf16>, vector<32x32xbf16>, vector<8x32xf32> -> vector<8x32xf32>
    %c0_45 = arith.constant 0 : index
    %c0_46 = arith.constant 0 : index
    %70 = vector.load %arg16[%c0_45, %c0_46] : memref<32x32xf32, #tpu.memory_space<vmem>>, vector<32x32xf32>
    %71 = arith.truncf %0 : vector<8x32xf32> to vector<8x32xbf16>
    %72 = arith.truncf %70 : vector<32x32xf32> to vector<32x32xbf16>
    %cst_47 = arith.constant dense<0.000000e+00> : vector<8x32xf32>
    %73 = tpu.matmul %71, %72, %cst_47 {dimension_numbers = #tpu.dot_dimension_numbers<[1], [0], [0], [1], [0, 0, 1, 1], [], []>} : vector<8x32xbf16>, vector<32x32xbf16>, vector<8x32xf32> -> vector<8x32xf32>
    %74 = arith.addf %69, %73 : vector<8x32xf32>
    %c0_48 = arith.constant 0 : index
    %c0_49 = arith.constant 0 : index
    %75 = vector.load %arg17[%c0_48, %c0_49] : memref<1x32xf32, #tpu.memory_space<vmem>>, vector<1x32xf32>
    %76 = vector.broadcast %75 : vector<1x32xf32> to vector<8x32xf32>
    %77 = arith.addf %74, %76 : vector<8x32xf32>
    %c0_50 = arith.constant 0 : index
    %c0_51 = arith.constant 0 : index
    %78 = vector.load %arg18[%c0_50, %c0_51] : memref<32x32xf32, #tpu.memory_space<vmem>>, vector<32x32xf32>
    %79 = arith.truncf %65 : vector<8x32xf32> to vector<8x32xbf16>
    %80 = arith.truncf %78 : vector<32x32xf32> to vector<32x32xbf16>
    %cst_52 = arith.constant dense<0.000000e+00> : vector<8x32xf32>
    %81 = tpu.matmul %79, %80, %cst_52 {dimension_numbers = #tpu.dot_dimension_numbers<[1], [0], [0], [1], [0, 0, 1, 1], [], []>} : vector<8x32xbf16>, vector<32x32xbf16>, vector<8x32xf32> -> vector<8x32xf32>
    %c0_53 = arith.constant 0 : index
    %c0_54 = arith.constant 0 : index
    %82 = vector.load %arg19[%c0_53, %c0_54] : memref<32x32xf32, #tpu.memory_space<vmem>>, vector<32x32xf32>
    %83 = arith.truncf %1 : vector<8x32xf32> to vector<8x32xbf16>
    %84 = arith.truncf %82 : vector<32x32xf32> to vector<32x32xbf16>
    %cst_55 = arith.constant dense<0.000000e+00> : vector<8x32xf32>
    %85 = tpu.matmul %83, %84, %cst_55 {dimension_numbers = #tpu.dot_dimension_numbers<[1], [0], [0], [1], [0, 0, 1, 1], [], []>} : vector<8x32xbf16>, vector<32x32xbf16>, vector<8x32xf32> -> vector<8x32xf32>
    %86 = arith.addf %81, %85 : vector<8x32xf32>
    %c0_56 = arith.constant 0 : index
    %c0_57 = arith.constant 0 : index
    %87 = vector.load %arg20[%c0_56, %c0_57] : memref<1x32xf32, #tpu.memory_space<vmem>>, vector<1x32xf32>
    %88 = vector.broadcast %87 : vector<1x32xf32> to vector<8x32xf32>
    %89 = arith.addf %86, %88 : vector<8x32xf32>
    %cst_58 = arith.constant 0.000000e+00 : f32
    %90 = vector.broadcast %cst_58 : f32 to vector<8x32xf32>
    %91 = arith.maximumf %77, %90 : vector<8x32xf32>
    %cst_59 = arith.constant 0.000000e+00 : f32
    %92 = vector.broadcast %cst_59 : f32 to vector<8x32xf32>
    %93 = arith.maximumf %89, %92 : vector<8x32xf32>
    %cst_60 = arith.constant 0.699999988 : f32
    %94 = vector.broadcast %cst_60 : f32 to vector<8x32xf32>
    %95 = arith.mulf %94, %91 : vector<8x32xf32>
    %c0_61 = arith.constant 0 : index
    %c0_62 = arith.constant 0 : index
    %96 = vector.load %arg21[%c0_61, %c0_62] : memref<8x8xf32, #tpu.memory_space<vmem>>, vector<8x8xf32>
    %cst_63 = arith.constant dense<0.000000e+00> : vector<8x32xf32>
    %97 = tpu.matmul %96, %93, %cst_63 {dimension_numbers = #tpu.dot_dimension_numbers<[1], [0], [0], [1], [0, 0, 1, 1], [], []>} : vector<8x8xf32>, vector<8x32xf32>, vector<8x32xf32> -> vector<8x32xf32>
    %98 = arith.addf %95, %97 : vector<8x32xf32>
    %c0_64 = arith.constant 0 : index
    %c0_65 = arith.constant 0 : index
    %99 = vector.load %arg23[%c0_64, %c0_65] : memref<8x32xf32, #tpu.memory_space<vmem>>, vector<8x32xf32>
    tpu.vector_store %arg23[%c0_64, %c0_65], %98 {strides = array<i32>} : memref<8x32xf32, #tpu.memory_space<vmem>>, vector<8x32xf32>,
    %cst_66 = arith.constant 3.000000e-01 : f32
    %100 = vector.broadcast %cst_66 : f32 to vector<8x32xf32>
    %101 = arith.mulf %100, %93 : vector<8x32xf32>
    %c0_67 = arith.constant 0 : index
    %c0_68 = arith.constant 0 : index
    %102 = vector.load %arg22[%c0_67, %c0_68] : memref<8x8xf32, #tpu.memory_space<vmem>>, vector<8x8xf32>
    %cst_69 = arith.constant dense<0.000000e+00> : vector<8x32xf32>
    %103 = tpu.matmul %102, %91, %cst_69 {dimension_numbers = #tpu.dot_dimension_numbers<[1], [0], [0], [1], [0, 0, 1, 1], [], []>} : vector<8x8xf32>, vector<8x32xf32>, vector<8x32xf32> -> vector<8x32xf32>
    %104 = arith.addf %101, %103 : vector<8x32xf32>
    %c0_70 = arith.constant 0 : index
    %c0_71 = arith.constant 0 : index
    %105 = vector.load %arg24[%c0_70, %c0_71] : memref<8x32xf32, #tpu.memory_space<vmem>>, vector<8x32xf32>
    tpu.vector_store %arg24[%c0_70, %c0_71], %104 {strides = array<i32>} : memref<8x32xf32, #tpu.memory_space<vmem>>, vector<8x32xf32>,
    return
  }
  func.func @transform_0(%arg0: i32) -> (i32, i32) {
    %c0_i32 = arith.constant 0 : i32
    %c0_i32_0 = arith.constant 0 : i32
    %c0_i32_1 = arith.constant 0 : i32
    return %c0_i32, %c0_i32_0 : i32, i32
  }
  func.func @transform_1(%arg0: i32) -> (i32, i32) {
    %c0_i32 = arith.constant 0 : i32
    %c0_i32_0 = arith.constant 0 : i32
    %c0_i32_1 = arith.constant 0 : i32
    return %c0_i32, %c0_i32_0 : i32, i32
  }
  func.func @transform_2(%arg0: i32) -> (i32, i32) {
    %c0_i32 = arith.constant 0 : i32
    %c0_i32_0 = arith.constant 0 : i32
    %c0_i32_1 = arith.constant 0 : i32
    return %c0_i32, %c0_i32_0 : i32, i32
  }
  func.func @transform_3(%arg0: i32) -> (i32, i32) {
    %c0_i32 = arith.constant 0 : i32
    %c0_i32_0 = arith.constant 0 : i32
    %c0_i32_1 = arith.constant 0 : i32
    return %c0_i32, %c0_i32_0 : i32, i32
  }
  func.func @transform_4(%arg0: i32) -> (i32, i32) {
    %c0_i32 = arith.constant 0 : i32
    %c0_i32_0 = arith.constant 0 : i32
    %c0_i32_1 = arith.constant 0 : i32
    return %c0_i32, %c0_i32_0 : i32, i32
  }
  func.func @transform_5(%arg0: i32) -> (i32, i32) {
    %c0_i32 = arith.constant 0 : i32
    %c0_i32_0 = arith.constant 0 : i32
    %c0_i32_1 = arith.constant 0 : i32
    return %c0_i32, %c0_i32_0 : i32, i32
  }
  func.func @transform_6(%arg0: i32) -> (i32, i32) {
    %c0_i32 = arith.constant 0 : i32
    %c0_i32_0 = arith.constant 0 : i32
    %c0_i32_1 = arith.constant 0 : i32
    return %c0_i32, %c0_i32_0 : i32, i32
  }
  func.func @transform_7(%arg0: i32) -> (i32, i32) {
    %c0_i32 = arith.constant 0 : i32
    %c0_i32_0 = arith.constant 0 : i32
    %c0_i32_1 = arith.constant 0 : i32
    return %c0_i32, %c0_i32_0 : i32, i32
  }
  func.func @transform_8(%arg0: i32) -> (i32, i32) {
    %c0_i32 = arith.constant 0 : i32
    %c0_i32_0 = arith.constant 0 : i32
    %c0_i32_1 = arith.constant 0 : i32
    return %c0_i32, %c0_i32_0 : i32, i32
  }
  func.func @transform_9(%arg0: i32) -> (i32, i32) {
    %c0_i32 = arith.constant 0 : i32
    %c0_i32_0 = arith.constant 0 : i32
    %c0_i32_1 = arith.constant 0 : i32
    return %c0_i32, %c0_i32_0 : i32, i32
  }
  func.func @transform_10(%arg0: i32) -> (i32, i32) {
    %c0_i32 = arith.constant 0 : i32
    %c0_i32_0 = arith.constant 0 : i32
    %c0_i32_1 = arith.constant 0 : i32
    return %c0_i32, %c0_i32_0 : i32, i32
  }
  func.func @transform_11(%arg0: i32) -> (i32, i32) {
    %c0_i32 = arith.constant 0 : i32
    %c0_i32_0 = arith.constant 0 : i32
    %c0_i32_1 = arith.constant 0 : i32
    return %c0_i32, %c0_i32_0 : i32, i32
  }
  func.func @transform_12(%arg0: i32) -> (i32, i32) {
    %c0_i32 = arith.constant 0 : i32
    %c0_i32_0 = arith.constant 0 : i32
    %c0_i32_1 = arith.constant 0 : i32
    return %c0_i32, %c0_i32_0 : i32, i32
  }
  func.func @transform_13(%arg0: i32) -> (i32, i32) {
    %c0_i32 = arith.constant 0 : i32
    %c0_i32_0 = arith.constant 0 : i32
    %c0_i32_1 = arith.constant 0 : i32
    return %c0_i32, %c0_i32_0 : i32, i32
  }
  func.func @transform_14(%arg0: i32) -> (i32, i32) {
    %c0_i32 = arith.constant 0 : i32
    %c0_i32_0 = arith.constant 0 : i32
    %c0_i32_1 = arith.constant 0 : i32
    return %c0_i32, %c0_i32_0 : i32, i32
  }
  func.func @transform_15(%arg0: i32) -> (i32, i32) {
    %c0_i32 = arith.constant 0 : i32
    %c0_i32_0 = arith.constant 0 : i32
    %c0_i32_1 = arith.constant 0 : i32
    return %c0_i32, %c0_i32_0 : i32, i32
  }
  func.func @transform_16(%arg0: i32) -> (i32, i32) {
    %c0_i32 = arith.constant 0 : i32
    %c0_i32_0 = arith.constant 0 : i32
    %c0_i32_1 = arith.constant 0 : i32
    return %c0_i32, %c0_i32_0 : i32, i32
  }
  func.func @transform_17(%arg0: i32) -> (i32, i32) {
    %c0_i32 = arith.constant 0 : i32
    %c0_i32_0 = arith.constant 0 : i32
    %c0_i32_1 = arith.constant 0 : i32
    return %c0_i32, %c0_i32_0 : i32, i32
  }
  func.func @transform_18(%arg0: i32) -> (i32, i32) {
    %c0_i32 = arith.constant 0 : i32
    %c0_i32_0 = arith.constant 0 : i32
    %c0_i32_1 = arith.constant 0 : i32
    return %c0_i32, %c0_i32_0 : i32, i32
  }
  func.func @transform_19(%arg0: i32) -> (i32, i32) {
    %c0_i32 = arith.constant 0 : i32
    %c0_i32_0 = arith.constant 0 : i32
    %c0_i32_1 = arith.constant 0 : i32
    return %c0_i32, %c0_i32_0 : i32, i32
  }
  func.func @transform_20(%arg0: i32) -> (i32, i32) {
    %c0_i32 = arith.constant 0 : i32
    %c0_i32_0 = arith.constant 0 : i32
    %c0_i32_1 = arith.constant 0 : i32
    return %c0_i32, %c0_i32_0 : i32, i32
  }
  func.func @transform_21(%arg0: i32) -> (i32, i32) {
    %c0_i32 = arith.constant 0 : i32
    %c0_i32_0 = arith.constant 0 : i32
    %c0_i32_1 = arith.constant 0 : i32
    return %c0_i32, %c0_i32_0 : i32, i32
  }
  func.func @transform_22(%arg0: i32) -> (i32, i32) {
    %c0_i32 = arith.constant 0 : i32
    %c0_i32_0 = arith.constant 0 : i32
    %c0_i32_1 = arith.constant 0 : i32
    return %c0_i32, %c0_i32_0 : i32, i32
  }
  func.func @transform_23(%arg0: i32) -> (i32, i32) {
    %c0_i32 = arith.constant 0 : i32
    %c0_i32_0 = arith.constant 0 : i32
    %c0_i32_1 = arith.constant 0 : i32
    return %c0_i32, %c0_i32_0 : i32, i32
  }
}

module attributes {stable_mosaic.version = 11 : i64} {
  func.func @_last_layer_kernel(%arg0: i32, %arg1: memref<8x32xf32, #tpu.memory_space<vmem>>, %arg2: memref<8x32xf32, #tpu.memory_space<vmem>>, %arg3: memref<8x10xf32, #tpu.memory_space<vmem>>, %arg4: memref<10x8xf32, #tpu.memory_space<vmem>>, %arg5: memref<8x12xf32, #tpu.memory_space<vmem>>, %arg6: memref<12x8xf32, #tpu.memory_space<vmem>>, %arg7: memref<32x32xf32, #tpu.memory_space<vmem>>, %arg8: memref<1x32xf32, #tpu.memory_space<vmem>>, %arg9: memref<32x32xf32, #tpu.memory_space<vmem>>, %arg10: memref<1x32xf32, #tpu.memory_space<vmem>>, %arg11: memref<32x64xf32, #tpu.memory_space<vmem>>, %arg12: memref<1x64xf32, #tpu.memory_space<vmem>>, %arg13: memref<32x64xf32, #tpu.memory_space<vmem>>, %arg14: memref<1x64xf32, #tpu.memory_space<vmem>>, %arg15: memref<64x64xf32, #tpu.memory_space<vmem>>, %arg16: memref<32x64xf32, #tpu.memory_space<vmem>>, %arg17: memref<1x64xf32, #tpu.memory_space<vmem>>, %arg18: memref<64x64xf32, #tpu.memory_space<vmem>>, %arg19: memref<32x64xf32, #tpu.memory_space<vmem>>, %arg20: memref<1x64xf32, #tpu.memory_space<vmem>>, %arg21: memref<13x8xf32, #tpu.memory_space<vmem>>, %arg22: memref<13x8xf32, #tpu.memory_space<vmem>>, %arg23: memref<13x64xf32, #tpu.memory_space<vmem>>) attributes {dimension_semantics = [#tpu.dimension_semantics<arbitrary>], iteration_bounds = array<i64: 1>, scalar_prefetch = 0 : i64, scratch_operands = 0 : i64, tpu.core_type = #tpu.core_type<tc>, window_params = [{pipeline_mode = #tpu.pipeline_mode<synchronous>, transform_indices = @transform_0, window_bounds = array<i64: 8, 32>}, {pipeline_mode = #tpu.pipeline_mode<synchronous>, transform_indices = @transform_1, window_bounds = array<i64: 8, 32>}, {pipeline_mode = #tpu.pipeline_mode<synchronous>, transform_indices = @transform_2, window_bounds = array<i64: 8, 10>}, {pipeline_mode = #tpu.pipeline_mode<synchronous>, transform_indices = @transform_3, window_bounds = array<i64: 10, 8>}, {pipeline_mode = #tpu.pipeline_mode<synchronous>, transform_indices = @transform_4, window_bounds = array<i64: 8, 12>}, {pipeline_mode = #tpu.pipeline_mode<synchronous>, transform_indices = @transform_5, window_bounds = array<i64: 12, 8>}, {pipeline_mode = #tpu.pipeline_mode<synchronous>, transform_indices = @transform_6, window_bounds = array<i64: 32, 32>}, {pipeline_mode = #tpu.pipeline_mode<synchronous>, transform_indices = @transform_7, window_bounds = array<i64: 1, 32>}, {pipeline_mode = #tpu.pipeline_mode<synchronous>, transform_indices = @transform_8, window_bounds = array<i64: 32, 32>}, {pipeline_mode = #tpu.pipeline_mode<synchronous>, transform_indices = @transform_9, window_bounds = array<i64: 1, 32>}, {pipeline_mode = #tpu.pipeline_mode<synchronous>, transform_indices = @transform_10, window_bounds = array<i64: 32, 64>}, {pipeline_mode = #tpu.pipeline_mode<synchronous>, transform_indices = @transform_11, window_bounds = array<i64: 1, 64>}, {pipeline_mode = #tpu.pipeline_mode<synchronous>, transform_indices = @transform_12, window_bounds = array<i64: 32, 64>}, {pipeline_mode = #tpu.pipeline_mode<synchronous>, transform_indices = @transform_13, window_bounds = array<i64: 1, 64>}, {pipeline_mode = #tpu.pipeline_mode<synchronous>, transform_indices = @transform_14, window_bounds = array<i64: 64, 64>}, {pipeline_mode = #tpu.pipeline_mode<synchronous>, transform_indices = @transform_15, window_bounds = array<i64: 32, 64>}, {pipeline_mode = #tpu.pipeline_mode<synchronous>, transform_indices = @transform_16, window_bounds = array<i64: 1, 64>}, {pipeline_mode = #tpu.pipeline_mode<synchronous>, transform_indices = @transform_17, window_bounds = array<i64: 64, 64>}, {pipeline_mode = #tpu.pipeline_mode<synchronous>, transform_indices = @transform_18, window_bounds = array<i64: 32, 64>}, {pipeline_mode = #tpu.pipeline_mode<synchronous>, transform_indices = @transform_19, window_bounds = array<i64: 1, 64>}, {pipeline_mode = #tpu.pipeline_mode<synchronous>, transform_indices = @transform_20, window_bounds = array<i64: 13, 8>}, {pipeline_mode = #tpu.pipeline_mode<synchronous>, transform_indices = @transform_21, window_bounds = array<i64: 13, 8>}, {pipeline_mode = #tpu.pipeline_mode<synchronous>, transform_indices = @transform_22, window_bounds = array<i64: 13, 64>}]} {
    %c0 = arith.constant 0 : index
    %c0_0 = arith.constant 0 : index
    %0 = vector.load %arg1[%c0, %c0_0] : memref<8x32xf32, #tpu.memory_space<vmem>>, vector<8x32xf32>
    %c0_1 = arith.constant 0 : index
    %c0_2 = arith.constant 0 : index
    %1 = vector.load %arg2[%c0_1, %c0_2] : memref<8x32xf32, #tpu.memory_space<vmem>>, vector<8x32xf32>
    %c0_3 = arith.constant 0 : index
    %c0_4 = arith.constant 0 : index
    %2 = vector.load %arg4[%c0_3, %c0_4] : memref<10x8xf32, #tpu.memory_space<vmem>>, vector<10x8xf32>
    %c0_5 = arith.constant 0 : index
    %c0_6 = arith.constant 0 : index
    %3 = vector.load %arg7[%c0_5, %c0_6] : memref<32x32xf32, #tpu.memory_space<vmem>>, vector<32x32xf32>
    %c0_7 = arith.constant 0 : index
    %c0_8 = arith.constant 0 : index
    %4 = vector.load %arg8[%c0_7, %c0_8] : memref<1x32xf32, #tpu.memory_space<vmem>>, vector<1x32xf32>
    %5 = arith.truncf %0 : vector<8x32xf32> to vector<8x32xbf16>
    %6 = arith.truncf %3 : vector<32x32xf32> to vector<32x32xbf16>
    %cst = arith.constant dense<0.000000e+00> : vector<8x32xf32>
    %7 = tpu.matmul %5, %6, %cst {dimension_numbers = #tpu.dot_dimension_numbers<[1], [0], [0], [1], [0, 0, 1, 1], [], []>} : vector<8x32xbf16>, vector<32x32xbf16>, vector<8x32xf32> -> vector<8x32xf32>
    %8 = arith.truncf %2 : vector<10x8xf32> to vector<10x8xbf16>
    %9 = arith.truncf %7 : vector<8x32xf32> to vector<8x32xbf16>
    %cst_9 = arith.constant dense<0.000000e+00> : vector<10x32xf32>
    %10 = tpu.matmul %8, %9, %cst_9 {dimension_numbers = #tpu.dot_dimension_numbers<[1], [0], [0], [1], [0, 0, 1, 1], [], []>} : vector<10x8xbf16>, vector<8x32xbf16>, vector<10x32xf32> -> vector<10x32xf32>
    %11 = vector.broadcast %4 : vector<1x32xf32> to vector<10x32xf32>
    %12 = arith.addf %10, %11 : vector<10x32xf32>
    %cst_10 = arith.constant 0.000000e+00 : f32
    %13 = vector.broadcast %cst_10 : f32 to vector<10x32xf32>
    %14 = arith.cmpf oge, %12, %13 : vector<10x32xf32>
    %cst_11 = arith.constant 2.000000e-01 : f32
    %15 = vector.broadcast %cst_11 : f32 to vector<10x32xf32>
    %16 = arith.mulf %15, %12 : vector<10x32xf32>
    %17 = arith.select %14, %12, %16 : vector<10x32xi1>, vector<10x32xf32>
    %c0_12 = arith.constant 0 : index
    %c0_13 = arith.constant 0 : index
    %18 = vector.load %arg6[%c0_12, %c0_13] : memref<12x8xf32, #tpu.memory_space<vmem>>, vector<12x8xf32>
    %c0_14 = arith.constant 0 : index
    %c0_15 = arith.constant 0 : index
    %19 = vector.load %arg9[%c0_14, %c0_15] : memref<32x32xf32, #tpu.memory_space<vmem>>, vector<32x32xf32>
    %c0_16 = arith.constant 0 : index
    %c0_17 = arith.constant 0 : index
    %20 = vector.load %arg10[%c0_16, %c0_17] : memref<1x32xf32, #tpu.memory_space<vmem>>, vector<1x32xf32>
    %21 = arith.truncf %1 : vector<8x32xf32> to vector<8x32xbf16>
    %22 = arith.truncf %19 : vector<32x32xf32> to vector<32x32xbf16>
    %cst_18 = arith.constant dense<0.000000e+00> : vector<8x32xf32>
    %23 = tpu.matmul %21, %22, %cst_18 {dimension_numbers = #tpu.dot_dimension_numbers<[1], [0], [0], [1], [0, 0, 1, 1], [], []>} : vector<8x32xbf16>, vector<32x32xbf16>, vector<8x32xf32> -> vector<8x32xf32>
    %24 = arith.truncf %18 : vector<12x8xf32> to vector<12x8xbf16>
    %25 = arith.truncf %23 : vector<8x32xf32> to vector<8x32xbf16>
    %cst_19 = arith.constant dense<0.000000e+00> : vector<12x32xf32>
    %26 = tpu.matmul %24, %25, %cst_19 {dimension_numbers = #tpu.dot_dimension_numbers<[1], [0], [0], [1], [0, 0, 1, 1], [], []>} : vector<12x8xbf16>, vector<8x32xbf16>, vector<12x32xf32> -> vector<12x32xf32>
    %27 = vector.broadcast %20 : vector<1x32xf32> to vector<12x32xf32>
    %28 = arith.addf %26, %27 : vector<12x32xf32>
    %cst_20 = arith.constant 0.000000e+00 : f32
    %29 = vector.broadcast %cst_20 : f32 to vector<12x32xf32>
    %30 = arith.cmpf oge, %28, %29 : vector<12x32xf32>
    %cst_21 = arith.constant 2.000000e-01 : f32
    %31 = vector.broadcast %cst_21 : f32 to vector<12x32xf32>
    %32 = arith.mulf %31, %28 : vector<12x32xf32>
    %33 = arith.select %30, %28, %32 : vector<12x32xi1>, vector<12x32xf32>
    %c0_22 = arith.constant 0 : index
    %c0_23 = arith.constant 0 : index
    %34 = vector.load %arg3[%c0_22, %c0_23] : memref<8x10xf32, #tpu.memory_space<vmem>>, vector<8x10xf32>
    %c0_24 = arith.constant 0 : index
    %c0_25 = arith.constant 0 : index
    %35 = vector.load %arg11[%c0_24, %c0_25] : memref<32x64xf32, #tpu.memory_space<vmem>>, vector<32x64xf32>
    %c0_26 = arith.constant 0 : index
    %c0_27 = arith.constant 0 : index
    %36 = vector.load %arg12[%c0_26, %c0_27] : memref<1x64xf32, #tpu.memory_space<vmem>>, vector<1x64xf32>
    %37 = arith.truncf %17 : vector<10x32xf32> to vector<10x32xbf16>
    %38 = arith.truncf %35 : vector<32x64xf32> to vector<32x64xbf16>
    %cst_28 = arith.constant dense<0.000000e+00> : vector<10x64xf32>
    %39 = tpu.matmul %37, %38, %cst_28 {dimension_numbers = #tpu.dot_dimension_numbers<[1], [0], [0], [1], [0, 0, 1, 1], [], []>} : vector<10x32xbf16>, vector<32x64xbf16>, vector<10x64xf32> -> vector<10x64xf32>
    %40 = arith.truncf %34 : vector<8x10xf32> to vector<8x10xbf16>
    %41 = arith.truncf %39 : vector<10x64xf32> to vector<10x64xbf16>
    %cst_29 = arith.constant dense<0.000000e+00> : vector<8x64xf32>
    %42 = tpu.matmul %40, %41, %cst_29 {dimension_numbers = #tpu.dot_dimension_numbers<[1], [0], [0], [1], [0, 0, 1, 1], [], []>} : vector<8x10xbf16>, vector<10x64xbf16>, vector<8x64xf32> -> vector<8x64xf32>
    %43 = vector.broadcast %36 : vector<1x64xf32> to vector<8x64xf32>
    %44 = arith.addf %42, %43 : vector<8x64xf32>
    %cst_30 = arith.constant 0.000000e+00 : f32
    %45 = vector.broadcast %cst_30 : f32 to vector<8x64xf32>
    %46 = arith.cmpf oge, %44, %45 : vector<8x64xf32>
    %cst_31 = arith.constant 2.000000e-01 : f32
    %47 = vector.broadcast %cst_31 : f32 to vector<8x64xf32>
    %48 = arith.mulf %47, %44 : vector<8x64xf32>
    %49 = arith.select %46, %44, %48 : vector<8x64xi1>, vector<8x64xf32>
    %c0_32 = arith.constant 0 : index
    %c0_33 = arith.constant 0 : index
    %50 = vector.load %arg5[%c0_32, %c0_33] : memref<8x12xf32, #tpu.memory_space<vmem>>, vector<8x12xf32>
    %c0_34 = arith.constant 0 : index
    %c0_35 = arith.constant 0 : index
    %51 = vector.load %arg13[%c0_34, %c0_35] : memref<32x64xf32, #tpu.memory_space<vmem>>, vector<32x64xf32>
    %c0_36 = arith.constant 0 : index
    %c0_37 = arith.constant 0 : index
    %52 = vector.load %arg14[%c0_36, %c0_37] : memref<1x64xf32, #tpu.memory_space<vmem>>, vector<1x64xf32>
    %53 = arith.truncf %33 : vector<12x32xf32> to vector<12x32xbf16>
    %54 = arith.truncf %51 : vector<32x64xf32> to vector<32x64xbf16>
    %cst_38 = arith.constant dense<0.000000e+00> : vector<12x64xf32>
    %55 = tpu.matmul %53, %54, %cst_38 {dimension_numbers = #tpu.dot_dimension_numbers<[1], [0], [0], [1], [0, 0, 1, 1], [], []>} : vector<12x32xbf16>, vector<32x64xbf16>, vector<12x64xf32> -> vector<12x64xf32>
    %56 = arith.truncf %50 : vector<8x12xf32> to vector<8x12xbf16>
    %57 = arith.truncf %55 : vector<12x64xf32> to vector<12x64xbf16>
    %cst_39 = arith.constant dense<0.000000e+00> : vector<8x64xf32>
    %58 = tpu.matmul %56, %57, %cst_39 {dimension_numbers = #tpu.dot_dimension_numbers<[1], [0], [0], [1], [0, 0, 1, 1], [], []>} : vector<8x12xbf16>, vector<12x64xbf16>, vector<8x64xf32> -> vector<8x64xf32>
    %59 = vector.broadcast %52 : vector<1x64xf32> to vector<8x64xf32>
    %60 = arith.addf %58, %59 : vector<8x64xf32>
    %cst_40 = arith.constant 0.000000e+00 : f32
    %61 = vector.broadcast %cst_40 : f32 to vector<8x64xf32>
    %62 = arith.cmpf oge, %60, %61 : vector<8x64xf32>
    %cst_41 = arith.constant 2.000000e-01 : f32
    %63 = vector.broadcast %cst_41 : f32 to vector<8x64xf32>
    %64 = arith.mulf %63, %60 : vector<8x64xf32>
    %65 = arith.select %62, %60, %64 : vector<8x64xi1>, vector<8x64xf32>
    %c0_42 = arith.constant 0 : index
    %c0_43 = arith.constant 0 : index
    %66 = vector.load %arg15[%c0_42, %c0_43] : memref<64x64xf32, #tpu.memory_space<vmem>>, vector<64x64xf32>
    %67 = arith.truncf %49 : vector<8x64xf32> to vector<8x64xbf16>
    %68 = arith.truncf %66 : vector<64x64xf32> to vector<64x64xbf16>
    %cst_44 = arith.constant dense<0.000000e+00> : vector<8x64xf32>
    %69 = tpu.matmul %67, %68, %cst_44 {dimension_numbers = #tpu.dot_dimension_numbers<[1], [0], [0], [1], [0, 0, 1, 1], [], []>} : vector<8x64xbf16>, vector<64x64xbf16>, vector<8x64xf32> -> vector<8x64xf32>
    %c0_45 = arith.constant 0 : index
    %c0_46 = arith.constant 0 : index
    %70 = vector.load %arg16[%c0_45, %c0_46] : memref<32x64xf32, #tpu.memory_space<vmem>>, vector<32x64xf32>
    %71 = arith.truncf %0 : vector<8x32xf32> to vector<8x32xbf16>
    %72 = arith.truncf %70 : vector<32x64xf32> to vector<32x64xbf16>
    %cst_47 = arith.constant dense<0.000000e+00> : vector<8x64xf32>
    %73 = tpu.matmul %71, %72, %cst_47 {dimension_numbers = #tpu.dot_dimension_numbers<[1], [0], [0], [1], [0, 0, 1, 1], [], []>} : vector<8x32xbf16>, vector<32x64xbf16>, vector<8x64xf32> -> vector<8x64xf32>
    %74 = arith.addf %69, %73 : vector<8x64xf32>
    %c0_48 = arith.constant 0 : index
    %c0_49 = arith.constant 0 : index
    %75 = vector.load %arg17[%c0_48, %c0_49] : memref<1x64xf32, #tpu.memory_space<vmem>>, vector<1x64xf32>
    %76 = vector.broadcast %75 : vector<1x64xf32> to vector<8x64xf32>
    %77 = arith.addf %74, %76 : vector<8x64xf32>
    %c0_50 = arith.constant 0 : index
    %c0_51 = arith.constant 0 : index
    %78 = vector.load %arg18[%c0_50, %c0_51] : memref<64x64xf32, #tpu.memory_space<vmem>>, vector<64x64xf32>
    %79 = arith.truncf %65 : vector<8x64xf32> to vector<8x64xbf16>
    %80 = arith.truncf %78 : vector<64x64xf32> to vector<64x64xbf16>
    %cst_52 = arith.constant dense<0.000000e+00> : vector<8x64xf32>
    %81 = tpu.matmul %79, %80, %cst_52 {dimension_numbers = #tpu.dot_dimension_numbers<[1], [0], [0], [1], [0, 0, 1, 1], [], []>} : vector<8x64xbf16>, vector<64x64xbf16>, vector<8x64xf32> -> vector<8x64xf32>
    %c0_53 = arith.constant 0 : index
    %c0_54 = arith.constant 0 : index
    %82 = vector.load %arg19[%c0_53, %c0_54] : memref<32x64xf32, #tpu.memory_space<vmem>>, vector<32x64xf32>
    %83 = arith.truncf %1 : vector<8x32xf32> to vector<8x32xbf16>
    %84 = arith.truncf %82 : vector<32x64xf32> to vector<32x64xbf16>
    %cst_55 = arith.constant dense<0.000000e+00> : vector<8x64xf32>
    %85 = tpu.matmul %83, %84, %cst_55 {dimension_numbers = #tpu.dot_dimension_numbers<[1], [0], [0], [1], [0, 0, 1, 1], [], []>} : vector<8x32xbf16>, vector<32x64xbf16>, vector<8x64xf32> -> vector<8x64xf32>
    %86 = arith.addf %81, %85 : vector<8x64xf32>
    %c0_56 = arith.constant 0 : index
    %c0_57 = arith.constant 0 : index
    %87 = vector.load %arg20[%c0_56, %c0_57] : memref<1x64xf32, #tpu.memory_space<vmem>>, vector<1x64xf32>
    %88 = vector.broadcast %87 : vector<1x64xf32> to vector<8x64xf32>
    %89 = arith.addf %86, %88 : vector<8x64xf32>
    %c0_58 = arith.constant 0 : index
    %c0_59 = arith.constant 0 : index
    %90 = vector.load %arg21[%c0_58, %c0_59] : memref<13x8xf32, #tpu.memory_space<vmem>>, vector<13x8xf32>
    %cst_60 = arith.constant dense<0.000000e+00> : vector<13x64xf32>
    %91 = tpu.matmul %90, %77, %cst_60 {dimension_numbers = #tpu.dot_dimension_numbers<[1], [0], [0], [1], [0, 0, 1, 1], [], []>} : vector<13x8xf32>, vector<8x64xf32>, vector<13x64xf32> -> vector<13x64xf32>
    %c0_61 = arith.constant 0 : index
    %c0_62 = arith.constant 0 : index
    %92 = vector.load %arg22[%c0_61, %c0_62] : memref<13x8xf32, #tpu.memory_space<vmem>>, vector<13x8xf32>
    %cst_63 = arith.constant dense<0.000000e+00> : vector<13x64xf32>
    %93 = tpu.matmul %92, %89, %cst_63 {dimension_numbers = #tpu.dot_dimension_numbers<[1], [0], [0], [1], [0, 0, 1, 1], [], []>} : vector<13x8xf32>, vector<8x64xf32>, vector<13x64xf32> -> vector<13x64xf32>
    %94 = arith.addf %91, %93 : vector<13x64xf32>
    %c0_64 = arith.constant 0 : index
    %c0_65 = arith.constant 0 : index
    %95 = vector.load %arg23[%c0_64, %c0_65] : memref<13x64xf32, #tpu.memory_space<vmem>>, vector<13x64xf32>
    tpu.vector_store %arg23[%c0_64, %c0_65], %94 {strides = array<i32>} : memref<13x64xf32, #tpu.memory_space<vmem>>, vector<13x64xf32>,
    return
  }
  func.func @transform_0(%arg0: i32) -> (i32, i32) {
    %c0_i32 = arith.constant 0 : i32
    %c0_i32_0 = arith.constant 0 : i32
    %c0_i32_1 = arith.constant 0 : i32
    return %c0_i32, %c0_i32_0 : i32, i32
  }
  func.func @transform_1(%arg0: i32) -> (i32, i32) {
    %c0_i32 = arith.constant 0 : i32
    %c0_i32_0 = arith.constant 0 : i32
    %c0_i32_1 = arith.constant 0 : i32
    return %c0_i32, %c0_i32_0 : i32, i32
  }
  func.func @transform_2(%arg0: i32) -> (i32, i32) {
    %c0_i32 = arith.constant 0 : i32
    %c0_i32_0 = arith.constant 0 : i32
    %c0_i32_1 = arith.constant 0 : i32
    return %c0_i32, %c0_i32_0 : i32, i32
  }
  func.func @transform_3(%arg0: i32) -> (i32, i32) {
    %c0_i32 = arith.constant 0 : i32
    %c0_i32_0 = arith.constant 0 : i32
    %c0_i32_1 = arith.constant 0 : i32
    return %c0_i32, %c0_i32_0 : i32, i32
  }
  func.func @transform_4(%arg0: i32) -> (i32, i32) {
    %c0_i32 = arith.constant 0 : i32
    %c0_i32_0 = arith.constant 0 : i32
    %c0_i32_1 = arith.constant 0 : i32
    return %c0_i32, %c0_i32_0 : i32, i32
  }
  func.func @transform_5(%arg0: i32) -> (i32, i32) {
    %c0_i32 = arith.constant 0 : i32
    %c0_i32_0 = arith.constant 0 : i32
    %c0_i32_1 = arith.constant 0 : i32
    return %c0_i32, %c0_i32_0 : i32, i32
  }
  func.func @transform_6(%arg0: i32) -> (i32, i32) {
    %c0_i32 = arith.constant 0 : i32
    %c0_i32_0 = arith.constant 0 : i32
    %c0_i32_1 = arith.constant 0 : i32
    return %c0_i32, %c0_i32_0 : i32, i32
  }
  func.func @transform_7(%arg0: i32) -> (i32, i32) {
    %c0_i32 = arith.constant 0 : i32
    %c0_i32_0 = arith.constant 0 : i32
    %c0_i32_1 = arith.constant 0 : i32
    return %c0_i32, %c0_i32_0 : i32, i32
  }
  func.func @transform_8(%arg0: i32) -> (i32, i32) {
    %c0_i32 = arith.constant 0 : i32
    %c0_i32_0 = arith.constant 0 : i32
    %c0_i32_1 = arith.constant 0 : i32
    return %c0_i32, %c0_i32_0 : i32, i32
  }
  func.func @transform_9(%arg0: i32) -> (i32, i32) {
    %c0_i32 = arith.constant 0 : i32
    %c0_i32_0 = arith.constant 0 : i32
    %c0_i32_1 = arith.constant 0 : i32
    return %c0_i32, %c0_i32_0 : i32, i32
  }
  func.func @transform_10(%arg0: i32) -> (i32, i32) {
    %c0_i32 = arith.constant 0 : i32
    %c0_i32_0 = arith.constant 0 : i32
    %c0_i32_1 = arith.constant 0 : i32
    return %c0_i32, %c0_i32_0 : i32, i32
  }
  func.func @transform_11(%arg0: i32) -> (i32, i32) {
    %c0_i32 = arith.constant 0 : i32
    %c0_i32_0 = arith.constant 0 : i32
    %c0_i32_1 = arith.constant 0 : i32
    return %c0_i32, %c0_i32_0 : i32, i32
  }
  func.func @transform_12(%arg0: i32) -> (i32, i32) {
    %c0_i32 = arith.constant 0 : i32
    %c0_i32_0 = arith.constant 0 : i32
    %c0_i32_1 = arith.constant 0 : i32
    return %c0_i32, %c0_i32_0 : i32, i32
  }
  func.func @transform_13(%arg0: i32) -> (i32, i32) {
    %c0_i32 = arith.constant 0 : i32
    %c0_i32_0 = arith.constant 0 : i32
    %c0_i32_1 = arith.constant 0 : i32
    return %c0_i32, %c0_i32_0 : i32, i32
  }
  func.func @transform_14(%arg0: i32) -> (i32, i32) {
    %c0_i32 = arith.constant 0 : i32
    %c0_i32_0 = arith.constant 0 : i32
    %c0_i32_1 = arith.constant 0 : i32
    return %c0_i32, %c0_i32_0 : i32, i32
  }
  func.func @transform_15(%arg0: i32) -> (i32, i32) {
    %c0_i32 = arith.constant 0 : i32
    %c0_i32_0 = arith.constant 0 : i32
    %c0_i32_1 = arith.constant 0 : i32
    return %c0_i32, %c0_i32_0 : i32, i32
  }
  func.func @transform_16(%arg0: i32) -> (i32, i32) {
    %c0_i32 = arith.constant 0 : i32
    %c0_i32_0 = arith.constant 0 : i32
    %c0_i32_1 = arith.constant 0 : i32
    return %c0_i32, %c0_i32_0 : i32, i32
  }
  func.func @transform_17(%arg0: i32) -> (i32, i32) {
    %c0_i32 = arith.constant 0 : i32
    %c0_i32_0 = arith.constant 0 : i32
    %c0_i32_1 = arith.constant 0 : i32
    return %c0_i32, %c0_i32_0 : i32, i32
  }
  func.func @transform_18(%arg0: i32) -> (i32, i32) {
    %c0_i32 = arith.constant 0 : i32
    %c0_i32_0 = arith.constant 0 : i32
    %c0_i32_1 = arith.constant 0 : i32
    return %c0_i32, %c0_i32_0 : i32, i32
  }
  func.func @transform_19(%arg0: i32) -> (i32, i32) {
    %c0_i32 = arith.constant 0 : i32
    %c0_i32_0 = arith.constant 0 : i32
    %c0_i32_1 = arith.constant 0 : i32
    return %c0_i32, %c0_i32_0 : i32, i32
  }
  func.func @transform_20(%arg0: i32) -> (i32, i32) {
    %c0_i32 = arith.constant 0 : i32
    %c0_i32_0 = arith.constant 0 : i32
    %c0_i32_1 = arith.constant 0 : i32
    return %c0_i32, %c0_i32_0 : i32, i32
  }
  func.func @transform_21(%arg0: i32) -> (i32, i32) {
    %c0_i32 = arith.constant 0 : i32
    %c0_i32_0 = arith.constant 0 : i32
    %c0_i32_1 = arith.constant 0 : i32
    return %c0_i32, %c0_i32_0 : i32, i32
  }
  func.func @transform_22(%arg0: i32) -> (i32, i32) {
    %c0_i32 = arith.constant 0 : i32
    %c0_i32_0 = arith.constant 0 : i32
    %c0_i32_1 = arith.constant 0 : i32
    return %c0_i32, %c0_i32_0 : i32, i32
  }
}

</mosaic_0001>

<llo_original>
// kernel: cross_vbge_forward.4
$region0: #{cross_vbge_forward.4}
  #allocation0 [shape = 'u32[]', space=smem, size = 0x4, offset = 0x4, fixed_abs, tag = 'smem constant byte address 0x4 - core index']
  #allocation1 [shape = 'u32[144,128]{1,0:T(1,128)}', space=vmem, size = 0x12000, scoped, tag = 'internal scratch']
  %s0 = inlined_call_operand.vmem [shape: f32[8,32], index: 0, kind: input, shape index: {}]
  %s1 = inlined_call_operand.vmem [shape: f32[8,32], index: 1, kind: input, shape index: {}]
  %s2 = inlined_call_operand.vmem [shape: f32[8,10], index: 2, kind: input, shape index: {}]
  %s3 = inlined_call_operand.vmem [shape: f32[10,8], index: 3, kind: input, shape index: {}]
  %s4 = inlined_call_operand.vmem [shape: f32[8,12], index: 4, kind: input, shape index: {}]
  %s5 = inlined_call_operand.vmem [shape: f32[12,8], index: 5, kind: input, shape index: {}]
  %s6 = inlined_call_operand.vmem [shape: f32[32,32], index: 6, kind: input, shape index: {}]
  %s7 = inlined_call_operand.vmem [shape: f32[1,32], index: 7, kind: input, shape index: {}]
  %s8 = inlined_call_operand.vmem [shape: f32[32,32], index: 8, kind: input, shape index: {}]
  %s9 = inlined_call_operand.vmem [shape: f32[1,32], index: 9, kind: input, shape index: {}]
  %s10 = inlined_call_operand.vmem [shape: f32[32,32], index: 10, kind: input, shape index: {}]
  %s11 = inlined_call_operand.vmem [shape: f32[1,32], index: 11, kind: input, shape index: {}]
  %s12 = inlined_call_operand.vmem [shape: f32[32,32], index: 12, kind: input, shape index: {}]
  %s13 = inlined_call_operand.vmem [shape: f32[1,32], index: 13, kind: input, shape index: {}]
  %s14 = inlined_call_operand.vmem [shape: f32[32,32], index: 14, kind: input, shape index: {}]
  %s15 = inlined_call_operand.vmem [shape: f32[32,32], index: 15, kind: input, shape index: {}]
  %s16 = inlined_call_operand.vmem [shape: f32[1,32], index: 16, kind: input, shape index: {}]
  %s17 = inlined_call_operand.vmem [shape: f32[32,32], index: 17, kind: input, shape index: {}]
  %s18 = inlined_call_operand.vmem [shape: f32[32,32], index: 18, kind: input, shape index: {}]
  %s19 = inlined_call_operand.vmem [shape: f32[1,32], index: 19, kind: input, shape index: {}]
  %s20 = inlined_call_operand.vmem [shape: f32[8,8], index: 20, kind: input, shape index: {}]
  %s21 = inlined_call_operand.vmem [shape: f32[8,8], index: 21, kind: input, shape index: {}]
  %s22 = inlined_call_operand.vmem [shape: f32[8,32], index: 22, kind: output, shape index: {0}]
  %s23 = inlined_call_operand.vmem [shape: f32[8,32], index: 23, kind: output, shape index: {1}]
  %24 = xla_tuple %s22, %s23
  %s25 = sld [smem:[#allocation0]]
  $region106: #{cross_vbge_forward.4} parent=0
    _
  %s27 = ssub.s32 1, %s25
  %s28 = scalar_select 0, %s27, %s25
  // Predicated region
  $region2: #{cross_vbge_forward.4} parent=0 // pred_check
    _
  $region3: #{cross_vbge_forward.4} parent=0 // pred_check_branch
    %30 = sbr.rel (0) target = $region5
  $region4: #{cross_vbge_forward.4} parent=0 // pred_region
    _
  $region5: #{cross_vbge_forward.4} parent=0 // pred_fallthru
    _
  // Predicated region
  $region6: #{cross_vbge_forward.4} parent=0 // pred_check
    _
  $region7: #{cross_vbge_forward.4} parent=0 // pred_check_branch
    %32 = sbr.rel (0) target = $region9
  $region8: #{cross_vbge_forward.4} parent=0 // pred_region
    _
  $region9: #{cross_vbge_forward.4} parent=0 // pred_fallthru
    _
  // Predicated region
  $region10: #{cross_vbge_forward.4} parent=0 // pred_check
    _
  $region11: #{cross_vbge_forward.4} parent=0 // pred_check_branch
    %34 = sbr.rel (0) target = $region13
  $region12: #{cross_vbge_forward.4} parent=0 // pred_region
    _
  $region13: #{cross_vbge_forward.4} parent=0 // pred_fallthru
    _
  // Predicated region
  $region14: #{cross_vbge_forward.4} parent=0 // pred_check
    _
  $region15: #{cross_vbge_forward.4} parent=0 // pred_check_branch
    %36 = sbr.rel (0) target = $region17
  $region16: #{cross_vbge_forward.4} parent=0 // pred_region
    _
  $region17: #{cross_vbge_forward.4} parent=0 // pred_fallthru
    _
  // Predicated region
  $region18: #{cross_vbge_forward.4} parent=0 // pred_check
    _
  $region19: #{cross_vbge_forward.4} parent=0 // pred_check_branch
    %38 = sbr.rel (0) target = $region21
  $region20: #{cross_vbge_forward.4} parent=0 // pred_region
    _
  $region21: #{cross_vbge_forward.4} parent=0 // pred_fallthru
    _
  // Predicated region
  $region22: #{cross_vbge_forward.4} parent=0 // pred_check
    _
  $region23: #{cross_vbge_forward.4} parent=0 // pred_check_branch
    %40 = sbr.rel (0) target = $region25
  $region24: #{cross_vbge_forward.4} parent=0 // pred_region
    _
  $region25: #{cross_vbge_forward.4} parent=0 // pred_fallthru
    _
  // Predicated region
  $region26: #{cross_vbge_forward.4} parent=0 // pred_check
    _
  $region27: #{cross_vbge_forward.4} parent=0 // pred_check_branch
    %42 = sbr.rel (0) target = $region29
  $region28: #{cross_vbge_forward.4} parent=0 // pred_region
    _
  $region29: #{cross_vbge_forward.4} parent=0 // pred_fallthru
    _
  // Predicated region
  $region30: #{cross_vbge_forward.4} parent=0 // pred_check
    _
  $region31: #{cross_vbge_forward.4} parent=0 // pred_check_branch
    %44 = sbr.rel (0) target = $region33
  $region32: #{cross_vbge_forward.4} parent=0 // pred_region
    _
  $region33: #{cross_vbge_forward.4} parent=0 // pred_fallthru
    _
  // Predicated region
  $region34: #{cross_vbge_forward.4} parent=0 // pred_check
    _
  $region35: #{cross_vbge_forward.4} parent=0 // pred_check_branch
    %46 = sbr.rel (0) target = $region37
  $region36: #{cross_vbge_forward.4} parent=0 // pred_region
    _
  $region37: #{cross_vbge_forward.4} parent=0 // pred_fallthru
    _
  // Predicated region
  $region38: #{cross_vbge_forward.4} parent=0 // pred_check
    _
  $region39: #{cross_vbge_forward.4} parent=0 // pred_check_branch
    %48 = sbr.rel (0) target = $region41
  $region40: #{cross_vbge_forward.4} parent=0 // pred_region
    _
  $region41: #{cross_vbge_forward.4} parent=0 // pred_fallthru
    _
  // Predicated region
  $region42: #{cross_vbge_forward.4} parent=0 // pred_check
    _
  $region43: #{cross_vbge_forward.4} parent=0 // pred_check_branch
    %50 = sbr.rel (0) target = $region45
  $region44: #{cross_vbge_forward.4} parent=0 // pred_region
    _
  $region45: #{cross_vbge_forward.4} parent=0 // pred_fallthru
    _
  // Predicated region
  $region46: #{cross_vbge_forward.4} parent=0 // pred_check
    _
  $region47: #{cross_vbge_forward.4} parent=0 // pred_check_branch
    %52 = sbr.rel (0) target = $region49
  $region48: #{cross_vbge_forward.4} parent=0 // pred_region
    _
  $region49: #{cross_vbge_forward.4} parent=0 // pred_fallthru
    _
  // Predicated region
  $region50: #{cross_vbge_forward.4} parent=0 // pred_check
    _
  $region51: #{cross_vbge_forward.4} parent=0 // pred_check_branch
    %54 = sbr.rel (0) target = $region53
  $region52: #{cross_vbge_forward.4} parent=0 // pred_region
    _
  $region53: #{cross_vbge_forward.4} parent=0 // pred_fallthru
    _
  // Predicated region
  $region54: #{cross_vbge_forward.4} parent=0 // pred_check
    _
  $region55: #{cross_vbge_forward.4} parent=0 // pred_check_branch
    %56 = sbr.rel (0) target = $region57
  $region56: #{cross_vbge_forward.4} parent=0 // pred_region
    _
  $region57: #{cross_vbge_forward.4} parent=0 // pred_fallthru
    _
  // Predicated region
  $region58: #{cross_vbge_forward.4} parent=0 // pred_check
    _
  $region59: #{cross_vbge_forward.4} parent=0 // pred_check_branch
    %58 = sbr.rel (0) target = $region61
  $region60: #{cross_vbge_forward.4} parent=0 // pred_region
    _
  $region61: #{cross_vbge_forward.4} parent=0 // pred_fallthru
    _
  // Predicated region
  $region62: #{cross_vbge_forward.4} parent=0 // pred_check
    _
  $region63: #{cross_vbge_forward.4} parent=0 // pred_check_branch
    %60 = sbr.rel (0) target = $region65
  $region64: #{cross_vbge_forward.4} parent=0 // pred_region
    _
  $region65: #{cross_vbge_forward.4} parent=0 // pred_fallthru
    _
  // Predicated region
  $region66: #{cross_vbge_forward.4} parent=0 // pred_check
    _
  $region67: #{cross_vbge_forward.4} parent=0 // pred_check_branch
    %62 = sbr.rel (0) target = $region69
  $region68: #{cross_vbge_forward.4} parent=0 // pred_region
    _
  $region69: #{cross_vbge_forward.4} parent=0 // pred_fallthru
    _
  // Predicated region
  $region70: #{cross_vbge_forward.4} parent=0 // pred_check
    _
  $region71: #{cross_vbge_forward.4} parent=0 // pred_check_branch
    %64 = sbr.rel (0) target = $region73
  $region72: #{cross_vbge_forward.4} parent=0 // pred_region
    _
  $region73: #{cross_vbge_forward.4} parent=0 // pred_fallthru
    _
  // Predicated region
  $region74: #{cross_vbge_forward.4} parent=0 // pred_check
    _
  $region75: #{cross_vbge_forward.4} parent=0 // pred_check_branch
    %66 = sbr.rel (0) target = $region77
  $region76: #{cross_vbge_forward.4} parent=0 // pred_region
    _
  $region77: #{cross_vbge_forward.4} parent=0 // pred_fallthru
    _
  // Predicated region
  $region78: #{cross_vbge_forward.4} parent=0 // pred_check
    _
  $region79: #{cross_vbge_forward.4} parent=0 // pred_check_branch
    %68 = sbr.rel (0) target = $region81
  $region80: #{cross_vbge_forward.4} parent=0 // pred_region
    _
  $region81: #{cross_vbge_forward.4} parent=0 // pred_fallthru
    _
  // Predicated region
  $region82: #{cross_vbge_forward.4} parent=0 // pred_check
    _
  $region83: #{cross_vbge_forward.4} parent=0 // pred_check_branch
    %70 = sbr.rel (0) target = $region85
  $region84: #{cross_vbge_forward.4} parent=0 // pred_region
    _
  $region85: #{cross_vbge_forward.4} parent=0 // pred_fallthru
    _
  // Predicated region
  $region86: #{cross_vbge_forward.4} parent=0 // pred_check
    _
  $region87: #{cross_vbge_forward.4} parent=0 // pred_check_branch
    %72 = sbr.rel (0) target = $region89
  $region88: #{cross_vbge_forward.4} parent=0 // pred_region
    _
  $region89: #{cross_vbge_forward.4} parent=0 // pred_fallthru
    _
  %v74 = vld [vmem:[%s0] sm:$0xff]
  %v75 = vld [vmem:[%s1] sm:$0xff]
  %v76 = vld [vmem:[%s3] sm:$0xff]
  %v77 = vld [vmem:[%s3 + $0x8] sm:$0x3]
  %v78 = vld [vmem:[%s6] sm:$0xff]
  %v79 = vld [vmem:[%s6 + $0x8] sm:$0xff]
  %v80 = vld [vmem:[%s6 + $0x10] sm:$0xff]
  %v81 = vld [vmem:[%s6 + $0x18] sm:$0xff]
  %v82 = vld [vmem:[%s7] sm:$0x1]
  %v83 = vpack.c.bf16 %v74, %v74
  %v84 = vpack.c.bf16 %v79, %v78
  %v85 = vpack.c.bf16 %v81, %v80
  %vm86 = vcmask 261120
  %v88 = vsel %vm86, %v83, 0
  %90 = vmatprep.subr.bf16.mxu0 0
  %91 = vmatpush1.bf16.msra.mxu0 %v84
  %92 = vmatprep.subr.bf16.mxu0 0
  %93 = vmatpush1.bf16.msra.mxu0 %v85
  %94 = vmatprep.subr.bf16.mxu0 0
  %95 = vmatpush1.bf16.msra.mxu0 0
  %96 = vmatprep.subr.bf16.mxu0 0
  %97 = vmatpush1.bf16.msra.mxu0 0
  %98 = vmatprep.subr.bf16.mxu0 0
  %99 = vmatpush1.bf16.msra.mxu0 0
  %100 = vmatprep.subr.bf16.mxu0 0
  %101 = vmatpush1.bf16.msra.mxu0 0
  %102 = vmatprep.subr.bf16.mxu0 0
  %103 = vmatpush1.bf16.msra.mxu0 0
  %104 = vmatprep.subr.bf16.mxu0 0
  %105 = vmatpush1.bf16.msra.mxu0 0
  %106 = vmatprep.subr.bf16.mxu0 0
  %107 = vmatpush1.bf16.msra.mxu0 0
  %108 = vmatprep.subr.bf16.mxu0 0
  %109 = vmatpush1.bf16.msra.mxu0 0
  %110 = vmatprep.subr.bf16.mxu0 0
  %111 = vmatpush1.bf16.msra.mxu0 0
  %112 = vmatprep.subr.bf16.mxu0 0
  %113 = vmatpush1.bf16.msra.mxu0 0
  %114 = vmatprep.subr.bf16.mxu0 0
  %115 = vmatpush1.bf16.msra.mxu0 0
  %116 = vmatprep.subr.bf16.mxu0 0
  %117 = vmatpush1.bf16.msra.mxu0 0
  %118 = vmatprep.subr.bf16.mxu0 0
  %119 = vmatpush1.bf16.msra.mxu0 0
  %120 = vmatprep.subr.bf16.mxu0 0
  %121 = vmatpush1.bf16.msra.mxu0 0
  %122 = vmatprep.mubr.bf16.mxu0 0
  %123 = vmatmul.mubr.bf16.gmra.mrb[0].mxu0 %v88
  %v124 = vpop.f32.mrb[0].mxu0
  %v125 = vadd.f32 0.0, %v124
  %v126 = vpop.f32.mrb[0].mxu0
  %v127 = vpop.f32.mrb[0].mxu0
  %v128 = vpop.f32.mrb[0].mxu0
  %129 = vdwg.mxu0
  %v130 = vpack.c.bf16 %v77, %v76
  %v131 = vpack.c.bf16 %v125, %v125
  %v133 = vlaneseq
  %v134 = vshrl.u32 %v133, 7
  %v135 = vsub.s32 0, %v134
  %v136 = vrot.slane %v82, %v135
  %vm138 = vcmask 64512
  %v140 = vsel %vm138, %v130, 0
  %vm142 = vcmask 1043456
  %v144 = vsel %vm142, %v131, 0
  %146 = vmatprep.subr.bf16.mxu0 0
  %147 = vmatpush1.bf16.msra.mxu0 %v144
  %148 = vmatprep.subr.bf16.mxu0 0
  %149 = vmatpush1.bf16.msra.mxu0 0
  %150 = vmatprep.subr.bf16.mxu0 0
  %151 = vmatpush1.bf16.msra.mxu0 0
  %152 = vmatprep.subr.bf16.mxu0 0
  %153 = vmatpush1.bf16.msra.mxu0 0
  %154 = vmatprep.subr.bf16.mxu0 0
  %155 = vmatpush1.bf16.msra.mxu0 0
  %156 = vmatprep.subr.bf16.mxu0 0
  %157 = vmatpush1.bf16.msra.mxu0 0
  %158 = vmatprep.subr.bf16.mxu0 0
  %159 = vmatpush1.bf16.msra.mxu0 0
  %160 = vmatprep.subr.bf16.mxu0 0
  %161 = vmatpush1.bf16.msra.mxu0 0
  %162 = vmatprep.subr.bf16.mxu0 0
  %163 = vmatpush1.bf16.msra.mxu0 0
  %164 = vmatprep.subr.bf16.mxu0 0
  %165 = vmatpush1.bf16.msra.mxu0 0
  %166 = vmatprep.subr.bf16.mxu0 0
  %167 = vmatpush1.bf16.msra.mxu0 0
  %168 = vmatprep.subr.bf16.mxu0 0
  %169 = vmatpush1.bf16.msra.mxu0 0
  %170 = vmatprep.subr.bf16.mxu0 0
  %171 = vmatpush1.bf16.msra.mxu0 0
  %172 = vmatprep.subr.bf16.mxu0 0
  %173 = vmatpush1.bf16.msra.mxu0 0
  %174 = vmatprep.subr.bf16.mxu0 0
  %175 = vmatpush1.bf16.msra.mxu0 0
  %176 = vmatprep.subr.bf16.mxu0 0
  %177 = vmatpush1.bf16.msra.mxu0 0
  %178 = vmatprep.mubr.bf16.mxu0 0
  %179 = vmatmul.mubr.bf16.gmra.mrb[0].mxu0 %v140
  %v180 = vpop.f32.mrb[0].mxu0
  %v181 = vadd.f32 %v136, %v180
  %v182 = vpop.f32.mrb[0].mxu0
  %v183 = vpop.f32.mrb[0].mxu0
  %v184 = vadd.f32 %v136, %v183
  %v185 = vpop.f32.mrb[0].mxu0
  %186 = vdwg.mxu0
  %vm187 = vcmp.ge.f32.partialorder %v181, 0.0
  %vm188 = vcmp.ge.f32.partialorder %v184, 0.0
  %v189 = vmul.f32 %v181, 0.2
  %v190 = vmul.f32 %v184, 0.2
  %v191 = vsel %vm187, %v181, %v189
  %v192 = vsel %vm188, %v184, %v190
  %v193 = vld [vmem:[%s2] sm:$0xff]
  %v194 = vld [vmem:[%s10] sm:$0xff]
  %v195 = vld [vmem:[%s10 + $0x8] sm:$0xff]
  %v196 = vld [vmem:[%s10 + $0x10] sm:$0xff]
  %v197 = vld [vmem:[%s10 + $0x18] sm:$0xff]
  %v198 = vld [vmem:[%s11] sm:$0x1]
  %v199 = vpack.c.bf16 %v192, %v191
  %v200 = vpack.c.bf16 %v195, %v194
  %v201 = vpack.c.bf16 %v197, %v196
  %v203 = vsel %vm86, %v199, 0
  %205 = vmatprep.subr.bf16.mxu0 0
  %206 = vmatpush1.bf16.msra.mxu0 %v200
  %207 = vmatprep.subr.bf16.mxu0 0
  %208 = vmatpush1.bf16.msra.mxu0 %v201
  %209 = vmatprep.subr.bf16.mxu0 0
  %210 = vmatpush1.bf16.msra.mxu0 0
  %211 = vmatprep.subr.bf16.mxu0 0
  %212 = vmatpush1.bf16.msra.mxu0 0
  %213 = vmatprep.subr.bf16.mxu0 0
  %214 = vmatpush1.bf16.msra.mxu0 0
  %215 = vmatprep.subr.bf16.mxu0 0
  %216 = vmatpush1.bf16.msra.mxu0 0
  %217 = vmatprep.subr.bf16.mxu0 0
  %218 = vmatpush1.bf16.msra.mxu0 0
  %219 = vmatprep.subr.bf16.mxu0 0
  %220 = vmatpush1.bf16.msra.mxu0 0
  %221 = vmatprep.subr.bf16.mxu0 0
  %222 = vmatpush1.bf16.msra.mxu0 0
  %223 = vmatprep.subr.bf16.mxu0 0
  %224 = vmatpush1.bf16.msra.mxu0 0
  %225 = vmatprep.subr.bf16.mxu0 0
  %226 = vmatpush1.bf16.msra.mxu0 0
  %227 = vmatprep.subr.bf16.mxu0 0
  %228 = vmatpush1.bf16.msra.mxu0 0
  %229 = vmatprep.subr.bf16.mxu0 0
  %230 = vmatpush1.bf16.msra.mxu0 0
  %231 = vmatprep.subr.bf16.mxu0 0
  %232 = vmatpush1.bf16.msra.mxu0 0
  %233 = vmatprep.subr.bf16.mxu0 0
  %234 = vmatpush1.bf16.msra.mxu0 0
  %235 = vmatprep.subr.bf16.mxu0 0
  %236 = vmatpush1.bf16.msra.mxu0 0
  %237 = vmatprep.mubr.bf16.mxu0 0
  %238 = vmatmul.mubr.bf16.gmra.mrb[0].mxu0 %v203
  %v239 = vpop.f32.mrb[0].mxu0
  %v240 = vadd.f32 0.0, %v239
  %v241 = vpop.f32.mrb[0].mxu0
  %v242 = vpop.f32.mrb[0].mxu0
  %v243 = vadd.f32 0.0, %v242
  %v244 = vpop.f32.mrb[0].mxu0
  %245 = vdwg.mxu0
  %v246 = vpack.c.bf16 %v193, %v193
  %v247 = vpack.c.bf16 %v243, %v240
  %v249 = vlaneseq
  %v250 = vshrl.u32 %v249, 7
  %v251 = vsub.s32 0, %v250
  %v252 = vrot.slane %v198, %v251
  %vm254 = vcmask 80896
  %v256 = vsel %vm254, %v246, 0
  %vm258 = vcmask 1044480
  %v260 = vsel %vm258, %v247, 0
  %262 = vmatprep.subr.bf16.mxu0 0
  %263 = vmatpush1.bf16.msra.mxu0 %v260
  %264 = vmatprep.subr.bf16.mxu0 0
  %265 = vmatpush1.bf16.msra.mxu0 0
  %266 = vmatprep.subr.bf16.mxu0 0
  %267 = vmatpush1.bf16.msra.mxu0 0
  %268 = vmatprep.subr.bf16.mxu0 0
  %269 = vmatpush1.bf16.msra.mxu0 0
  %270 = vmatprep.subr.bf16.mxu0 0
  %271 = vmatpush1.bf16.msra.mxu0 0
  %272 = vmatprep.subr.bf16.mxu0 0
  %273 = vmatpush1.bf16.msra.mxu0 0
  %274 = vmatprep.subr.bf16.mxu0 0
  %275 = vmatpush1.bf16.msra.mxu0 0
  %276 = vmatprep.subr.bf16.mxu0 0
  %277 = vmatpush1.bf16.msra.mxu0 0
  %278 = vmatprep.subr.bf16.mxu0 0
  %279 = vmatpush1.bf16.msra.mxu0 0
  %280 = vmatprep.subr.bf16.mxu0 0
  %281 = vmatpush1.bf16.msra.mxu0 0
  %282 = vmatprep.subr.bf16.mxu0 0
  %283 = vmatpush1.bf16.msra.mxu0 0
  %284 = vmatprep.subr.bf16.mxu0 0
  %285 = vmatpush1.bf16.msra.mxu0 0
  %286 = vmatprep.subr.bf16.mxu0 0
  %287 = vmatpush1.bf16.msra.mxu0 0
  %288 = vmatprep.subr.bf16.mxu0 0
  %289 = vmatpush1.bf16.msra.mxu0 0
  %290 = vmatprep.subr.bf16.mxu0 0
  %291 = vmatpush1.bf16.msra.mxu0 0
  %292 = vmatprep.subr.bf16.mxu0 0
  %293 = vmatpush1.bf16.msra.mxu0 0
  %294 = vmatprep.mubr.bf16.mxu0 0
  %295 = vmatmul.mubr.bf16.gmra.mrb[0].mxu0 %v256
  %v296 = vpop.f32.mrb[0].mxu0
  %v297 = vadd.f32 %v252, %v296
  %v298 = vpop.f32.mrb[0].mxu0
  %v299 = vpop.f32.mrb[0].mxu0
  %v300 = vpop.f32.mrb[0].mxu0
  %301 = vdwg.mxu0
  %vm302 = vcmp.ge.f32.partialorder %v297, 0.0
  %v303 = vmul.f32 %v297, 0.2
  %v304 = vsel %vm302, %v297, %v303
  %v305 = vld [vmem:[%s5] sm:$0xff]
  %v306 = vld [vmem:[%s5 + $0x8] sm:$0xf]
  %v307 = vld [vmem:[%s8] sm:$0xff]
  %v308 = vld [vmem:[%s8 + $0x8] sm:$0xff]
  %v309 = vld [vmem:[%s8 + $0x10] sm:$0xff]
  %v310 = vld [vmem:[%s8 + $0x18] sm:$0xff]
  %v311 = vld [vmem:[%s9] sm:$0x1]
  %v312 = vpack.c.bf16 %v75, %v75
  %v313 = vpack.c.bf16 %v308, %v307
  %v314 = vpack.c.bf16 %v310, %v309
  %v316 = vsel %vm86, %v312, 0
  %318 = vmatprep.subr.bf16.mxu0 0
  %319 = vmatpush1.bf16.msra.mxu0 %v313
  %320 = vmatprep.subr.bf16.mxu0 0
  %321 = vmatpush1.bf16.msra.mxu0 %v314
  %322 = vmatprep.subr.bf16.mxu0 0
  %323 = vmatpush1.bf16.msra.mxu0 0
  %324 = vmatprep.subr.bf16.mxu0 0
  %325 = vmatpush1.bf16.msra.mxu0 0
  %326 = vmatprep.subr.bf16.mxu0 0
  %327 = vmatpush1.bf16.msra.mxu0 0
  %328 = vmatprep.subr.bf16.mxu0 0
  %329 = vmatpush1.bf16.msra.mxu0 0
  %330 = vmatprep.subr.bf16.mxu0 0
  %331 = vmatpush1.bf16.msra.mxu0 0
  %332 = vmatprep.subr.bf16.mxu0 0
  %333 = vmatpush1.bf16.msra.mxu0 0
  %334 = vmatprep.subr.bf16.mxu0 0
  %335 = vmatpush1.bf16.msra.mxu0 0
  %336 = vmatprep.subr.bf16.mxu0 0
  %337 = vmatpush1.bf16.msra.mxu0 0
  %338 = vmatprep.subr.bf16.mxu0 0
  %339 = vmatpush1.bf16.msra.mxu0 0
  %340 = vmatprep.subr.bf16.mxu0 0
  %341 = vmatpush1.bf16.msra.mxu0 0
  %342 = vmatprep.subr.bf16.mxu0 0
  %343 = vmatpush1.bf16.msra.mxu0 0
  %344 = vmatprep.subr.bf16.mxu0 0
  %345 = vmatpush1.bf16.msra.mxu0 0
  %346 = vmatprep.subr.bf16.mxu0 0
  %347 = vmatpush1.bf16.msra.mxu0 0
  %348 = vmatprep.subr.bf16.mxu0 0
  %349 = vmatpush1.bf16.msra.mxu0 0
  %350 = vmatprep.mubr.bf16.mxu0 0
  %351 = vmatmul.mubr.bf16.gmra.mrb[0].mxu0 %v316
  %v352 = vpop.f32.mrb[0].mxu0
  %v353 = vadd.f32 0.0, %v352
  %v354 = vpop.f32.mrb[0].mxu0
  %v355 = vpop.f32.mrb[0].mxu0
  %v356 = vpop.f32.mrb[0].mxu0
  %357 = vdwg.mxu0
  %v358 = vpack.c.bf16 %v306, %v305
  %v359 = vpack.c.bf16 %v353, %v353
  %v361 = vlaneseq
  %v362 = vshrl.u32 %v361, 7
  %v363 = vsub.s32 0, %v362
  %v364 = vrot.slane %v311, %v363
  %v367 = vsel %vm138, %v358, 0
  %v370 = vsel %vm142, %v359, 0
  %372 = vmatprep.subr.bf16.mxu0 0
  %373 = vmatpush1.bf16.msra.mxu0 %v370
  %374 = vmatprep.subr.bf16.mxu0 0
  %375 = vmatpush1.bf16.msra.mxu0 0
  %376 = vmatprep.subr.bf16.mxu0 0
  %377 = vmatpush1.bf16.msra.mxu0 0
  %378 = vmatprep.subr.bf16.mxu0 0
  %379 = vmatpush1.bf16.msra.mxu0 0
  %380 = vmatprep.subr.bf16.mxu0 0
  %381 = vmatpush1.bf16.msra.mxu0 0
  %382 = vmatprep.subr.bf16.mxu0 0
  %383 = vmatpush1.bf16.msra.mxu0 0
  %384 = vmatprep.subr.bf16.mxu0 0
  %385 = vmatpush1.bf16.msra.mxu0 0
  %386 = vmatprep.subr.bf16.mxu0 0
  %387 = vmatpush1.bf16.msra.mxu0 0
  %388 = vmatprep.subr.bf16.mxu0 0
  %389 = vmatpush1.bf16.msra.mxu0 0
  %390 = vmatprep.subr.bf16.mxu0 0
  %391 = vmatpush1.bf16.msra.mxu0 0
  %392 = vmatprep.subr.bf16.mxu0 0
  %393 = vmatpush1.bf16.msra.mxu0 0
  %394 = vmatprep.subr.bf16.mxu0 0
  %395 = vmatpush1.bf16.msra.mxu0 0
  %396 = vmatprep.subr.bf16.mxu0 0
  %397 = vmatpush1.bf16.msra.mxu0 0
  %398 = vmatprep.subr.bf16.mxu0 0
  %399 = vmatpush1.bf16.msra.mxu0 0
  %400 = vmatprep.subr.bf16.mxu0 0
  %401 = vmatpush1.bf16.msra.mxu0 0
  %402 = vmatprep.subr.bf16.mxu0 0
  %403 = vmatpush1.bf16.msra.mxu0 0
  %404 = vmatprep.mubr.bf16.mxu0 0
  %405 = vmatmul.mubr.bf16.gmra.mrb[0].mxu0 %v367
  %v406 = vpop.f32.mrb[0].mxu0
  %v407 = vadd.f32 %v364, %v406
  %v408 = vpop.f32.mrb[0].mxu0
  %v409 = vpop.f32.mrb[0].mxu0
  %v410 = vadd.f32 %v364, %v409
  %v411 = vpop.f32.mrb[0].mxu0
  %412 = vdwg.mxu0
  %vm413 = vcmp.ge.f32.partialorder %v407, 0.0
  %vm414 = vcmp.ge.f32.partialorder %v410, 0.0
  %v415 = vmul.f32 %v407, 0.2
  %v416 = vmul.f32 %v410, 0.2
  %v417 = vsel %vm413, %v407, %v415
  %v418 = vsel %vm414, %v410, %v416
  %v419 = vld [vmem:[%s4] sm:$0xff]
  %v420 = vld [vmem:[%s12] sm:$0xff]
  %v421 = vld [vmem:[%s12 + $0x8] sm:$0xff]
  %v422 = vld [vmem:[%s12 + $0x10] sm:$0xff]
  %v423 = vld [vmem:[%s12 + $0x18] sm:$0xff]
  %v424 = vld [vmem:[%s13] sm:$0x1]
  %v425 = vpack.c.bf16 %v418, %v417
  %v426 = vpack.c.bf16 %v421, %v420
  %v427 = vpack.c.bf16 %v423, %v422
  %v429 = vsel %vm86, %v425, 0
  %431 = vmatprep.subr.bf16.mxu0 0
  %432 = vmatpush1.bf16.msra.mxu0 %v426
  %433 = vmatprep.subr.bf16.mxu0 0
  %434 = vmatpush1.bf16.msra.mxu0 %v427
  %435 = vmatprep.subr.bf16.mxu0 0
  %436 = vmatpush1.bf16.msra.mxu0 0
  %437 = vmatprep.subr.bf16.mxu0 0
  %438 = vmatpush1.bf16.msra.mxu0 0
  %439 = vmatprep.subr.bf16.mxu0 0
  %440 = vmatpush1.bf16.msra.mxu0 0
  %441 = vmatprep.subr.bf16.mxu0 0
  %442 = vmatpush1.bf16.msra.mxu0 0
  %443 = vmatprep.subr.bf16.mxu0 0
  %444 = vmatpush1.bf16.msra.mxu0 0
  %445 = vmatprep.subr.bf16.mxu0 0
  %446 = vmatpush1.bf16.msra.mxu0 0
  %447 = vmatprep.subr.bf16.mxu0 0
  %448 = vmatpush1.bf16.msra.mxu0 0
  %449 = vmatprep.subr.bf16.mxu0 0
  %450 = vmatpush1.bf16.msra.mxu0 0
  %451 = vmatprep.subr.bf16.mxu0 0
  %452 = vmatpush1.bf16.msra.mxu0 0
  %453 = vmatprep.subr.bf16.mxu0 0
  %454 = vmatpush1.bf16.msra.mxu0 0
  %455 = vmatprep.subr.bf16.mxu0 0
  %456 = vmatpush1.bf16.msra.mxu0 0
  %457 = vmatprep.subr.bf16.mxu0 0
  %458 = vmatpush1.bf16.msra.mxu0 0
  %459 = vmatprep.subr.bf16.mxu0 0
  %460 = vmatpush1.bf16.msra.mxu0 0
  %461 = vmatprep.subr.bf16.mxu0 0
  %462 = vmatpush1.bf16.msra.mxu0 0
  %463 = vmatprep.mubr.bf16.mxu0 0
  %464 = vmatmul.mubr.bf16.gmra.mrb[0].mxu0 %v429
  %v465 = vpop.f32.mrb[0].mxu0
  %v466 = vadd.f32 0.0, %v465
  %v467 = vpop.f32.mrb[0].mxu0
  %v468 = vpop.f32.mrb[0].mxu0
  %v469 = vadd.f32 0.0, %v468
  %v470 = vpop.f32.mrb[0].mxu0
  %471 = vdwg.mxu0
  %v472 = vpack.c.bf16 %v419, %v419
  %v473 = vpack.c.bf16 %v469, %v466
  %v475 = vlaneseq
  %v476 = vshrl.u32 %v475, 7
  %v477 = vsub.s32 0, %v476
  %v478 = vrot.slane %v424, %v477
  %vm480 = vcmask 97280
  %v482 = vsel %vm480, %v472, 0
  %vm484 = vcmask 1045504
  %v486 = vsel %vm484, %v473, 0
  %488 = vmatprep.subr.bf16.mxu0 0
  %489 = vmatpush1.bf16.msra.mxu0 %v486
  %490 = vmatprep.subr.bf16.mxu0 0
  %491 = vmatpush1.bf16.msra.mxu0 0
  %492 = vmatprep.subr.bf16.mxu0 0
  %493 = vmatpush1.bf16.msra.mxu0 0
  %494 = vmatprep.subr.bf16.mxu0 0
  %495 = vmatpush1.bf16.msra.mxu0 0
  %496 = vmatprep.subr.bf16.mxu0 0
  %497 = vmatpush1.bf16.msra.mxu0 0
  %498 = vmatprep.subr.bf16.mxu0 0
  %499 = vmatpush1.bf16.msra.mxu0 0
  %500 = vmatprep.subr.bf16.mxu0 0
  %501 = vmatpush1.bf16.msra.mxu0 0
  %502 = vmatprep.subr.bf16.mxu0 0
  %503 = vmatpush1.bf16.msra.mxu0 0
  %504 = vmatprep.subr.bf16.mxu0 0
  %505 = vmatpush1.bf16.msra.mxu0 0
  %506 = vmatprep.subr.bf16.mxu0 0
  %507 = vmatpush1.bf16.msra.mxu0 0
  %508 = vmatprep.subr.bf16.mxu0 0
  %509 = vmatpush1.bf16.msra.mxu0 0
  %510 = vmatprep.subr.bf16.mxu0 0
  %511 = vmatpush1.bf16.msra.mxu0 0
  %512 = vmatprep.subr.bf16.mxu0 0
  %513 = vmatpush1.bf16.msra.mxu0 0
  %514 = vmatprep.subr.bf16.mxu0 0
  %515 = vmatpush1.bf16.msra.mxu0 0
  %516 = vmatprep.subr.bf16.mxu0 0
  %517 = vmatpush1.bf16.msra.mxu0 0
  %518 = vmatprep.subr.bf16.mxu0 0
  %519 = vmatpush1.bf16.msra.mxu0 0
  %520 = vmatprep.mubr.bf16.mxu0 0
  %521 = vmatmul.mubr.bf16.gmra.mrb[0].mxu0 %v482
  %v522 = vpop.f32.mrb[0].mxu0
  %v523 = vadd.f32 %v478, %v522
  %v524 = vpop.f32.mrb[0].mxu0
  %v525 = vpop.f32.mrb[0].mxu0
  %v526 = vpop.f32.mrb[0].mxu0
  %527 = vdwg.mxu0
  %vm528 = vcmp.ge.f32.partialorder %v523, 0.0
  %v529 = vmul.f32 %v523, 0.2
  %v530 = vsel %vm528, %v523, %v529
  %v531 = vld [vmem:[%s14] sm:$0xff]
  %v532 = vld [vmem:[%s14 + $0x8] sm:$0xff]
  %v533 = vld [vmem:[%s14 + $0x10] sm:$0xff]
  %v534 = vld [vmem:[%s14 + $0x18] sm:$0xff]
  %v535 = vpack.c.bf16 %v304, %v304
  %v536 = vpack.c.bf16 %v532, %v531
  %v537 = vpack.c.bf16 %v534, %v533
  %v538 = vld [vmem:[%s15] sm:$0xff]
  %v539 = vld [vmem:[%s15 + $0x8] sm:$0xff]
  %v540 = vld [vmem:[%s15 + $0x10] sm:$0xff]
  %v541 = vld [vmem:[%s15 + $0x18] sm:$0xff]
  %v542 = vpack.c.bf16 %v539, %v538
  %v543 = vpack.c.bf16 %v541, %v540
  %544 = vmatprep.subr.bf16.mxu0 0
  %545 = vmatpush1.bf16.msra.mxu0 %v542
  %546 = vmatprep.subr.bf16.mxu0 0
  %547 = vmatpush1.bf16.msra.mxu0 %v543
  %548 = vmatprep.subr.bf16.mxu0 0
  %549 = vmatpush1.bf16.msra.mxu0 0
  %550 = vmatprep.subr.bf16.mxu0 0
  %551 = vmatpush1.bf16.msra.mxu0 0
  %552 = vmatprep.subr.bf16.mxu0 0
  %553 = vmatpush1.bf16.msra.mxu0 0
  %554 = vmatprep.subr.bf16.mxu0 0
  %555 = vmatpush1.bf16.msra.mxu0 0
  %556 = vmatprep.subr.bf16.mxu0 0
  %557 = vmatpush1.bf16.msra.mxu0 0
  %558 = vmatprep.subr.bf16.mxu0 0
  %559 = vmatpush1.bf16.msra.mxu0 0
  %560 = vmatprep.subr.bf16.mxu0 0
  %561 = vmatpush1.bf16.msra.mxu0 0
  %562 = vmatprep.subr.bf16.mxu0 0
  %563 = vmatpush1.bf16.msra.mxu0 0
  %564 = vmatprep.subr.bf16.mxu0 0
  %565 = vmatpush1.bf16.msra.mxu0 0
  %566 = vmatprep.subr.bf16.mxu0 0
  %567 = vmatpush1.bf16.msra.mxu0 0
  %568 = vmatprep.subr.bf16.mxu0 0
  %569 = vmatpush1.bf16.msra.mxu0 0
  %570 = vmatprep.subr.bf16.mxu0 0
  %571 = vmatpush1.bf16.msra.mxu0 0
  %572 = vmatprep.subr.bf16.mxu0 0
  %573 = vmatpush1.bf16.msra.mxu0 0
  %574 = vmatprep.subr.bf16.mxu0 0
  %575 = vmatpush1.bf16.msra.mxu0 0
  %576 = vmatprep.mubr.bf16.mxu0 0
  %577 = vmatmul.mubr.bf16.gmra.mrb[0].mxu0 %v88
  %v578 = vpop.f32.mrb[0].mxu0
  %v579 = vadd.f32 0.0, %v578
  %v580 = vpop.f32.mrb[0].mxu0
  %v581 = vpop.f32.mrb[0].mxu0
  %v582 = vpop.f32.mrb[0].mxu0
  %583 = vdwg.mxu0
  %v585 = vsel %vm86, %v535, 0
  %587 = vmatprep.subr.bf16.mxu0 0
  %588 = vmatpush1.bf16.msra.mxu0 %v536
  %589 = vmatprep.subr.bf16.mxu0 0
  %590 = vmatpush1.bf16.msra.mxu0 %v537
  %591 = vmatprep.subr.bf16.mxu0 0
  %592 = vmatpush1.bf16.msra.mxu0 0
  %593 = vmatprep.subr.bf16.mxu0 0
  %594 = vmatpush1.bf16.msra.mxu0 0
  %595 = vmatprep.subr.bf16.mxu0 0
  %596 = vmatpush1.bf16.msra.mxu0 0
  %597 = vmatprep.subr.bf16.mxu0 0
  %598 = vmatpush1.bf16.msra.mxu0 0
  %599 = vmatprep.subr.bf16.mxu0 0
  %600 = vmatpush1.bf16.msra.mxu0 0
  %601 = vmatprep.subr.bf16.mxu0 0
  %602 = vmatpush1.bf16.msra.mxu0 0
  %603 = vmatprep.subr.bf16.mxu0 0
  %604 = vmatpush1.bf16.msra.mxu0 0
  %605 = vmatprep.subr.bf16.mxu0 0
  %606 = vmatpush1.bf16.msra.mxu0 0
  %607 = vmatprep.subr.bf16.mxu0 0
  %608 = vmatpush1.bf16.msra.mxu0 0
  %609 = vmatprep.subr.bf16.mxu0 0
  %610 = vmatpush1.bf16.msra.mxu0 0
  %611 = vmatprep.subr.bf16.mxu0 0
  %612 = vmatpush1.bf16.msra.mxu0 0
  %613 = vmatprep.subr.bf16.mxu0 0
  %614 = vmatpush1.bf16.msra.mxu0 0
  %615 = vmatprep.subr.bf16.mxu0 0
  %616 = vmatpush1.bf16.msra.mxu0 0
  %617 = vmatprep.subr.bf16.mxu0 0
  %618 = vmatpush1.bf16.msra.mxu0 0
  %619 = vmatprep.mubr.bf16.mxu0 0
  %620 = vmatmul.mubr.bf16.gmra.mrb[0].mxu0 %v585
  %v621 = vpop.f32.mrb[0].mxu0
  %v622 = vadd.f32 %v579, %v621
  %v623 = vpop.f32.mrb[0].mxu0
  %v624 = vpop.f32.mrb[0].mxu0
  %v625 = vpop.f32.mrb[0].mxu0
  %626 = vdwg.mxu0
  %v627 = vld [vmem:[%s16] sm:$0x1]
  %v629 = vlaneseq
  %v630 = vshrl.u32 %v629, 7
  %v631 = vsub.s32 0, %v630
  %v632 = vrot.slane %v627, %v631
  %v634 = vadd.f32 %v622, %v632
  %v635 = vld [vmem:[%s17] sm:$0xff]
  %v636 = vld [vmem:[%s17 + $0x8] sm:$0xff]
  %v637 = vld [vmem:[%s17 + $0x10] sm:$0xff]
  %v638 = vld [vmem:[%s17 + $0x18] sm:$0xff]
  %v639 = vpack.c.bf16 %v530, %v530
  %v640 = vpack.c.bf16 %v636, %v635
  %v641 = vpack.c.bf16 %v638, %v637
  %v642 = vld [vmem:[%s18] sm:$0xff]
  %v643 = vld [vmem:[%s18 + $0x8] sm:$0xff]
  %v644 = vld [vmem:[%s18 + $0x10] sm:$0xff]
  %v645 = vld [vmem:[%s18 + $0x18] sm:$0xff]
  %v646 = vpack.c.bf16 %v643, %v642
  %v647 = vpack.c.bf16 %v645, %v644
  %648 = vmatprep.subr.bf16.mxu0 0
  %649 = vmatpush1.bf16.msra.mxu0 %v646
  %650 = vmatprep.subr.bf16.mxu0 0
  %651 = vmatpush1.bf16.msra.mxu0 %v647
  %652 = vmatprep.subr.bf16.mxu0 0
  %653 = vmatpush1.bf16.msra.mxu0 0
  %654 = vmatprep.subr.bf16.mxu0 0
  %655 = vmatpush1.bf16.msra.mxu0 0
  %656 = vmatprep.subr.bf16.mxu0 0
  %657 = vmatpush1.bf16.msra.mxu0 0
  %658 = vmatprep.subr.bf16.mxu0 0
  %659 = vmatpush1.bf16.msra.mxu0 0
  %660 = vmatprep.subr.bf16.mxu0 0
  %661 = vmatpush1.bf16.msra.mxu0 0
  %662 = vmatprep.subr.bf16.mxu0 0
  %663 = vmatpush1.bf16.msra.mxu0 0
  %664 = vmatprep.subr.bf16.mxu0 0
  %665 = vmatpush1.bf16.msra.mxu0 0
  %666 = vmatprep.subr.bf16.mxu0 0
  %667 = vmatpush1.bf16.msra.mxu0 0
  %668 = vmatprep.subr.bf16.mxu0 0
  %669 = vmatpush1.bf16.msra.mxu0 0
  %670 = vmatprep.subr.bf16.mxu0 0
  %671 = vmatpush1.bf16.msra.mxu0 0
  %672 = vmatprep.subr.bf16.mxu0 0
  %673 = vmatpush1.bf16.msra.mxu0 0
  %674 = vmatprep.subr.bf16.mxu0 0
  %675 = vmatpush1.bf16.msra.mxu0 0
  %676 = vmatprep.subr.bf16.mxu0 0
  %677 = vmatpush1.bf16.msra.mxu0 0
  %678 = vmatprep.subr.bf16.mxu0 0
  %679 = vmatpush1.bf16.msra.mxu0 0
  %680 = vmatprep.mubr.bf16.mxu0 0
  %681 = vmatmul.mubr.bf16.gmra.mrb[0].mxu0 %v316
  %v682 = vpop.f32.mrb[0].mxu0
  %v683 = vadd.f32 0.0, %v682
  %v684 = vpop.f32.mrb[0].mxu0
  %v685 = vpop.f32.mrb[0].mxu0
  %v686 = vpop.f32.mrb[0].mxu0
  %687 = vdwg.mxu0
  %v689 = vsel %vm86, %v639, 0
  %691 = vmatprep.subr.bf16.mxu0 0
  %692 = vmatpush1.bf16.msra.mxu0 %v640
  %693 = vmatprep.subr.bf16.mxu0 0
  %694 = vmatpush1.bf16.msra.mxu0 %v641
  %695 = vmatprep.subr.bf16.mxu0 0
  %696 = vmatpush1.bf16.msra.mxu0 0
  %697 = vmatprep.subr.bf16.mxu0 0
  %698 = vmatpush1.bf16.msra.mxu0 0
  %699 = vmatprep.subr.bf16.mxu0 0
  %700 = vmatpush1.bf16.msra.mxu0 0
  %701 = vmatprep.subr.bf16.mxu0 0
  %702 = vmatpush1.bf16.msra.mxu0 0
  %703 = vmatprep.subr.bf16.mxu0 0
  %704 = vmatpush1.bf16.msra.mxu0 0
  %705 = vmatprep.subr.bf16.mxu0 0
  %706 = vmatpush1.bf16.msra.mxu0 0
  %707 = vmatprep.subr.bf16.mxu0 0
  %708 = vmatpush1.bf16.msra.mxu0 0
  %709 = vmatprep.subr.bf16.mxu0 0
  %710 = vmatpush1.bf16.msra.mxu0 0
  %711 = vmatprep.subr.bf16.mxu0 0
  %712 = vmatpush1.bf16.msra.mxu0 0
  %713 = vmatprep.subr.bf16.mxu0 0
  %714 = vmatpush1.bf16.msra.mxu0 0
  %715 = vmatprep.subr.bf16.mxu0 0
  %716 = vmatpush1.bf16.msra.mxu0 0
  %717 = vmatprep.subr.bf16.mxu0 0
  %718 = vmatpush1.bf16.msra.mxu0 0
  %719 = vmatprep.subr.bf16.mxu0 0
  %720 = vmatpush1.bf16.msra.mxu0 0
  %721 = vmatprep.subr.bf16.mxu0 0
  %722 = vmatpush1.bf16.msra.mxu0 0
  %723 = vmatprep.mubr.bf16.mxu0 0
  %724 = vmatmul.mubr.bf16.gmra.mrb[0].mxu0 %v689
  %v725 = vpop.f32.mrb[0].mxu0
  %v726 = vadd.f32 %v683, %v725
  %v727 = vpop.f32.mrb[0].mxu0
  %v728 = vpop.f32.mrb[0].mxu0
  %v729 = vpop.f32.mrb[0].mxu0
  %730 = vdwg.mxu0
  %v731 = vld [vmem:[%s19] sm:$0x1]
  %v733 = vlaneseq
  %v734 = vshrl.u32 %v733, 7
  %v735 = vsub.s32 0, %v734
  %v736 = vrot.slane %v731, %v735
  %v738 = vadd.f32 %v726, %v736
  %v739 = vmax.f32 %v634, 0.0
  %v740 = vmax.f32 %v738, 0.0
  %v741 = vmul.f32 %v739, 0.7
  %v742 = vld [vmem:[%s20] sm:$0xff]
  %v744 = vsel %vm138, %v742, 0
  %746 = vmatprep.subr.mxu0 0.0
  %747 = vmatpush1.msra.mxu0 %v740
  %748 = vmatprep.subr.mxu0 0.0
  %749 = vmatpush1.msra.mxu0 0.0
  %750 = vmatprep.subr.mxu0 0.0
  %751 = vmatpush1.msra.mxu0 0.0
  %752 = vmatprep.subr.mxu0 0.0
  %753 = vmatpush1.msra.mxu0 0.0
  %754 = vmatprep.subr.mxu0 0.0
  %755 = vmatpush1.msra.mxu0 0.0
  %756 = vmatprep.subr.mxu0 0.0
  %757 = vmatpush1.msra.mxu0 0.0
  %758 = vmatprep.subr.mxu0 0.0
  %759 = vmatpush1.msra.mxu0 0.0
  %760 = vmatprep.subr.mxu0 0.0
  %761 = vmatpush1.msra.mxu0 0.0
  %762 = vmatprep.subr.mxu0 0.0
  %763 = vmatpush1.msra.mxu0 0.0
  %764 = vmatprep.subr.mxu0 0.0
  %765 = vmatpush1.msra.mxu0 0.0
  %766 = vmatprep.subr.mxu0 0.0
  %767 = vmatpush1.msra.mxu0 0.0
  %768 = vmatprep.subr.mxu0 0.0
  %769 = vmatpush1.msra.mxu0 0.0
  %770 = vmatprep.subr.mxu0 0.0
  %771 = vmatpush1.msra.mxu0 0.0
  %772 = vmatprep.subr.mxu0 0.0
  %773 = vmatpush1.msra.mxu0 0.0
  %774 = vmatprep.subr.mxu0 0.0
  %775 = vmatpush1.msra.mxu0 0.0
  %776 = vmatprep.subr.mxu0 0.0
  %777 = vmatpush1.msra.mxu0 0.0
  %778 = vmatprep.subr.mxu0 0.0
  %779 = vmatpush1.msra.mxu0 0.0
  %780 = vmatprep.subr.mxu0 0.0
  %781 = vmatpush1.msra.mxu0 0.0
  %782 = vmatprep.subr.mxu0 0.0
  %783 = vmatpush1.msra.mxu0 0.0
  %784 = vmatprep.subr.mxu0 0.0
  %785 = vmatpush1.msra.mxu0 0.0
  %786 = vmatprep.subr.mxu0 0.0
  %787 = vmatpush1.msra.mxu0 0.0
  %788 = vmatprep.subr.mxu0 0.0
  %789 = vmatpush1.msra.mxu0 0.0
  %790 = vmatprep.subr.mxu0 0.0
  %791 = vmatpush1.msra.mxu0 0.0
  %792 = vmatprep.subr.mxu0 0.0
  %793 = vmatpush1.msra.mxu0 0.0
  %794 = vmatprep.subr.mxu0 0.0
  %795 = vmatpush1.msra.mxu0 0.0
  %796 = vmatprep.subr.mxu0 0.0
  %797 = vmatpush1.msra.mxu0 0.0
  %798 = vmatprep.subr.mxu0 0.0
  %799 = vmatpush1.msra.mxu0 0.0
  %800 = vmatprep.subr.mxu0 0.0
  %801 = vmatpush1.msra.mxu0 0.0
  %802 = vmatprep.subr.mxu0 0.0
  %803 = vmatpush1.msra.mxu0 0.0
  %804 = vmatprep.subr.mxu0 0.0
  %805 = vmatpush1.msra.mxu0 0.0
  %806 = vmatprep.subr.mxu0 0.0
  %807 = vmatpush1.msra.mxu0 0.0
  %808 = vmatprep.subr.mxu0 0.0
  %809 = vmatpush1.msra.mxu0 0.0
  %810 = vmatprep.mubr.f32.mxu0 0.0
  %811 = vmatmul.mubr.f32.gmra.mrb[0].mxu0 %v744
  %v812 = vpop.f32.mrb[0].mxu0
  %v813 = vadd.f32 0.0, %v812
  %v814 = vpop.f32.mrb[0].mxu0
  %815 = vdwg.mxu0
  %v816 = vadd.f32 %v741, %v813
  %817 = vst.msk [vmem:[%s22] sm:$0xff] %vm86, %v816
  %v818 = vmul.f32 %v740, 0.3
  %v819 = vld [vmem:[%s21] sm:$0xff]
  %v821 = vsel %vm138, %v819, 0
  %823 = vmatprep.subr.mxu0 0.0
  %824 = vmatpush1.msra.mxu0 %v739
  %825 = vmatprep.subr.mxu0 0.0
  %826 = vmatpush1.msra.mxu0 0.0
  %827 = vmatprep.subr.mxu0 0.0
  %828 = vmatpush1.msra.mxu0 0.0
  %829 = vmatprep.subr.mxu0 0.0
  %830 = vmatpush1.msra.mxu0 0.0
  %831 = vmatprep.subr.mxu0 0.0
  %832 = vmatpush1.msra.mxu0 0.0
  %833 = vmatprep.subr.mxu0 0.0
  %834 = vmatpush1.msra.mxu0 0.0
  %835 = vmatprep.subr.mxu0 0.0
  %836 = vmatpush1.msra.mxu0 0.0
  %837 = vmatprep.subr.mxu0 0.0
  %838 = vmatpush1.msra.mxu0 0.0
  %839 = vmatprep.subr.mxu0 0.0
  %840 = vmatpush1.msra.mxu0 0.0
  %841 = vmatprep.subr.mxu0 0.0
  %842 = vmatpush1.msra.mxu0 0.0
  %843 = vmatprep.subr.mxu0 0.0
  %844 = vmatpush1.msra.mxu0 0.0
  %845 = vmatprep.subr.mxu0 0.0
  %846 = vmatpush1.msra.mxu0 0.0
  %847 = vmatprep.subr.mxu0 0.0
  %848 = vmatpush1.msra.mxu0 0.0
  %849 = vmatprep.subr.mxu0 0.0
  %850 = vmatpush1.msra.mxu0 0.0
  %851 = vmatprep.subr.mxu0 0.0
  %852 = vmatpush1.msra.mxu0 0.0
  %853 = vmatprep.subr.mxu0 0.0
  %854 = vmatpush1.msra.mxu0 0.0
  %855 = vmatprep.subr.mxu0 0.0
  %856 = vmatpush1.msra.mxu0 0.0
  %857 = vmatprep.subr.mxu0 0.0
  %858 = vmatpush1.msra.mxu0 0.0
  %859 = vmatprep.subr.mxu0 0.0
  %860 = vmatpush1.msra.mxu0 0.0
  %861 = vmatprep.subr.mxu0 0.0
  %862 = vmatpush1.msra.mxu0 0.0
  %863 = vmatprep.subr.mxu0 0.0
  %864 = vmatpush1.msra.mxu0 0.0
  %865 = vmatprep.subr.mxu0 0.0
  %866 = vmatpush1.msra.mxu0 0.0
  %867 = vmatprep.subr.mxu0 0.0
  %868 = vmatpush1.msra.mxu0 0.0
  %869 = vmatprep.subr.mxu0 0.0
  %870 = vmatpush1.msra.mxu0 0.0
  %871 = vmatprep.subr.mxu0 0.0
  %872 = vmatpush1.msra.mxu0 0.0
  %873 = vmatprep.subr.mxu0 0.0
  %874 = vmatpush1.msra.mxu0 0.0
  %875 = vmatprep.subr.mxu0 0.0
  %876 = vmatpush1.msra.mxu0 0.0
  %877 = vmatprep.subr.mxu0 0.0
  %878 = vmatpush1.msra.mxu0 0.0
  %879 = vmatprep.subr.mxu0 0.0
  %880 = vmatpush1.msra.mxu0 0.0
  %881 = vmatprep.subr.mxu0 0.0
  %882 = vmatpush1.msra.mxu0 0.0
  %883 = vmatprep.subr.mxu0 0.0
  %884 = vmatpush1.msra.mxu0 0.0
  %885 = vmatprep.subr.mxu0 0.0
  %886 = vmatpush1.msra.mxu0 0.0
  %887 = vmatprep.mubr.f32.mxu0 0.0
  %888 = vmatmul.mubr.f32.gmra.mrb[0].mxu0 %v821
  %v889 = vpop.f32.mrb[0].mxu0
  %v890 = vadd.f32 0.0, %v889
  %v891 = vpop.f32.mrb[0].mxu0
  %892 = vdwg.mxu0
  %v893 = vadd.f32 %v818, %v890
  %894 = vst.msk [vmem:[%s23] sm:$0xff] %vm86, %v893
  // Predicated region
  $region90: #{cross_vbge_forward.4} parent=0 // pred_check
    _
  $region91: #{cross_vbge_forward.4} parent=0 // pred_check_branch
    %896 = sbr.rel (0) target = $region93
  $region92: #{cross_vbge_forward.4} parent=0 // pred_region
    _
  $region93: #{cross_vbge_forward.4} parent=0 // pred_fallthru
    _
  // Predicated region
  $region94: #{cross_vbge_forward.4} parent=0 // pred_check
    _
  $region95: #{cross_vbge_forward.4} parent=0 // pred_check_branch
    %898 = sbr.rel (0) target = $region97
  $region96: #{cross_vbge_forward.4} parent=0 // pred_region
    _
  $region97: #{cross_vbge_forward.4} parent=0 // pred_fallthru
    _
  // Predicated region
  $region98: #{cross_vbge_forward.4} parent=0 // pred_check
    _
  $region99: #{cross_vbge_forward.4} parent=0 // pred_check_branch
    %900 = sbr.rel (0) target = $region101
  $region100: #{cross_vbge_forward.4} parent=0 // pred_region
    _
  $region101: #{cross_vbge_forward.4} parent=0 // pred_fallthru
    _
  // Predicated region
  $region102: #{cross_vbge_forward.4} parent=0 // pred_check
    _
  $region103: #{cross_vbge_forward.4} parent=0 // pred_check_branch
    %902 = sbr.rel (0) target = $region105
  $region104: #{cross_vbge_forward.4} parent=0 // pred_region
    _
  $region105: #{cross_vbge_forward.4} parent=0 // pred_fallthru
    _

// kernel: cross_vbge_forward.3
$region0: #{cross_vbge_forward.3}
  #allocation0 [shape = 'u32[]', space=smem, size = 0x4, offset = 0x4, fixed_abs, tag = 'smem constant byte address 0x4 - core index']
  #allocation1 [shape = 'u32[144,128]{1,0:T(1,128)}', space=vmem, size = 0x12000, scoped, tag = 'internal scratch']
  %s0 = inlined_call_operand.hbm [shape: f32[8,32], index: 0, kind: input, shape index: {}]
  %s1 = inlined_call_operand.hbm [shape: f32[8,32], index: 1, kind: input, shape index: {}]
  %s2 = inlined_call_operand.vmem [shape: f32[8,10], index: 2, kind: input, shape index: {}]
  %s3 = inlined_call_operand.vmem [shape: f32[10,8], index: 3, kind: input, shape index: {}]
  %s4 = inlined_call_operand.vmem [shape: f32[8,12], index: 4, kind: input, shape index: {}]
  %s5 = inlined_call_operand.vmem [shape: f32[12,8], index: 5, kind: input, shape index: {}]
  %s6 = inlined_call_operand.vmem [shape: f32[32,32], index: 6, kind: input, shape index: {}]
  %s7 = inlined_call_operand.vmem [shape: f32[1,32], index: 7, kind: input, shape index: {}]
  %s8 = inlined_call_operand.vmem [shape: f32[32,32], index: 8, kind: input, shape index: {}]
  %s9 = inlined_call_operand.vmem [shape: f32[1,32], index: 9, kind: input, shape index: {}]
  %s10 = inlined_call_operand.vmem [shape: f32[32,32], index: 10, kind: input, shape index: {}]
  %s11 = inlined_call_operand.vmem [shape: f32[1,32], index: 11, kind: input, shape index: {}]
  %s12 = inlined_call_operand.vmem [shape: f32[32,32], index: 12, kind: input, shape index: {}]
  %s13 = inlined_call_operand.hbm [shape: f32[1,32], index: 13, kind: input, shape index: {}]
  %s14 = inlined_call_operand.vmem [shape: f32[32,32], index: 14, kind: input, shape index: {}]
  %s15 = inlined_call_operand.hbm [shape: f32[32,32], index: 15, kind: input, shape index: {}]
  %s16 = inlined_call_operand.hbm [shape: f32[1,32], index: 16, kind: input, shape index: {}]
  %s17 = inlined_call_operand.hbm [shape: f32[32,32], index: 17, kind: input, shape index: {}]
  %s18 = inlined_call_operand.hbm [shape: f32[32,32], index: 18, kind: input, shape index: {}]
  %s19 = inlined_call_operand.hbm [shape: f32[1,32], index: 19, kind: input, shape index: {}]
  %s20 = inlined_call_operand.vmem [shape: f32[8,8], index: 20, kind: input, shape index: {}]
  %s21 = inlined_call_operand.vmem [shape: f32[8,8], index: 21, kind: input, shape index: {}]
  %s22 = inlined_call_operand.vmem [shape: f32[8,32], index: 22, kind: output, shape index: {0}]
  %s23 = inlined_call_operand.vmem [shape: f32[8,32], index: 23, kind: output, shape index: {1}]
  %24 = xla_tuple %s22, %s23
  %s25 = sld [smem:[#allocation0]]
  $region138: #{cross_vbge_forward.3} parent=0
    _
  %s27 = ssub.s32 1, %s25
  %s28 = scalar_select 0, %s27, %s25
  $region1: #{cross_vbge_forward.3} parent=0
    #allocation2 [shape = 'u8[4096]{0}', space=vmem, size = 0x1000, scoped, tag = 'input window, operand 0, single buffered']
    #allocation3 [shape = 's32[1]{0}', space=sflag, size = 0x4, scoped, tag = 'scoped memory for cross_vbge_forward.3']
    #allocation4 [shape = 'u8[4096]{0}', space=vmem, size = 0x1000, scoped, tag = 'input window, operand 1, single buffered']
    #allocation5 [shape = 's32[1]{0}', space=sflag, size = 0x4, scoped, tag = 'scoped memory for cross_vbge_forward.3']
    #allocation6 [shape = 'u8[512]{0}', space=vmem, size = 0x400, scoped, tag = 'input window, operand 13, single buffered']
    #allocation7 [shape = 'u8[16384]{0}', space=vmem, size = 0x4000, scoped, tag = 'input window, operand 15, single buffered']
    #allocation8 [shape = 's32[1]{0}', space=sflag, size = 0x4, scoped, tag = 'scoped memory for cross_vbge_forward.3']
    #allocation9 [shape = 'u8[512]{0}', space=vmem, size = 0x400, scoped, tag = 'input window, operand 16, single buffered']
    #allocation10 [shape = 'u8[16384]{0}', space=vmem, size = 0x4000, scoped, tag = 'input window, operand 17, single buffered']
    #allocation11 [shape = 's32[1]{0}', space=sflag, size = 0x4, scoped, tag = 'scoped memory for cross_vbge_forward.3']
    #allocation12 [shape = 'u8[16384]{0}', space=vmem, size = 0x4000, scoped, tag = 'input window, operand 18, single buffered']
    #allocation13 [shape = 'u8[512]{0}', space=vmem, size = 0x400, scoped, tag = 'input window, operand 19, single buffered']
    #allocation14 [shape = 's32[1]{0}', space=sflag, size = 0x4, scoped, tag = 'scoped memory for cross_vbge_forward.3']
    %29 = vsyncpa [#allocation3], 0
    %30 = vsyncpa [#allocation5], 0
    %31 = vsyncpa [#allocation8], 0
    %32 = vsyncpa [#allocation11], 0
    %33 = vsyncpa [#allocation14], 0
    // Predicated region
    $region2: #{cross_vbge_forward.3} parent=1 // pred_check
      _
    $region3: #{cross_vbge_forward.3} parent=1 // pred_check_branch
      %35 = sbr.rel (0) target = $region5
    $region4: #{cross_vbge_forward.3} parent=1 // pred_region
      %s37 = ssub.s32 128, 128
      %38 = vsyncadd [#allocation3], %s37
      %s40 = sshll.u32 [#allocation2], 4
      %s41 = int_to_ptr.vmem [resolvable:$true] %s40
      %43 = dma.hbm_to_vmem [thread:$0]  %s0, 128, %s41, [#allocation3]
    $region5: #{cross_vbge_forward.3} parent=1 // pred_fallthru
      _
    // Predicated region
    $region6: #{cross_vbge_forward.3} parent=1 // pred_check
      _
    $region7: #{cross_vbge_forward.3} parent=1 // pred_check_branch
      %45 = sbr.rel (0) target = $region9
    $region8: #{cross_vbge_forward.3} parent=1 // pred_region
      %s47 = ssub.s32 128, 128
      %48 = vsyncadd [#allocation5], %s47
      %s50 = sshll.u32 [#allocation4], 4
      %s51 = int_to_ptr.vmem [resolvable:$true] %s50
      %53 = dma.hbm_to_vmem [thread:$0]  %s1, 128, %s51, [#allocation5]
    $region9: #{cross_vbge_forward.3} parent=1 // pred_fallthru
      _
    // Predicated region
    $region10: #{cross_vbge_forward.3} parent=1 // pred_check
      _
    $region11: #{cross_vbge_forward.3} parent=1 // pred_check_branch
      %55 = sbr.rel (0) target = $region13
    $region12: #{cross_vbge_forward.3} parent=1 // pred_region
      _
    $region13: #{cross_vbge_forward.3} parent=1 // pred_fallthru
      _
    // Predicated region
    $region14: #{cross_vbge_forward.3} parent=1 // pred_check
      _
    $region15: #{cross_vbge_forward.3} parent=1 // pred_check_branch
      %57 = sbr.rel (0) target = $region17
    $region16: #{cross_vbge_forward.3} parent=1 // pred_region
      _
    $region17: #{cross_vbge_forward.3} parent=1 // pred_fallthru
      _
    // Predicated region
    $region18: #{cross_vbge_forward.3} parent=1 // pred_check
      _
    $region19: #{cross_vbge_forward.3} parent=1 // pred_check_branch
      %59 = sbr.rel (0) target = $region21
    $region20: #{cross_vbge_forward.3} parent=1 // pred_region
      _
    $region21: #{cross_vbge_forward.3} parent=1 // pred_fallthru
      _
    // Predicated region
    $region22: #{cross_vbge_forward.3} parent=1 // pred_check
      _
    $region23: #{cross_vbge_forward.3} parent=1 // pred_check_branch
      %61 = sbr.rel (0) target = $region25
    $region24: #{cross_vbge_forward.3} parent=1 // pred_region
      _
    $region25: #{cross_vbge_forward.3} parent=1 // pred_fallthru
      _
    // Predicated region
    $region26: #{cross_vbge_forward.3} parent=1 // pred_check
      _
    $region27: #{cross_vbge_forward.3} parent=1 // pred_check_branch
      %63 = sbr.rel (0) target = $region29
    $region28: #{cross_vbge_forward.3} parent=1 // pred_region
      _
    $region29: #{cross_vbge_forward.3} parent=1 // pred_fallthru
      _
    // Predicated region
    $region30: #{cross_vbge_forward.3} parent=1 // pred_check
      _
    $region31: #{cross_vbge_forward.3} parent=1 // pred_check_branch
      %65 = sbr.rel (0) target = $region33
    $region32: #{cross_vbge_forward.3} parent=1 // pred_region
      _
    $region33: #{cross_vbge_forward.3} parent=1 // pred_fallthru
      _
    // Predicated region
    $region34: #{cross_vbge_forward.3} parent=1 // pred_check
      _
    $region35: #{cross_vbge_forward.3} parent=1 // pred_check_branch
      %67 = sbr.rel (0) target = $region37
    $region36: #{cross_vbge_forward.3} parent=1 // pred_region
      _
    $region37: #{cross_vbge_forward.3} parent=1 // pred_fallthru
      _
    // Predicated region
    $region38: #{cross_vbge_forward.3} parent=1 // pred_check
      _
    $region39: #{cross_vbge_forward.3} parent=1 // pred_check_branch
      %69 = sbr.rel (0) target = $region41
    $region40: #{cross_vbge_forward.3} parent=1 // pred_region
      _
    $region41: #{cross_vbge_forward.3} parent=1 // pred_fallthru
      _
    // Predicated region
    $region42: #{cross_vbge_forward.3} parent=1 // pred_check
      _
    $region43: #{cross_vbge_forward.3} parent=1 // pred_check_branch
      %71 = sbr.rel (0) target = $region45
    $region44: #{cross_vbge_forward.3} parent=1 // pred_region
      _
    $region45: #{cross_vbge_forward.3} parent=1 // pred_fallthru
      _
    // Predicated region
    $region46: #{cross_vbge_forward.3} parent=1 // pred_check
      _
    $region47: #{cross_vbge_forward.3} parent=1 // pred_check_branch
      %73 = sbr.rel (0) target = $region49
    $region48: #{cross_vbge_forward.3} parent=1 // pred_region
      _
    $region49: #{cross_vbge_forward.3} parent=1 // pred_fallthru
      _
    // Predicated region
    $region50: #{cross_vbge_forward.3} parent=1 // pred_check
      _
    $region51: #{cross_vbge_forward.3} parent=1 // pred_check_branch
      %75 = sbr.rel (0) target = $region53
    $region52: #{cross_vbge_forward.3} parent=1 // pred_region
      _
    $region53: #{cross_vbge_forward.3} parent=1 // pred_fallthru
      _
    // Predicated region
    $region54: #{cross_vbge_forward.3} parent=1 // pred_check
      _
    $region55: #{cross_vbge_forward.3} parent=1 // pred_check_branch
      %77 = sbr.rel (0) target = $region57
    $region56: #{cross_vbge_forward.3} parent=1 // pred_region
      %s79 = ssub.s32 16, 16
      %80 = vsyncadd [#allocation5], %s79
      %s82 = sshll.u32 [#allocation6], 4
      %s83 = int_to_ptr.vmem [resolvable:$true] %s82
      %85 = dma.hbm_to_vmem [thread:$0]  %s13, 16, %s83, [#allocation5]
    $region57: #{cross_vbge_forward.3} parent=1 // pred_fallthru
      _
    // Predicated region
    $region58: #{cross_vbge_forward.3} parent=1 // pred_check
      _
    $region59: #{cross_vbge_forward.3} parent=1 // pred_check_branch
      %87 = sbr.rel (0) target = $region61
    $region60: #{cross_vbge_forward.3} parent=1 // pred_region
      _
    $region61: #{cross_vbge_forward.3} parent=1 // pred_fallthru
      _
    // Predicated region
    $region62: #{cross_vbge_forward.3} parent=1 // pred_check
      _
    $region63: #{cross_vbge_forward.3} parent=1 // pred_check_branch
      %89 = sbr.rel (0) target = $region65
    $region64: #{cross_vbge_forward.3} parent=1 // pred_region
      %s91 = ssub.s32 512, 512
      %92 = vsyncadd [#allocation8], %s91
      %s93 = sshll.u32 [#allocation7], 4
      %s94 = int_to_ptr.vmem [resolvable:$true] %s93
      %99 = dma.hbm_to_vmem [thread:$0]  %s15, 512, %s94, [#allocation8], 128, 128, 8
    $region65: #{cross_vbge_forward.3} parent=1 // pred_fallthru
      _
    // Predicated region
    $region66: #{cross_vbge_forward.3} parent=1 // pred_check
      _
    $region67: #{cross_vbge_forward.3} parent=1 // pred_check_branch
      %101 = sbr.rel (0) target = $region69
    $region68: #{cross_vbge_forward.3} parent=1 // pred_region
      %s103 = ssub.s32 16, 16
      %104 = vsyncadd [#allocation8], %s103
      %s106 = sshll.u32 [#allocation9], 4
      %s107 = int_to_ptr.vmem [resolvable:$true] %s106
      %109 = dma.hbm_to_vmem [thread:$0]  %s16, 16, %s107, [#allocation8]
    $region69: #{cross_vbge_forward.3} parent=1 // pred_fallthru
      _
    // Predicated region
    $region70: #{cross_vbge_forward.3} parent=1 // pred_check
      _
    $region71: #{cross_vbge_forward.3} parent=1 // pred_check_branch
      %111 = sbr.rel (0) target = $region73
    $region72: #{cross_vbge_forward.3} parent=1 // pred_region
      %s113 = ssub.s32 512, 512
      %114 = vsyncadd [#allocation11], %s113
      %s115 = sshll.u32 [#allocation10], 4
      %s116 = int_to_ptr.vmem [resolvable:$true] %s115
      %121 = dma.hbm_to_vmem [thread:$0]  %s17, 512, %s116, [#allocation11], 128, 128, 8
    $region73: #{cross_vbge_forward.3} parent=1 // pred_fallthru
      _
    // Predicated region
    $region74: #{cross_vbge_forward.3} parent=1 // pred_check
      _
    $region75: #{cross_vbge_forward.3} parent=1 // pred_check_branch
      %123 = sbr.rel (0) target = $region77
    $region76: #{cross_vbge_forward.3} parent=1 // pred_region
      %s125 = ssub.s32 512, 512
      %126 = vsyncadd [#allocation11], %s125
      %s127 = sshll.u32 [#allocation12], 4
      %s128 = int_to_ptr.vmem [resolvable:$true] %s127
      %133 = dma.hbm_to_vmem [thread:$0]  %s18, 512, %s128, [#allocation11], 128, 128, 8
    $region77: #{cross_vbge_forward.3} parent=1 // pred_fallthru
      _
    // Predicated region
    $region78: #{cross_vbge_forward.3} parent=1 // pred_check
      _
    $region79: #{cross_vbge_forward.3} parent=1 // pred_check_branch
      %135 = sbr.rel (0) target = $region81
    $region80: #{cross_vbge_forward.3} parent=1 // pred_region
      %s137 = ssub.s32 16, 16
      %138 = vsyncadd [#allocation14], %s137
      %s140 = sshll.u32 [#allocation13], 4
      %s141 = int_to_ptr.vmem [resolvable:$true] %s140
      %143 = dma.hbm_to_vmem [thread:$0]  %s19, 16, %s141, [#allocation14]
    $region81: #{cross_vbge_forward.3} parent=1 // pred_fallthru
      _
    // Predicated region
    $region82: #{cross_vbge_forward.3} parent=1 // pred_check
      _
    $region83: #{cross_vbge_forward.3} parent=1 // pred_check_branch
      %145 = sbr.rel (0) target = $region85
    $region84: #{cross_vbge_forward.3} parent=1 // pred_region
      _
    $region85: #{cross_vbge_forward.3} parent=1 // pred_fallthru
      _
    // Predicated region
    $region86: #{cross_vbge_forward.3} parent=1 // pred_check
      _
    $region87: #{cross_vbge_forward.3} parent=1 // pred_check_branch
      %147 = sbr.rel (0) target = $region89
    $region88: #{cross_vbge_forward.3} parent=1 // pred_region
      _
    $region89: #{cross_vbge_forward.3} parent=1 // pred_fallthru
      _
    // Predicated region
    $region90: #{cross_vbge_forward.3} parent=1 // pred_check
      _
    $region91: #{cross_vbge_forward.3} parent=1 // pred_check_branch
      %149 = sbr.rel (0) target = $region93
    $region92: #{cross_vbge_forward.3} parent=1 // pred_region
      %150 = dma.done [#allocation3], 128
    $region93: #{cross_vbge_forward.3} parent=1 // pred_fallthru
      _
    // Predicated region
    $region94: #{cross_vbge_forward.3} parent=1 // pred_check
      _
    $region95: #{cross_vbge_forward.3} parent=1 // pred_check_branch
      %152 = sbr.rel (0) target = $region97
    $region96: #{cross_vbge_forward.3} parent=1 // pred_region
      %153 = dma.done [#allocation5], 128
    $region97: #{cross_vbge_forward.3} parent=1 // pred_fallthru
      _
    // Predicated region
    $region98: #{cross_vbge_forward.3} parent=1 // pred_check
      _
    $region99: #{cross_vbge_forward.3} parent=1 // pred_check_branch
      %155 = sbr.rel (0) target = $region101
    $region100: #{cross_vbge_forward.3} parent=1 // pred_region
      %156 = dma.done [#allocation5], 16
    $region101: #{cross_vbge_forward.3} parent=1 // pred_fallthru
      _
    // Predicated region
    $region102: #{cross_vbge_forward.3} parent=1 // pred_check
      _
    $region103: #{cross_vbge_forward.3} parent=1 // pred_check_branch
      %158 = sbr.rel (0) target = $region105
    $region104: #{cross_vbge_forward.3} parent=1 // pred_region
      %159 = dma.done [#allocation8], 512
    $region105: #{cross_vbge_forward.3} parent=1 // pred_fallthru
      _
    // Predicated region
    $region106: #{cross_vbge_forward.3} parent=1 // pred_check
      _
    $region107: #{cross_vbge_forward.3} parent=1 // pred_check_branch
      %161 = sbr.rel (0) target = $region109
    $region108: #{cross_vbge_forward.3} parent=1 // pred_region
      %162 = dma.done [#allocation8], 16
    $region109: #{cross_vbge_forward.3} parent=1 // pred_fallthru
      _
    // Predicated region
    $region110: #{cross_vbge_forward.3} parent=1 // pred_check
      _
    $region111: #{cross_vbge_forward.3} parent=1 // pred_check_branch
      %164 = sbr.rel (0) target = $region113
    $region112: #{cross_vbge_forward.3} parent=1 // pred_region
      %165 = dma.done [#allocation11], 512
    $region113: #{cross_vbge_forward.3} parent=1 // pred_fallthru
      _
    // Predicated region
    $region114: #{cross_vbge_forward.3} parent=1 // pred_check
      _
    $region115: #{cross_vbge_forward.3} parent=1 // pred_check_branch
      %167 = sbr.rel (0) target = $region117
    $region116: #{cross_vbge_forward.3} parent=1 // pred_region
      %168 = dma.done [#allocation11], 512
    $region117: #{cross_vbge_forward.3} parent=1 // pred_fallthru
      _
    // Predicated region
    $region118: #{cross_vbge_forward.3} parent=1 // pred_check
      _
    $region119: #{cross_vbge_forward.3} parent=1 // pred_check_branch
      %170 = sbr.rel (0) target = $region121
    $region120: #{cross_vbge_forward.3} parent=1 // pred_region
      %171 = dma.done [#allocation14], 16
    $region121: #{cross_vbge_forward.3} parent=1 // pred_fallthru
      _
    %v173 = vld [vmem:[#allocation2] sm:$0xff]
    %v174 = vld [vmem:[#allocation4] sm:$0xff]
    %v175 = vld [vmem:[%s3] sm:$0xff]
    %v176 = vld [vmem:[%s3 + $0x8] sm:$0x3]
    %v177 = vld [vmem:[%s6] sm:$0xff]
    %v178 = vld [vmem:[%s6 + $0x8] sm:$0xff]
    %v179 = vld [vmem:[%s6 + $0x10] sm:$0xff]
    %v180 = vld [vmem:[%s6 + $0x18] sm:$0xff]
    %v181 = vld [vmem:[%s7] sm:$0x1]
    %v182 = vpack.c.bf16 %v173, %v173
    %v183 = vpack.c.bf16 %v178, %v177
    %v184 = vpack.c.bf16 %v180, %v179
    %vm185 = vcmask 261120
    %v187 = vsel %vm185, %v182, 0
    %189 = vmatprep.subr.bf16.mxu0 0
    %190 = vmatpush1.bf16.msra.mxu0 %v183
    %191 = vmatprep.subr.bf16.mxu0 0
    %192 = vmatpush1.bf16.msra.mxu0 %v184
    %193 = vmatprep.subr.bf16.mxu0 0
    %194 = vmatpush1.bf16.msra.mxu0 0
    %195 = vmatprep.subr.bf16.mxu0 0
    %196 = vmatpush1.bf16.msra.mxu0 0
    %197 = vmatprep.subr.bf16.mxu0 0
    %198 = vmatpush1.bf16.msra.mxu0 0
    %199 = vmatprep.subr.bf16.mxu0 0
    %200 = vmatpush1.bf16.msra.mxu0 0
    %201 = vmatprep.subr.bf16.mxu0 0
    %202 = vmatpush1.bf16.msra.mxu0 0
    %203 = vmatprep.subr.bf16.mxu0 0
    %204 = vmatpush1.bf16.msra.mxu0 0
    %205 = vmatprep.subr.bf16.mxu0 0
    %206 = vmatpush1.bf16.msra.mxu0 0
    %207 = vmatprep.subr.bf16.mxu0 0
    %208 = vmatpush1.bf16.msra.mxu0 0
    %209 = vmatprep.subr.bf16.mxu0 0
    %210 = vmatpush1.bf16.msra.mxu0 0
    %211 = vmatprep.subr.bf16.mxu0 0
    %212 = vmatpush1.bf16.msra.mxu0 0
    %213 = vmatprep.subr.bf16.mxu0 0
    %214 = vmatpush1.bf16.msra.mxu0 0
    %215 = vmatprep.subr.bf16.mxu0 0
    %216 = vmatpush1.bf16.msra.mxu0 0
    %217 = vmatprep.subr.bf16.mxu0 0
    %218 = vmatpush1.bf16.msra.mxu0 0
    %219 = vmatprep.subr.bf16.mxu0 0
    %220 = vmatpush1.bf16.msra.mxu0 0
    %221 = vmatprep.mubr.bf16.mxu0 0
    %222 = vmatmul.mubr.bf16.gmra.mrb[0].mxu0 %v187
    %v223 = vpop.f32.mrb[0].mxu0
    %v224 = vadd.f32 0.0, %v223
    %v225 = vpop.f32.mrb[0].mxu0
    %v226 = vpop.f32.mrb[0].mxu0
    %v227 = vpop.f32.mrb[0].mxu0
    %228 = vdwg.mxu0
    %v229 = vpack.c.bf16 %v176, %v175
    %v230 = vpack.c.bf16 %v224, %v224
    %v232 = vlaneseq
    %v233 = vshrl.u32 %v232, 7
    %v234 = vsub.s32 0, %v233
    %v235 = vrot.slane %v181, %v234
    %vm237 = vcmask 64512
    %v239 = vsel %vm237, %v229, 0
    %vm241 = vcmask 1043456
    %v243 = vsel %vm241, %v230, 0
    %245 = vmatprep.subr.bf16.mxu0 0
    %246 = vmatpush1.bf16.msra.mxu0 %v243
    %247 = vmatprep.subr.bf16.mxu0 0
    %248 = vmatpush1.bf16.msra.mxu0 0
    %249 = vmatprep.subr.bf16.mxu0 0
    %250 = vmatpush1.bf16.msra.mxu0 0
    %251 = vmatprep.subr.bf16.mxu0 0
    %252 = vmatpush1.bf16.msra.mxu0 0
    %253 = vmatprep.subr.bf16.mxu0 0
    %254 = vmatpush1.bf16.msra.mxu0 0
    %255 = vmatprep.subr.bf16.mxu0 0
    %256 = vmatpush1.bf16.msra.mxu0 0
    %257 = vmatprep.subr.bf16.mxu0 0
    %258 = vmatpush1.bf16.msra.mxu0 0
    %259 = vmatprep.subr.bf16.mxu0 0
    %260 = vmatpush1.bf16.msra.mxu0 0
    %261 = vmatprep.subr.bf16.mxu0 0
    %262 = vmatpush1.bf16.msra.mxu0 0
    %263 = vmatprep.subr.bf16.mxu0 0
    %264 = vmatpush1.bf16.msra.mxu0 0
    %265 = vmatprep.subr.bf16.mxu0 0
    %266 = vmatpush1.bf16.msra.mxu0 0
    %267 = vmatprep.subr.bf16.mxu0 0
    %268 = vmatpush1.bf16.msra.mxu0 0
    %269 = vmatprep.subr.bf16.mxu0 0
    %270 = vmatpush1.bf16.msra.mxu0 0
    %271 = vmatprep.subr.bf16.mxu0 0
    %272 = vmatpush1.bf16.msra.mxu0 0
    %273 = vmatprep.subr.bf16.mxu0 0
    %274 = vmatpush1.bf16.msra.mxu0 0
    %275 = vmatprep.subr.bf16.mxu0 0
    %276 = vmatpush1.bf16.msra.mxu0 0
    %277 = vmatprep.mubr.bf16.mxu0 0
    %278 = vmatmul.mubr.bf16.gmra.mrb[0].mxu0 %v239
    %v279 = vpop.f32.mrb[0].mxu0
    %v280 = vadd.f32 %v235, %v279
    %v281 = vpop.f32.mrb[0].mxu0
    %v282 = vpop.f32.mrb[0].mxu0
    %v283 = vadd.f32 %v235, %v282
    %v284 = vpop.f32.mrb[0].mxu0
    %285 = vdwg.mxu0
    %vm286 = vcmp.ge.f32.partialorder %v280, 0.0
    %vm287 = vcmp.ge.f32.partialorder %v283, 0.0
    %v288 = vmul.f32 %v280, 0.2
    %v289 = vmul.f32 %v283, 0.2
    %v290 = vsel %vm286, %v280, %v288
    %v291 = vsel %vm287, %v283, %v289
    %v292 = vld [vmem:[%s2] sm:$0xff]
    %v293 = vld [vmem:[%s10] sm:$0xff]
    %v294 = vld [vmem:[%s10 + $0x8] sm:$0xff]
    %v295 = vld [vmem:[%s10 + $0x10] sm:$0xff]
    %v296 = vld [vmem:[%s10 + $0x18] sm:$0xff]
    %v297 = vld [vmem:[%s11] sm:$0x1]
    %v298 = vpack.c.bf16 %v291, %v290
    %v299 = vpack.c.bf16 %v294, %v293
    %v300 = vpack.c.bf16 %v296, %v295
    %v302 = vsel %vm185, %v298, 0
    %304 = vmatprep.subr.bf16.mxu0 0
    %305 = vmatpush1.bf16.msra.mxu0 %v299
    %306 = vmatprep.subr.bf16.mxu0 0
    %307 = vmatpush1.bf16.msra.mxu0 %v300
    %308 = vmatprep.subr.bf16.mxu0 0
    %309 = vmatpush1.bf16.msra.mxu0 0
    %310 = vmatprep.subr.bf16.mxu0 0
    %311 = vmatpush1.bf16.msra.mxu0 0
    %312 = vmatprep.subr.bf16.mxu0 0
    %313 = vmatpush1.bf16.msra.mxu0 0
    %314 = vmatprep.subr.bf16.mxu0 0
    %315 = vmatpush1.bf16.msra.mxu0 0
    %316 = vmatprep.subr.bf16.mxu0 0
    %317 = vmatpush1.bf16.msra.mxu0 0
    %318 = vmatprep.subr.bf16.mxu0 0
    %319 = vmatpush1.bf16.msra.mxu0 0
    %320 = vmatprep.subr.bf16.mxu0 0
    %321 = vmatpush1.bf16.msra.mxu0 0
    %322 = vmatprep.subr.bf16.mxu0 0
    %323 = vmatpush1.bf16.msra.mxu0 0
    %324 = vmatprep.subr.bf16.mxu0 0
    %325 = vmatpush1.bf16.msra.mxu0 0
    %326 = vmatprep.subr.bf16.mxu0 0
    %327 = vmatpush1.bf16.msra.mxu0 0
    %328 = vmatprep.subr.bf16.mxu0 0
    %329 = vmatpush1.bf16.msra.mxu0 0
    %330 = vmatprep.subr.bf16.mxu0 0
    %331 = vmatpush1.bf16.msra.mxu0 0
    %332 = vmatprep.subr.bf16.mxu0 0
    %333 = vmatpush1.bf16.msra.mxu0 0
    %334 = vmatprep.subr.bf16.mxu0 0
    %335 = vmatpush1.bf16.msra.mxu0 0
    %336 = vmatprep.mubr.bf16.mxu0 0
    %337 = vmatmul.mubr.bf16.gmra.mrb[0].mxu0 %v302
    %v338 = vpop.f32.mrb[0].mxu0
    %v339 = vadd.f32 0.0, %v338
    %v340 = vpop.f32.mrb[0].mxu0
    %v341 = vpop.f32.mrb[0].mxu0
    %v342 = vadd.f32 0.0, %v341
    %v343 = vpop.f32.mrb[0].mxu0
    %344 = vdwg.mxu0
    %v345 = vpack.c.bf16 %v292, %v292
    %v346 = vpack.c.bf16 %v342, %v339
    %v348 = vlaneseq
    %v349 = vshrl.u32 %v348, 7
    %v350 = vsub.s32 0, %v349
    %v351 = vrot.slane %v297, %v350
    %vm353 = vcmask 80896
    %v355 = vsel %vm353, %v345, 0
    %vm357 = vcmask 1044480
    %v359 = vsel %vm357, %v346, 0
    %361 = vmatprep.subr.bf16.mxu0 0
    %362 = vmatpush1.bf16.msra.mxu0 %v359
    %363 = vmatprep.subr.bf16.mxu0 0
    %364 = vmatpush1.bf16.msra.mxu0 0
    %365 = vmatprep.subr.bf16.mxu0 0
    %366 = vmatpush1.bf16.msra.mxu0 0
    %367 = vmatprep.subr.bf16.mxu0 0
    %368 = vmatpush1.bf16.msra.mxu0 0
    %369 = vmatprep.subr.bf16.mxu0 0
    %370 = vmatpush1.bf16.msra.mxu0 0
    %371 = vmatprep.subr.bf16.mxu0 0
    %372 = vmatpush1.bf16.msra.mxu0 0
    %373 = vmatprep.subr.bf16.mxu0 0
    %374 = vmatpush1.bf16.msra.mxu0 0
    %375 = vmatprep.subr.bf16.mxu0 0
    %376 = vmatpush1.bf16.msra.mxu0 0
    %377 = vmatprep.subr.bf16.mxu0 0
    %378 = vmatpush1.bf16.msra.mxu0 0
    %379 = vmatprep.subr.bf16.mxu0 0
    %380 = vmatpush1.bf16.msra.mxu0 0
    %381 = vmatprep.subr.bf16.mxu0 0
    %382 = vmatpush1.bf16.msra.mxu0 0
    %383 = vmatprep.subr.bf16.mxu0 0
    %384 = vmatpush1.bf16.msra.mxu0 0
    %385 = vmatprep.subr.bf16.mxu0 0
    %386 = vmatpush1.bf16.msra.mxu0 0
    %387 = vmatprep.subr.bf16.mxu0 0
    %388 = vmatpush1.bf16.msra.mxu0 0
    %389 = vmatprep.subr.bf16.mxu0 0
    %390 = vmatpush1.bf16.msra.mxu0 0
    %391 = vmatprep.subr.bf16.mxu0 0
    %392 = vmatpush1.bf16.msra.mxu0 0
    %393 = vmatprep.mubr.bf16.mxu0 0
    %394 = vmatmul.mubr.bf16.gmra.mrb[0].mxu0 %v355
    %v395 = vpop.f32.mrb[0].mxu0
    %v396 = vadd.f32 %v351, %v395
    %v397 = vpop.f32.mrb[0].mxu0
    %v398 = vpop.f32.mrb[0].mxu0
    %v399 = vpop.f32.mrb[0].mxu0
    %400 = vdwg.mxu0
    %vm401 = vcmp.ge.f32.partialorder %v396, 0.0
    %v402 = vmul.f32 %v396, 0.2
    %v403 = vsel %vm401, %v396, %v402
    %v404 = vld [vmem:[%s5] sm:$0xff]
    %v405 = vld [vmem:[%s5 + $0x8] sm:$0xf]
    %v406 = vld [vmem:[%s8] sm:$0xff]
    %v407 = vld [vmem:[%s8 + $0x8] sm:$0xff]
    %v408 = vld [vmem:[%s8 + $0x10] sm:$0xff]
    %v409 = vld [vmem:[%s8 + $0x18] sm:$0xff]
    %v410 = vld [vmem:[%s9] sm:$0x1]
    %v411 = vpack.c.bf16 %v174, %v174
    %v412 = vpack.c.bf16 %v407, %v406
    %v413 = vpack.c.bf16 %v409, %v408
    %v415 = vsel %vm185, %v411, 0
    %417 = vmatprep.subr.bf16.mxu0 0
    %418 = vmatpush1.bf16.msra.mxu0 %v412
    %419 = vmatprep.subr.bf16.mxu0 0
    %420 = vmatpush1.bf16.msra.mxu0 %v413
    %421 = vmatprep.subr.bf16.mxu0 0
    %422 = vmatpush1.bf16.msra.mxu0 0
    %423 = vmatprep.subr.bf16.mxu0 0
    %424 = vmatpush1.bf16.msra.mxu0 0
    %425 = vmatprep.subr.bf16.mxu0 0
    %426 = vmatpush1.bf16.msra.mxu0 0
    %427 = vmatprep.subr.bf16.mxu0 0
    %428 = vmatpush1.bf16.msra.mxu0 0
    %429 = vmatprep.subr.bf16.mxu0 0
    %430 = vmatpush1.bf16.msra.mxu0 0
    %431 = vmatprep.subr.bf16.mxu0 0
    %432 = vmatpush1.bf16.msra.mxu0 0
    %433 = vmatprep.subr.bf16.mxu0 0
    %434 = vmatpush1.bf16.msra.mxu0 0
    %435 = vmatprep.subr.bf16.mxu0 0
    %436 = vmatpush1.bf16.msra.mxu0 0
    %437 = vmatprep.subr.bf16.mxu0 0
    %438 = vmatpush1.bf16.msra.mxu0 0
    %439 = vmatprep.subr.bf16.mxu0 0
    %440 = vmatpush1.bf16.msra.mxu0 0
    %441 = vmatprep.subr.bf16.mxu0 0
    %442 = vmatpush1.bf16.msra.mxu0 0
    %443 = vmatprep.subr.bf16.mxu0 0
    %444 = vmatpush1.bf16.msra.mxu0 0
    %445 = vmatprep.subr.bf16.mxu0 0
    %446 = vmatpush1.bf16.msra.mxu0 0
    %447 = vmatprep.subr.bf16.mxu0 0
    %448 = vmatpush1.bf16.msra.mxu0 0
    %449 = vmatprep.mubr.bf16.mxu0 0
    %450 = vmatmul.mubr.bf16.gmra.mrb[0].mxu0 %v415
    %v451 = vpop.f32.mrb[0].mxu0
    %v452 = vadd.f32 0.0, %v451
    %v453 = vpop.f32.mrb[0].mxu0
    %v454 = vpop.f32.mrb[0].mxu0
    %v455 = vpop.f32.mrb[0].mxu0
    %456 = vdwg.mxu0
    %v457 = vpack.c.bf16 %v405, %v404
    %v458 = vpack.c.bf16 %v452, %v452
    %v460 = vlaneseq
    %v461 = vshrl.u32 %v460, 7
    %v462 = vsub.s32 0, %v461
    %v463 = vrot.slane %v410, %v462
    %v466 = vsel %vm237, %v457, 0
    %v469 = vsel %vm241, %v458, 0
    %471 = vmatprep.subr.bf16.mxu0 0
    %472 = vmatpush1.bf16.msra.mxu0 %v469
    %473 = vmatprep.subr.bf16.mxu0 0
    %474 = vmatpush1.bf16.msra.mxu0 0
    %475 = vmatprep.subr.bf16.mxu0 0
    %476 = vmatpush1.bf16.msra.mxu0 0
    %477 = vmatprep.subr.bf16.mxu0 0
    %478 = vmatpush1.bf16.msra.mxu0 0
    %479 = vmatprep.subr.bf16.mxu0 0
    %480 = vmatpush1.bf16.msra.mxu0 0
    %481 = vmatprep.subr.bf16.mxu0 0
    %482 = vmatpush1.bf16.msra.mxu0 0
    %483 = vmatprep.subr.bf16.mxu0 0
    %484 = vmatpush1.bf16.msra.mxu0 0
    %485 = vmatprep.subr.bf16.mxu0 0
    %486 = vmatpush1.bf16.msra.mxu0 0
    %487 = vmatprep.subr.bf16.mxu0 0
    %488 = vmatpush1.bf16.msra.mxu0 0
    %489 = vmatprep.subr.bf16.mxu0 0
    %490 = vmatpush1.bf16.msra.mxu0 0
    %491 = vmatprep.subr.bf16.mxu0 0
    %492 = vmatpush1.bf16.msra.mxu0 0
    %493 = vmatprep.subr.bf16.mxu0 0
    %494 = vmatpush1.bf16.msra.mxu0 0
    %495 = vmatprep.subr.bf16.mxu0 0
    %496 = vmatpush1.bf16.msra.mxu0 0
    %497 = vmatprep.subr.bf16.mxu0 0
    %498 = vmatpush1.bf16.msra.mxu0 0
    %499 = vmatprep.subr.bf16.mxu0 0
    %500 = vmatpush1.bf16.msra.mxu0 0
    %501 = vmatprep.subr.bf16.mxu0 0
    %502 = vmatpush1.bf16.msra.mxu0 0
    %503 = vmatprep.mubr.bf16.mxu0 0
    %504 = vmatmul.mubr.bf16.gmra.mrb[0].mxu0 %v466
    %v505 = vpop.f32.mrb[0].mxu0
    %v506 = vadd.f32 %v463, %v505
    %v507 = vpop.f32.mrb[0].mxu0
    %v508 = vpop.f32.mrb[0].mxu0
    %v509 = vadd.f32 %v463, %v508
    %v510 = vpop.f32.mrb[0].mxu0
    %511 = vdwg.mxu0
    %vm512 = vcmp.ge.f32.partialorder %v506, 0.0
    %vm513 = vcmp.ge.f32.partialorder %v509, 0.0
    %v514 = vmul.f32 %v506, 0.2
    %v515 = vmul.f32 %v509, 0.2
    %v516 = vsel %vm512, %v506, %v514
    %v517 = vsel %vm513, %v509, %v515
    %v518 = vld [vmem:[%s4] sm:$0xff]
    %v519 = vld [vmem:[%s12] sm:$0xff]
    %v520 = vld [vmem:[%s12 + $0x8] sm:$0xff]
    %v521 = vld [vmem:[%s12 + $0x10] sm:$0xff]
    %v522 = vld [vmem:[%s12 + $0x18] sm:$0xff]
    %v523 = vld [vmem:[#allocation6] sm:$0x1]
    %v524 = vpack.c.bf16 %v517, %v516
    %v525 = vpack.c.bf16 %v520, %v519
    %v526 = vpack.c.bf16 %v522, %v521
    %v528 = vsel %vm185, %v524, 0
    %530 = vmatprep.subr.bf16.mxu0 0
    %531 = vmatpush1.bf16.msra.mxu0 %v525
    %532 = vmatprep.subr.bf16.mxu0 0
    %533 = vmatpush1.bf16.msra.mxu0 %v526
    %534 = vmatprep.subr.bf16.mxu0 0
    %535 = vmatpush1.bf16.msra.mxu0 0
    %536 = vmatprep.subr.bf16.mxu0 0
    %537 = vmatpush1.bf16.msra.mxu0 0
    %538 = vmatprep.subr.bf16.mxu0 0
    %539 = vmatpush1.bf16.msra.mxu0 0
    %540 = vmatprep.subr.bf16.mxu0 0
    %541 = vmatpush1.bf16.msra.mxu0 0
    %542 = vmatprep.subr.bf16.mxu0 0
    %543 = vmatpush1.bf16.msra.mxu0 0
    %544 = vmatprep.subr.bf16.mxu0 0
    %545 = vmatpush1.bf16.msra.mxu0 0
    %546 = vmatprep.subr.bf16.mxu0 0
    %547 = vmatpush1.bf16.msra.mxu0 0
    %548 = vmatprep.subr.bf16.mxu0 0
    %549 = vmatpush1.bf16.msra.mxu0 0
    %550 = vmatprep.subr.bf16.mxu0 0
    %551 = vmatpush1.bf16.msra.mxu0 0
    %552 = vmatprep.subr.bf16.mxu0 0
    %553 = vmatpush1.bf16.msra.mxu0 0
    %554 = vmatprep.subr.bf16.mxu0 0
    %555 = vmatpush1.bf16.msra.mxu0 0
    %556 = vmatprep.subr.bf16.mxu0 0
    %557 = vmatpush1.bf16.msra.mxu0 0
    %558 = vmatprep.subr.bf16.mxu0 0
    %559 = vmatpush1.bf16.msra.mxu0 0
    %560 = vmatprep.subr.bf16.mxu0 0
    %561 = vmatpush1.bf16.msra.mxu0 0
    %562 = vmatprep.mubr.bf16.mxu0 0
    %563 = vmatmul.mubr.bf16.gmra.mrb[0].mxu0 %v528
    %v564 = vpop.f32.mrb[0].mxu0
    %v565 = vadd.f32 0.0, %v564
    %v566 = vpop.f32.mrb[0].mxu0
    %v567 = vpop.f32.mrb[0].mxu0
    %v568 = vadd.f32 0.0, %v567
    %v569 = vpop.f32.mrb[0].mxu0
    %570 = vdwg.mxu0
    %v571 = vpack.c.bf16 %v518, %v518
    %v572 = vpack.c.bf16 %v568, %v565
    %v574 = vlaneseq
    %v575 = vshrl.u32 %v574, 7
    %v576 = vsub.s32 0, %v575
    %v577 = vrot.slane %v523, %v576
    %vm579 = vcmask 97280
    %v581 = vsel %vm579, %v571, 0
    %vm583 = vcmask 1045504
    %v585 = vsel %vm583, %v572, 0
    %587 = vmatprep.subr.bf16.mxu0 0
    %588 = vmatpush1.bf16.msra.mxu0 %v585
    %589 = vmatprep.subr.bf16.mxu0 0
    %590 = vmatpush1.bf16.msra.mxu0 0
    %591 = vmatprep.subr.bf16.mxu0 0
    %592 = vmatpush1.bf16.msra.mxu0 0
    %593 = vmatprep.subr.bf16.mxu0 0
    %594 = vmatpush1.bf16.msra.mxu0 0
    %595 = vmatprep.subr.bf16.mxu0 0
    %596 = vmatpush1.bf16.msra.mxu0 0
    %597 = vmatprep.subr.bf16.mxu0 0
    %598 = vmatpush1.bf16.msra.mxu0 0
    %599 = vmatprep.subr.bf16.mxu0 0
    %600 = vmatpush1.bf16.msra.mxu0 0
    %601 = vmatprep.subr.bf16.mxu0 0
    %602 = vmatpush1.bf16.msra.mxu0 0
    %603 = vmatprep.subr.bf16.mxu0 0
    %604 = vmatpush1.bf16.msra.mxu0 0
    %605 = vmatprep.subr.bf16.mxu0 0
    %606 = vmatpush1.bf16.msra.mxu0 0
    %607 = vmatprep.subr.bf16.mxu0 0
    %608 = vmatpush1.bf16.msra.mxu0 0
    %609 = vmatprep.subr.bf16.mxu0 0
    %610 = vmatpush1.bf16.msra.mxu0 0
    %611 = vmatprep.subr.bf16.mxu0 0
    %612 = vmatpush1.bf16.msra.mxu0 0
    %613 = vmatprep.subr.bf16.mxu0 0
    %614 = vmatpush1.bf16.msra.mxu0 0
    %615 = vmatprep.subr.bf16.mxu0 0
    %616 = vmatpush1.bf16.msra.mxu0 0
    %617 = vmatprep.subr.bf16.mxu0 0
    %618 = vmatpush1.bf16.msra.mxu0 0
    %619 = vmatprep.mubr.bf16.mxu0 0
    %620 = vmatmul.mubr.bf16.gmra.mrb[0].mxu0 %v581
    %v621 = vpop.f32.mrb[0].mxu0
    %v622 = vadd.f32 %v577, %v621
    %v623 = vpop.f32.mrb[0].mxu0
    %v624 = vpop.f32.mrb[0].mxu0
    %v625 = vpop.f32.mrb[0].mxu0
    %626 = vdwg.mxu0
    %vm627 = vcmp.ge.f32.partialorder %v622, 0.0
    %v628 = vmul.f32 %v622, 0.2
    %v629 = vsel %vm627, %v622, %v628
    %v630 = vld [vmem:[%s14] sm:$0xff]
    %v631 = vld [vmem:[%s14 + $0x8] sm:$0xff]
    %v632 = vld [vmem:[%s14 + $0x10] sm:$0xff]
    %v633 = vld [vmem:[%s14 + $0x18] sm:$0xff]
    %v634 = vpack.c.bf16 %v403, %v403
    %v635 = vpack.c.bf16 %v631, %v630
    %v636 = vpack.c.bf16 %v633, %v632
    %v637 = vld [vmem:[#allocation7] sm:$0xff]
    %v638 = vld [vmem:[#allocation7 + $0x8] sm:$0xff]
    %v639 = vld [vmem:[#allocation7 + $0x10] sm:$0xff]
    %v640 = vld [vmem:[#allocation7 + $0x18] sm:$0xff]
    %v641 = vpack.c.bf16 %v638, %v637
    %v642 = vpack.c.bf16 %v640, %v639
    %643 = vmatprep.subr.bf16.mxu0 0
    %644 = vmatpush1.bf16.msra.mxu0 %v641
    %645 = vmatprep.subr.bf16.mxu0 0
    %646 = vmatpush1.bf16.msra.mxu0 %v642
    %647 = vmatprep.subr.bf16.mxu0 0
    %648 = vmatpush1.bf16.msra.mxu0 0
    %649 = vmatprep.subr.bf16.mxu0 0
    %650 = vmatpush1.bf16.msra.mxu0 0
    %651 = vmatprep.subr.bf16.mxu0 0
    %652 = vmatpush1.bf16.msra.mxu0 0
    %653 = vmatprep.subr.bf16.mxu0 0
    %654 = vmatpush1.bf16.msra.mxu0 0
    %655 = vmatprep.subr.bf16.mxu0 0
    %656 = vmatpush1.bf16.msra.mxu0 0
    %657 = vmatprep.subr.bf16.mxu0 0
    %658 = vmatpush1.bf16.msra.mxu0 0
    %659 = vmatprep.subr.bf16.mxu0 0
    %660 = vmatpush1.bf16.msra.mxu0 0
    %661 = vmatprep.subr.bf16.mxu0 0
    %662 = vmatpush1.bf16.msra.mxu0 0
    %663 = vmatprep.subr.bf16.mxu0 0
    %664 = vmatpush1.bf16.msra.mxu0 0
    %665 = vmatprep.subr.bf16.mxu0 0
    %666 = vmatpush1.bf16.msra.mxu0 0
    %667 = vmatprep.subr.bf16.mxu0 0
    %668 = vmatpush1.bf16.msra.mxu0 0
    %669 = vmatprep.subr.bf16.mxu0 0
    %670 = vmatpush1.bf16.msra.mxu0 0
    %671 = vmatprep.subr.bf16.mxu0 0
    %672 = vmatpush1.bf16.msra.mxu0 0
    %673 = vmatprep.subr.bf16.mxu0 0
    %674 = vmatpush1.bf16.msra.mxu0 0
    %675 = vmatprep.mubr.bf16.mxu0 0
    %676 = vmatmul.mubr.bf16.gmra.mrb[0].mxu0 %v187
    %v677 = vpop.f32.mrb[0].mxu0
    %v678 = vadd.f32 0.0, %v677
    %v679 = vpop.f32.mrb[0].mxu0
    %v680 = vpop.f32.mrb[0].mxu0
    %v681 = vpop.f32.mrb[0].mxu0
    %682 = vdwg.mxu0
    %v684 = vsel %vm185, %v634, 0
    %686 = vmatprep.subr.bf16.mxu0 0
    %687 = vmatpush1.bf16.msra.mxu0 %v635
    %688 = vmatprep.subr.bf16.mxu0 0
    %689 = vmatpush1.bf16.msra.mxu0 %v636
    %690 = vmatprep.subr.bf16.mxu0 0
    %691 = vmatpush1.bf16.msra.mxu0 0
    %692 = vmatprep.subr.bf16.mxu0 0
    %693 = vmatpush1.bf16.msra.mxu0 0
    %694 = vmatprep.subr.bf16.mxu0 0
    %695 = vmatpush1.bf16.msra.mxu0 0
    %696 = vmatprep.subr.bf16.mxu0 0
    %697 = vmatpush1.bf16.msra.mxu0 0
    %698 = vmatprep.subr.bf16.mxu0 0
    %699 = vmatpush1.bf16.msra.mxu0 0
    %700 = vmatprep.subr.bf16.mxu0 0
    %701 = vmatpush1.bf16.msra.mxu0 0
    %702 = vmatprep.subr.bf16.mxu0 0
    %703 = vmatpush1.bf16.msra.mxu0 0
    %704 = vmatprep.subr.bf16.mxu0 0
    %705 = vmatpush1.bf16.msra.mxu0 0
    %706 = vmatprep.subr.bf16.mxu0 0
    %707 = vmatpush1.bf16.msra.mxu0 0
    %708 = vmatprep.subr.bf16.mxu0 0
    %709 = vmatpush1.bf16.msra.mxu0 0
    %710 = vmatprep.subr.bf16.mxu0 0
    %711 = vmatpush1.bf16.msra.mxu0 0
    %712 = vmatprep.subr.bf16.mxu0 0
    %713 = vmatpush1.bf16.msra.mxu0 0
    %714 = vmatprep.subr.bf16.mxu0 0
    %715 = vmatpush1.bf16.msra.mxu0 0
    %716 = vmatprep.subr.bf16.mxu0 0
    %717 = vmatpush1.bf16.msra.mxu0 0
    %718 = vmatprep.mubr.bf16.mxu0 0
    %719 = vmatmul.mubr.bf16.gmra.mrb[0].mxu0 %v684
    %v720 = vpop.f32.mrb[0].mxu0
    %v721 = vadd.f32 %v678, %v720
    %v722 = vpop.f32.mrb[0].mxu0
    %v723 = vpop.f32.mrb[0].mxu0
    %v724 = vpop.f32.mrb[0].mxu0
    %725 = vdwg.mxu0
    %v726 = vld [vmem:[#allocation9] sm:$0x1]
    %v728 = vlaneseq
    %v729 = vshrl.u32 %v728, 7
    %v730 = vsub.s32 0, %v729
    %v731 = vrot.slane %v726, %v730
    %v733 = vadd.f32 %v721, %v731
    %v734 = vld [vmem:[#allocation10] sm:$0xff]
    %v735 = vld [vmem:[#allocation10 + $0x8] sm:$0xff]
    %v736 = vld [vmem:[#allocation10 + $0x10] sm:$0xff]
    %v737 = vld [vmem:[#allocation10 + $0x18] sm:$0xff]
    %v738 = vpack.c.bf16 %v629, %v629
    %v739 = vpack.c.bf16 %v735, %v734
    %v740 = vpack.c.bf16 %v737, %v736
    %v741 = vld [vmem:[#allocation12] sm:$0xff]
    %v742 = vld [vmem:[#allocation12 + $0x8] sm:$0xff]
    %v743 = vld [vmem:[#allocation12 + $0x10] sm:$0xff]
    %v744 = vld [vmem:[#allocation12 + $0x18] sm:$0xff]
    %v745 = vpack.c.bf16 %v742, %v741
    %v746 = vpack.c.bf16 %v744, %v743
    %747 = vmatprep.subr.bf16.mxu0 0
    %748 = vmatpush1.bf16.msra.mxu0 %v745
    %749 = vmatprep.subr.bf16.mxu0 0
    %750 = vmatpush1.bf16.msra.mxu0 %v746
    %751 = vmatprep.subr.bf16.mxu0 0
    %752 = vmatpush1.bf16.msra.mxu0 0
    %753 = vmatprep.subr.bf16.mxu0 0
    %754 = vmatpush1.bf16.msra.mxu0 0
    %755 = vmatprep.subr.bf16.mxu0 0
    %756 = vmatpush1.bf16.msra.mxu0 0
    %757 = vmatprep.subr.bf16.mxu0 0
    %758 = vmatpush1.bf16.msra.mxu0 0
    %759 = vmatprep.subr.bf16.mxu0 0
    %760 = vmatpush1.bf16.msra.mxu0 0
    %761 = vmatprep.subr.bf16.mxu0 0
    %762 = vmatpush1.bf16.msra.mxu0 0
    %763 = vmatprep.subr.bf16.mxu0 0
    %764 = vmatpush1.bf16.msra.mxu0 0
    %765 = vmatprep.subr.bf16.mxu0 0
    %766 = vmatpush1.bf16.msra.mxu0 0
    %767 = vmatprep.subr.bf16.mxu0 0
    %768 = vmatpush1.bf16.msra.mxu0 0
    %769 = vmatprep.subr.bf16.mxu0 0
    %770 = vmatpush1.bf16.msra.mxu0 0
    %771 = vmatprep.subr.bf16.mxu0 0
    %772 = vmatpush1.bf16.msra.mxu0 0
    %773 = vmatprep.subr.bf16.mxu0 0
    %774 = vmatpush1.bf16.msra.mxu0 0
    %775 = vmatprep.subr.bf16.mxu0 0
    %776 = vmatpush1.bf16.msra.mxu0 0
    %777 = vmatprep.subr.bf16.mxu0 0
    %778 = vmatpush1.bf16.msra.mxu0 0
    %779 = vmatprep.mubr.bf16.mxu0 0
    %780 = vmatmul.mubr.bf16.gmra.mrb[0].mxu0 %v415
    %v781 = vpop.f32.mrb[0].mxu0
    %v782 = vadd.f32 0.0, %v781
    %v783 = vpop.f32.mrb[0].mxu0
    %v784 = vpop.f32.mrb[0].mxu0
    %v785 = vpop.f32.mrb[0].mxu0
    %786 = vdwg.mxu0
    %v788 = vsel %vm185, %v738, 0
    %790 = vmatprep.subr.bf16.mxu0 0
    %791 = vmatpush1.bf16.msra.mxu0 %v739
    %792 = vmatprep.subr.bf16.mxu0 0
    %793 = vmatpush1.bf16.msra.mxu0 %v740
    %794 = vmatprep.subr.bf16.mxu0 0
    %795 = vmatpush1.bf16.msra.mxu0 0
    %796 = vmatprep.subr.bf16.mxu0 0
    %797 = vmatpush1.bf16.msra.mxu0 0
    %798 = vmatprep.subr.bf16.mxu0 0
    %799 = vmatpush1.bf16.msra.mxu0 0
    %800 = vmatprep.subr.bf16.mxu0 0
    %801 = vmatpush1.bf16.msra.mxu0 0
    %802 = vmatprep.subr.bf16.mxu0 0
    %803 = vmatpush1.bf16.msra.mxu0 0
    %804 = vmatprep.subr.bf16.mxu0 0
    %805 = vmatpush1.bf16.msra.mxu0 0
    %806 = vmatprep.subr.bf16.mxu0 0
    %807 = vmatpush1.bf16.msra.mxu0 0
    %808 = vmatprep.subr.bf16.mxu0 0
    %809 = vmatpush1.bf16.msra.mxu0 0
    %810 = vmatprep.subr.bf16.mxu0 0
    %811 = vmatpush1.bf16.msra.mxu0 0
    %812 = vmatprep.subr.bf16.mxu0 0
    %813 = vmatpush1.bf16.msra.mxu0 0
    %814 = vmatprep.subr.bf16.mxu0 0
    %815 = vmatpush1.bf16.msra.mxu0 0
    %816 = vmatprep.subr.bf16.mxu0 0
    %817 = vmatpush1.bf16.msra.mxu0 0
    %818 = vmatprep.subr.bf16.mxu0 0
    %819 = vmatpush1.bf16.msra.mxu0 0
    %820 = vmatprep.subr.bf16.mxu0 0
    %821 = vmatpush1.bf16.msra.mxu0 0
    %822 = vmatprep.mubr.bf16.mxu0 0
    %823 = vmatmul.mubr.bf16.gmra.mrb[0].mxu0 %v788
    %v824 = vpop.f32.mrb[0].mxu0
    %v825 = vadd.f32 %v782, %v824
    %v826 = vpop.f32.mrb[0].mxu0
    %v827 = vpop.f32.mrb[0].mxu0
    %v828 = vpop.f32.mrb[0].mxu0
    %829 = vdwg.mxu0
    %v830 = vld [vmem:[#allocation13] sm:$0x1]
    %v832 = vlaneseq
    %v833 = vshrl.u32 %v832, 7
    %v834 = vsub.s32 0, %v833
    %v835 = vrot.slane %v830, %v834
    %v837 = vadd.f32 %v825, %v835
    %v838 = vmax.f32 %v733, 0.0
    %v839 = vmax.f32 %v837, 0.0
    %v840 = vmul.f32 %v838, 0.7
    %v841 = vld [vmem:[%s20] sm:$0xff]
    %v843 = vsel %vm237, %v841, 0
    %845 = vmatprep.subr.mxu0 0.0
    %846 = vmatpush1.msra.mxu0 %v839
    %847 = vmatprep.subr.mxu0 0.0
    %848 = vmatpush1.msra.mxu0 0.0
    %849 = vmatprep.subr.mxu0 0.0
    %850 = vmatpush1.msra.mxu0 0.0
    %851 = vmatprep.subr.mxu0 0.0
    %852 = vmatpush1.msra.mxu0 0.0
    %853 = vmatprep.subr.mxu0 0.0
    %854 = vmatpush1.msra.mxu0 0.0
    %855 = vmatprep.subr.mxu0 0.0
    %856 = vmatpush1.msra.mxu0 0.0
    %857 = vmatprep.subr.mxu0 0.0
    %858 = vmatpush1.msra.mxu0 0.0
    %859 = vmatprep.subr.mxu0 0.0
    %860 = vmatpush1.msra.mxu0 0.0
    %861 = vmatprep.subr.mxu0 0.0
    %862 = vmatpush1.msra.mxu0 0.0
    %863 = vmatprep.subr.mxu0 0.0
    %864 = vmatpush1.msra.mxu0 0.0
    %865 = vmatprep.subr.mxu0 0.0
    %866 = vmatpush1.msra.mxu0 0.0
    %867 = vmatprep.subr.mxu0 0.0
    %868 = vmatpush1.msra.mxu0 0.0
    %869 = vmatprep.subr.mxu0 0.0
    %870 = vmatpush1.msra.mxu0 0.0
    %871 = vmatprep.subr.mxu0 0.0
    %872 = vmatpush1.msra.mxu0 0.0
    %873 = vmatprep.subr.mxu0 0.0
    %874 = vmatpush1.msra.mxu0 0.0
    %875 = vmatprep.subr.mxu0 0.0
    %876 = vmatpush1.msra.mxu0 0.0
    %877 = vmatprep.subr.mxu0 0.0
    %878 = vmatpush1.msra.mxu0 0.0
    %879 = vmatprep.subr.mxu0 0.0
    %880 = vmatpush1.msra.mxu0 0.0
    %881 = vmatprep.subr.mxu0 0.0
    %882 = vmatpush1.msra.mxu0 0.0
    %883 = vmatprep.subr.mxu0 0.0
    %884 = vmatpush1.msra.mxu0 0.0
    %885 = vmatprep.subr.mxu0 0.0
    %886 = vmatpush1.msra.mxu0 0.0
    %887 = vmatprep.subr.mxu0 0.0
    %888 = vmatpush1.msra.mxu0 0.0
    %889 = vmatprep.subr.mxu0 0.0
    %890 = vmatpush1.msra.mxu0 0.0
    %891 = vmatprep.subr.mxu0 0.0
    %892 = vmatpush1.msra.mxu0 0.0
    %893 = vmatprep.subr.mxu0 0.0
    %894 = vmatpush1.msra.mxu0 0.0
    %895 = vmatprep.subr.mxu0 0.0
    %896 = vmatpush1.msra.mxu0 0.0
    %897 = vmatprep.subr.mxu0 0.0
    %898 = vmatpush1.msra.mxu0 0.0
    %899 = vmatprep.subr.mxu0 0.0
    %900 = vmatpush1.msra.mxu0 0.0
    %901 = vmatprep.subr.mxu0 0.0
    %902 = vmatpush1.msra.mxu0 0.0
    %903 = vmatprep.subr.mxu0 0.0
    %904 = vmatpush1.msra.mxu0 0.0
    %905 = vmatprep.subr.mxu0 0.0
    %906 = vmatpush1.msra.mxu0 0.0
    %907 = vmatprep.subr.mxu0 0.0
    %908 = vmatpush1.msra.mxu0 0.0
    %909 = vmatprep.mubr.f32.mxu0 0.0
    %910 = vmatmul.mubr.f32.gmra.mrb[0].mxu0 %v843
    %v911 = vpop.f32.mrb[0].mxu0
    %v912 = vadd.f32 0.0, %v911
    %v913 = vpop.f32.mrb[0].mxu0
    %914 = vdwg.mxu0
    %v915 = vadd.f32 %v840, %v912
    %916 = vst.msk [vmem:[%s22] sm:$0xff] %vm185, %v915
    %v917 = vmul.f32 %v839, 0.3
    %v918 = vld [vmem:[%s21] sm:$0xff]
    %v920 = vsel %vm237, %v918, 0
    %922 = vmatprep.subr.mxu0 0.0
    %923 = vmatpush1.msra.mxu0 %v838
    %924 = vmatprep.subr.mxu0 0.0
    %925 = vmatpush1.msra.mxu0 0.0
    %926 = vmatprep.subr.mxu0 0.0
    %927 = vmatpush1.msra.mxu0 0.0
    %928 = vmatprep.subr.mxu0 0.0
    %929 = vmatpush1.msra.mxu0 0.0
    %930 = vmatprep.subr.mxu0 0.0
    %931 = vmatpush1.msra.mxu0 0.0
    %932 = vmatprep.subr.mxu0 0.0
    %933 = vmatpush1.msra.mxu0 0.0
    %934 = vmatprep.subr.mxu0 0.0
    %935 = vmatpush1.msra.mxu0 0.0
    %936 = vmatprep.subr.mxu0 0.0
    %937 = vmatpush1.msra.mxu0 0.0
    %938 = vmatprep.subr.mxu0 0.0
    %939 = vmatpush1.msra.mxu0 0.0
    %940 = vmatprep.subr.mxu0 0.0
    %941 = vmatpush1.msra.mxu0 0.0
    %942 = vmatprep.subr.mxu0 0.0
    %943 = vmatpush1.msra.mxu0 0.0
    %944 = vmatprep.subr.mxu0 0.0
    %945 = vmatpush1.msra.mxu0 0.0
    %946 = vmatprep.subr.mxu0 0.0
    %947 = vmatpush1.msra.mxu0 0.0
    %948 = vmatprep.subr.mxu0 0.0
    %949 = vmatpush1.msra.mxu0 0.0
    %950 = vmatprep.subr.mxu0 0.0
    %951 = vmatpush1.msra.mxu0 0.0
    %952 = vmatprep.subr.mxu0 0.0
    %953 = vmatpush1.msra.mxu0 0.0
    %954 = vmatprep.subr.mxu0 0.0
    %955 = vmatpush1.msra.mxu0 0.0
    %956 = vmatprep.subr.mxu0 0.0
    %957 = vmatpush1.msra.mxu0 0.0
    %958 = vmatprep.subr.mxu0 0.0
    %959 = vmatpush1.msra.mxu0 0.0
    %960 = vmatprep.subr.mxu0 0.0
    %961 = vmatpush1.msra.mxu0 0.0
    %962 = vmatprep.subr.mxu0 0.0
    %963 = vmatpush1.msra.mxu0 0.0
    %964 = vmatprep.subr.mxu0 0.0
    %965 = vmatpush1.msra.mxu0 0.0
    %966 = vmatprep.subr.mxu0 0.0
    %967 = vmatpush1.msra.mxu0 0.0
    %968 = vmatprep.subr.mxu0 0.0
    %969 = vmatpush1.msra.mxu0 0.0
    %970 = vmatprep.subr.mxu0 0.0
    %971 = vmatpush1.msra.mxu0 0.0
    %972 = vmatprep.subr.mxu0 0.0
    %973 = vmatpush1.msra.mxu0 0.0
    %974 = vmatprep.subr.mxu0 0.0
    %975 = vmatpush1.msra.mxu0 0.0
    %976 = vmatprep.subr.mxu0 0.0
    %977 = vmatpush1.msra.mxu0 0.0
    %978 = vmatprep.subr.mxu0 0.0
    %979 = vmatpush1.msra.mxu0 0.0
    %980 = vmatprep.subr.mxu0 0.0
    %981 = vmatpush1.msra.mxu0 0.0
    %982 = vmatprep.subr.mxu0 0.0
    %983 = vmatpush1.msra.mxu0 0.0
    %984 = vmatprep.subr.mxu0 0.0
    %985 = vmatpush1.msra.mxu0 0.0
    %986 = vmatprep.mubr.f32.mxu0 0.0
    %987 = vmatmul.mubr.f32.gmra.mrb[0].mxu0 %v920
    %v988 = vpop.f32.mrb[0].mxu0
    %v989 = vadd.f32 0.0, %v988
    %v990 = vpop.f32.mrb[0].mxu0
    %991 = vdwg.mxu0
    %v992 = vadd.f32 %v917, %v989
    %993 = vst.msk [vmem:[%s23] sm:$0xff] %vm185, %v992
    // Predicated region
    $region122: #{cross_vbge_forward.3} parent=1 // pred_check
      _
    $region123: #{cross_vbge_forward.3} parent=1 // pred_check_branch
      %995 = sbr.rel (0) target = $region125
    $region124: #{cross_vbge_forward.3} parent=1 // pred_region
      _
    $region125: #{cross_vbge_forward.3} parent=1 // pred_fallthru
      _
    // Predicated region
    $region126: #{cross_vbge_forward.3} parent=1 // pred_check
      _
    $region127: #{cross_vbge_forward.3} parent=1 // pred_check_branch
      %997 = sbr.rel (0) target = $region129
    $region128: #{cross_vbge_forward.3} parent=1 // pred_region
      _
    $region129: #{cross_vbge_forward.3} parent=1 // pred_fallthru
      _
    // Predicated region
    $region130: #{cross_vbge_forward.3} parent=1 // pred_check
      _
    $region131: #{cross_vbge_forward.3} parent=1 // pred_check_branch
      %999 = sbr.rel (0) target = $region133
    $region132: #{cross_vbge_forward.3} parent=1 // pred_region
      _
    $region133: #{cross_vbge_forward.3} parent=1 // pred_fallthru
      _
    // Predicated region
    $region134: #{cross_vbge_forward.3} parent=1 // pred_check
      _
    $region135: #{cross_vbge_forward.3} parent=1 // pred_check_branch
      %1001 = sbr.rel (0) target = $region137
    $region136: #{cross_vbge_forward.3} parent=1 // pred_region
      _
    $region137: #{cross_vbge_forward.3} parent=1 // pred_fallthru
      _
    %1002 = vsyncpa [#allocation3], 1
    %1003 = vsyncpa [#allocation5], 1
    %1004 = vsyncpa [#allocation8], 1
    %1005 = vsyncpa [#allocation11], 1
    %1006 = vsyncpa [#allocation14], 1

// kernel: cross_vbge_forward.5
$region0: #{cross_vbge_forward.5}
  #allocation0 [shape = 'u32[]', space=smem, size = 0x4, offset = 0x4, fixed_abs, tag = 'smem constant byte address 0x4 - core index']
  #allocation1 [shape = 'u32[144,128]{1,0:T(1,128)}', space=vmem, size = 0x12000, scoped, tag = 'internal scratch']
  %s0 = inlined_call_operand.vmem [shape: f32[8,32], index: 0, kind: input, shape index: {}]
  %s1 = inlined_call_operand.vmem [shape: f32[8,32], index: 1, kind: input, shape index: {}]
  %s2 = inlined_call_operand.vmem [shape: f32[8,10], index: 2, kind: input, shape index: {}]
  %s3 = inlined_call_operand.vmem [shape: f32[10,8], index: 3, kind: input, shape index: {}]
  %s4 = inlined_call_operand.vmem [shape: f32[8,12], index: 4, kind: input, shape index: {}]
  %s5 = inlined_call_operand.vmem [shape: f32[12,8], index: 5, kind: input, shape index: {}]
  %s6 = inlined_call_operand.vmem [shape: f32[32,32], index: 6, kind: input, shape index: {}]
  %s7 = inlined_call_operand.vmem [shape: f32[1,32], index: 7, kind: input, shape index: {}]
  %s8 = inlined_call_operand.vmem [shape: f32[32,32], index: 8, kind: input, shape index: {}]
  %s9 = inlined_call_operand.vmem [shape: f32[1,32], index: 9, kind: input, shape index: {}]
  %s10 = inlined_call_operand.vmem [shape: f32[32,64], index: 10, kind: input, shape index: {}]
  %s11 = inlined_call_operand.vmem [shape: f32[1,64], index: 11, kind: input, shape index: {}]
  %s12 = inlined_call_operand.vmem [shape: f32[32,64], index: 12, kind: input, shape index: {}]
  %s13 = inlined_call_operand.vmem [shape: f32[1,64], index: 13, kind: input, shape index: {}]
  %s14 = inlined_call_operand.vmem [shape: f32[64,64], index: 14, kind: input, shape index: {}]
  %s15 = inlined_call_operand.vmem [shape: f32[32,64], index: 15, kind: input, shape index: {}]
  %s16 = inlined_call_operand.vmem [shape: f32[1,64], index: 16, kind: input, shape index: {}]
  %s17 = inlined_call_operand.vmem [shape: f32[64,64], index: 17, kind: input, shape index: {}]
  %s18 = inlined_call_operand.vmem [shape: f32[32,64], index: 18, kind: input, shape index: {}]
  %s19 = inlined_call_operand.vmem [shape: f32[1,64], index: 19, kind: input, shape index: {}]
  %s20 = inlined_call_operand.vmem [shape: f32[13,8], index: 20, kind: input, shape index: {}]
  %s21 = inlined_call_operand.vmem [shape: f32[13,8], index: 21, kind: input, shape index: {}]
  %s22 = inlined_call_operand.vmem [shape: f32[13,64], index: 22, kind: output, shape index: {}]
  %s23 = sld [smem:[#allocation0]]
  $region98: #{cross_vbge_forward.5} parent=0
    _
  %s25 = ssub.s32 1, %s23
  %s26 = scalar_select 0, %s25, %s23
  // Predicated region
  $region2: #{cross_vbge_forward.5} parent=0 // pred_check
    _
  $region3: #{cross_vbge_forward.5} parent=0 // pred_check_branch
    %28 = sbr.rel (0) target = $region5
  $region4: #{cross_vbge_forward.5} parent=0 // pred_region
    _
  $region5: #{cross_vbge_forward.5} parent=0 // pred_fallthru
    _
  // Predicated region
  $region6: #{cross_vbge_forward.5} parent=0 // pred_check
    _
  $region7: #{cross_vbge_forward.5} parent=0 // pred_check_branch
    %30 = sbr.rel (0) target = $region9
  $region8: #{cross_vbge_forward.5} parent=0 // pred_region
    _
  $region9: #{cross_vbge_forward.5} parent=0 // pred_fallthru
    _
  // Predicated region
  $region10: #{cross_vbge_forward.5} parent=0 // pred_check
    _
  $region11: #{cross_vbge_forward.5} parent=0 // pred_check_branch
    %32 = sbr.rel (0) target = $region13
  $region12: #{cross_vbge_forward.5} parent=0 // pred_region
    _
  $region13: #{cross_vbge_forward.5} parent=0 // pred_fallthru
    _
  // Predicated region
  $region14: #{cross_vbge_forward.5} parent=0 // pred_check
    _
  $region15: #{cross_vbge_forward.5} parent=0 // pred_check_branch
    %34 = sbr.rel (0) target = $region17
  $region16: #{cross_vbge_forward.5} parent=0 // pred_region
    _
  $region17: #{cross_vbge_forward.5} parent=0 // pred_fallthru
    _
  // Predicated region
  $region18: #{cross_vbge_forward.5} parent=0 // pred_check
    _
  $region19: #{cross_vbge_forward.5} parent=0 // pred_check_branch
    %36 = sbr.rel (0) target = $region21
  $region20: #{cross_vbge_forward.5} parent=0 // pred_region
    _
  $region21: #{cross_vbge_forward.5} parent=0 // pred_fallthru
    _
  // Predicated region
  $region22: #{cross_vbge_forward.5} parent=0 // pred_check
    _
  $region23: #{cross_vbge_forward.5} parent=0 // pred_check_branch
    %38 = sbr.rel (0) target = $region25
  $region24: #{cross_vbge_forward.5} parent=0 // pred_region
    _
  $region25: #{cross_vbge_forward.5} parent=0 // pred_fallthru
    _
  // Predicated region
  $region26: #{cross_vbge_forward.5} parent=0 // pred_check
    _
  $region27: #{cross_vbge_forward.5} parent=0 // pred_check_branch
    %40 = sbr.rel (0) target = $region29
  $region28: #{cross_vbge_forward.5} parent=0 // pred_region
    _
  $region29: #{cross_vbge_forward.5} parent=0 // pred_fallthru
    _
  // Predicated region
  $region30: #{cross_vbge_forward.5} parent=0 // pred_check
    _
  $region31: #{cross_vbge_forward.5} parent=0 // pred_check_branch
    %42 = sbr.rel (0) target = $region33
  $region32: #{cross_vbge_forward.5} parent=0 // pred_region
    _
  $region33: #{cross_vbge_forward.5} parent=0 // pred_fallthru
    _
  // Predicated region
  $region34: #{cross_vbge_forward.5} parent=0 // pred_check
    _
  $region35: #{cross_vbge_forward.5} parent=0 // pred_check_branch
    %44 = sbr.rel (0) target = $region37
  $region36: #{cross_vbge_forward.5} parent=0 // pred_region
    _
  $region37: #{cross_vbge_forward.5} parent=0 // pred_fallthru
    _
  // Predicated region
  $region38: #{cross_vbge_forward.5} parent=0 // pred_check
    _
  $region39: #{cross_vbge_forward.5} parent=0 // pred_check_branch
    %46 = sbr.rel (0) target = $region41
  $region40: #{cross_vbge_forward.5} parent=0 // pred_region
    _
  $region41: #{cross_vbge_forward.5} parent=0 // pred_fallthru
    _
  // Predicated region
  $region42: #{cross_vbge_forward.5} parent=0 // pred_check
    _
  $region43: #{cross_vbge_forward.5} parent=0 // pred_check_branch
    %48 = sbr.rel (0) target = $region45
  $region44: #{cross_vbge_forward.5} parent=0 // pred_region
    _
  $region45: #{cross_vbge_forward.5} parent=0 // pred_fallthru
    _
  // Predicated region
  $region46: #{cross_vbge_forward.5} parent=0 // pred_check
    _
  $region47: #{cross_vbge_forward.5} parent=0 // pred_check_branch
    %50 = sbr.rel (0) target = $region49
  $region48: #{cross_vbge_forward.5} parent=0 // pred_region
    _
  $region49: #{cross_vbge_forward.5} parent=0 // pred_fallthru
    _
  // Predicated region
  $region50: #{cross_vbge_forward.5} parent=0 // pred_check
    _
  $region51: #{cross_vbge_forward.5} parent=0 // pred_check_branch
    %52 = sbr.rel (0) target = $region53
  $region52: #{cross_vbge_forward.5} parent=0 // pred_region
    _
  $region53: #{cross_vbge_forward.5} parent=0 // pred_fallthru
    _
  // Predicated region
  $region54: #{cross_vbge_forward.5} parent=0 // pred_check
    _
  $region55: #{cross_vbge_forward.5} parent=0 // pred_check_branch
    %54 = sbr.rel (0) target = $region57
  $region56: #{cross_vbge_forward.5} parent=0 // pred_region
    _
  $region57: #{cross_vbge_forward.5} parent=0 // pred_fallthru
    _
  // Predicated region
  $region58: #{cross_vbge_forward.5} parent=0 // pred_check
    _
  $region59: #{cross_vbge_forward.5} parent=0 // pred_check_branch
    %56 = sbr.rel (0) target = $region61
  $region60: #{cross_vbge_forward.5} parent=0 // pred_region
    _
  $region61: #{cross_vbge_forward.5} parent=0 // pred_fallthru
    _
  // Predicated region
  $region62: #{cross_vbge_forward.5} parent=0 // pred_check
    _
  $region63: #{cross_vbge_forward.5} parent=0 // pred_check_branch
    %58 = sbr.rel (0) target = $region65
  $region64: #{cross_vbge_forward.5} parent=0 // pred_region
    _
  $region65: #{cross_vbge_forward.5} parent=0 // pred_fallthru
    _
  // Predicated region
  $region66: #{cross_vbge_forward.5} parent=0 // pred_check
    _
  $region67: #{cross_vbge_forward.5} parent=0 // pred_check_branch
    %60 = sbr.rel (0) target = $region69
  $region68: #{cross_vbge_forward.5} parent=0 // pred_region
    _
  $region69: #{cross_vbge_forward.5} parent=0 // pred_fallthru
    _
  // Predicated region
  $region70: #{cross_vbge_forward.5} parent=0 // pred_check
    _
  $region71: #{cross_vbge_forward.5} parent=0 // pred_check_branch
    %62 = sbr.rel (0) target = $region73
  $region72: #{cross_vbge_forward.5} parent=0 // pred_region
    _
  $region73: #{cross_vbge_forward.5} parent=0 // pred_fallthru
    _
  // Predicated region
  $region74: #{cross_vbge_forward.5} parent=0 // pred_check
    _
  $region75: #{cross_vbge_forward.5} parent=0 // pred_check_branch
    %64 = sbr.rel (0) target = $region77
  $region76: #{cross_vbge_forward.5} parent=0 // pred_region
    _
  $region77: #{cross_vbge_forward.5} parent=0 // pred_fallthru
    _
  // Predicated region
  $region78: #{cross_vbge_forward.5} parent=0 // pred_check
    _
  $region79: #{cross_vbge_forward.5} parent=0 // pred_check_branch
    %66 = sbr.rel (0) target = $region81
  $region80: #{cross_vbge_forward.5} parent=0 // pred_region
    _
  $region81: #{cross_vbge_forward.5} parent=0 // pred_fallthru
    _
  // Predicated region
  $region82: #{cross_vbge_forward.5} parent=0 // pred_check
    _
  $region83: #{cross_vbge_forward.5} parent=0 // pred_check_branch
    %68 = sbr.rel (0) target = $region85
  $region84: #{cross_vbge_forward.5} parent=0 // pred_region
    _
  $region85: #{cross_vbge_forward.5} parent=0 // pred_fallthru
    _
  // Predicated region
  $region86: #{cross_vbge_forward.5} parent=0 // pred_check
    _
  $region87: #{cross_vbge_forward.5} parent=0 // pred_check_branch
    %70 = sbr.rel (0) target = $region89
  $region88: #{cross_vbge_forward.5} parent=0 // pred_region
    _
  $region89: #{cross_vbge_forward.5} parent=0 // pred_fallthru
    _
  %v72 = vld [vmem:[%s0] sm:$0xff]
  %v73 = vld [vmem:[%s1] sm:$0xff]
  %v74 = vld [vmem:[%s3] sm:$0xff]
  %v75 = vld [vmem:[%s3 + $0x8] sm:$0x3]
  %v76 = vld [vmem:[%s6] sm:$0xff]
  %v77 = vld [vmem:[%s6 + $0x8] sm:$0xff]
  %v78 = vld [vmem:[%s6 + $0x10] sm:$0xff]
  %v79 = vld [vmem:[%s6 + $0x18] sm:$0xff]
  %v80 = vld [vmem:[%s7] sm:$0x1]
  %v81 = vpack.c.bf16 %v72, %v72
  %v82 = vpack.c.bf16 %v77, %v76
  %v83 = vpack.c.bf16 %v79, %v78
  %vm84 = vcmask 261120
  %v86 = vsel %vm84, %v81, 0
  %88 = vmatprep.subr.bf16.mxu0 0
  %89 = vmatpush1.bf16.msra.mxu0 %v82
  %90 = vmatprep.subr.bf16.mxu0 0
  %91 = vmatpush1.bf16.msra.mxu0 %v83
  %92 = vmatprep.subr.bf16.mxu0 0
  %93 = vmatpush1.bf16.msra.mxu0 0
  %94 = vmatprep.subr.bf16.mxu0 0
  %95 = vmatpush1.bf16.msra.mxu0 0
  %96 = vmatprep.subr.bf16.mxu0 0
  %97 = vmatpush1.bf16.msra.mxu0 0
  %98 = vmatprep.subr.bf16.mxu0 0
  %99 = vmatpush1.bf16.msra.mxu0 0
  %100 = vmatprep.subr.bf16.mxu0 0
  %101 = vmatpush1.bf16.msra.mxu0 0
  %102 = vmatprep.subr.bf16.mxu0 0
  %103 = vmatpush1.bf16.msra.mxu0 0
  %104 = vmatprep.subr.bf16.mxu0 0
  %105 = vmatpush1.bf16.msra.mxu0 0
  %106 = vmatprep.subr.bf16.mxu0 0
  %107 = vmatpush1.bf16.msra.mxu0 0
  %108 = vmatprep.subr.bf16.mxu0 0
  %109 = vmatpush1.bf16.msra.mxu0 0
  %110 = vmatprep.subr.bf16.mxu0 0
  %111 = vmatpush1.bf16.msra.mxu0 0
  %112 = vmatprep.subr.bf16.mxu0 0
  %113 = vmatpush1.bf16.msra.mxu0 0
  %114 = vmatprep.subr.bf16.mxu0 0
  %115 = vmatpush1.bf16.msra.mxu0 0
  %116 = vmatprep.subr.bf16.mxu0 0
  %117 = vmatpush1.bf16.msra.mxu0 0
  %118 = vmatprep.subr.bf16.mxu0 0
  %119 = vmatpush1.bf16.msra.mxu0 0
  %120 = vmatprep.mubr.bf16.mxu0 0
  %121 = vmatmul.mubr.bf16.gmra.mrb[0].mxu0 %v86
  %v122 = vpop.f32.mrb[0].mxu0
  %v123 = vadd.f32 0.0, %v122
  %v124 = vpop.f32.mrb[0].mxu0
  %v125 = vpop.f32.mrb[0].mxu0
  %v126 = vpop.f32.mrb[0].mxu0
  %127 = vdwg.mxu0
  %v128 = vpack.c.bf16 %v75, %v74
  %v129 = vpack.c.bf16 %v123, %v123
  %v131 = vlaneseq
  %v132 = vshrl.u32 %v131, 7
  %v133 = vsub.s32 0, %v132
  %v134 = vrot.slane %v80, %v133
  %vm136 = vcmask 64512
  %v138 = vsel %vm136, %v128, 0
  %vm140 = vcmask 1043456
  %v142 = vsel %vm140, %v129, 0
  %144 = vmatprep.subr.bf16.mxu0 0
  %145 = vmatpush1.bf16.msra.mxu0 %v142
  %146 = vmatprep.subr.bf16.mxu0 0
  %147 = vmatpush1.bf16.msra.mxu0 0
  %148 = vmatprep.subr.bf16.mxu0 0
  %149 = vmatpush1.bf16.msra.mxu0 0
  %150 = vmatprep.subr.bf16.mxu0 0
  %151 = vmatpush1.bf16.msra.mxu0 0
  %152 = vmatprep.subr.bf16.mxu0 0
  %153 = vmatpush1.bf16.msra.mxu0 0
  %154 = vmatprep.subr.bf16.mxu0 0
  %155 = vmatpush1.bf16.msra.mxu0 0
  %156 = vmatprep.subr.bf16.mxu0 0
  %157 = vmatpush1.bf16.msra.mxu0 0
  %158 = vmatprep.subr.bf16.mxu0 0
  %159 = vmatpush1.bf16.msra.mxu0 0
  %160 = vmatprep.subr.bf16.mxu0 0
  %161 = vmatpush1.bf16.msra.mxu0 0
  %162 = vmatprep.subr.bf16.mxu0 0
  %163 = vmatpush1.bf16.msra.mxu0 0
  %164 = vmatprep.subr.bf16.mxu0 0
  %165 = vmatpush1.bf16.msra.mxu0 0
  %166 = vmatprep.subr.bf16.mxu0 0
  %167 = vmatpush1.bf16.msra.mxu0 0
  %168 = vmatprep.subr.bf16.mxu0 0
  %169 = vmatpush1.bf16.msra.mxu0 0
  %170 = vmatprep.subr.bf16.mxu0 0
  %171 = vmatpush1.bf16.msra.mxu0 0
  %172 = vmatprep.subr.bf16.mxu0 0
  %173 = vmatpush1.bf16.msra.mxu0 0
  %174 = vmatprep.subr.bf16.mxu0 0
  %175 = vmatpush1.bf16.msra.mxu0 0
  %176 = vmatprep.mubr.bf16.mxu0 0
  %177 = vmatmul.mubr.bf16.gmra.mrb[0].mxu0 %v138
  %v178 = vpop.f32.mrb[0].mxu0
  %v179 = vadd.f32 %v134, %v178
  %v180 = vpop.f32.mrb[0].mxu0
  %v181 = vpop.f32.mrb[0].mxu0
  %v182 = vadd.f32 %v134, %v181
  %v183 = vpop.f32.mrb[0].mxu0
  %184 = vdwg.mxu0
  %vm185 = vcmp.ge.f32.partialorder %v179, 0.0
  %vm186 = vcmp.ge.f32.partialorder %v182, 0.0
  %v187 = vmul.f32 %v179, 0.2
  %v188 = vmul.f32 %v182, 0.2
  %v189 = vsel %vm185, %v179, %v187
  %v190 = vsel %vm186, %v182, %v188
  %v191 = vld [vmem:[%s5] sm:$0xff]
  %v192 = vld [vmem:[%s5 + $0x8] sm:$0xf]
  %v193 = vld [vmem:[%s8] sm:$0xff]
  %v194 = vld [vmem:[%s8 + $0x8] sm:$0xff]
  %v195 = vld [vmem:[%s8 + $0x10] sm:$0xff]
  %v196 = vld [vmem:[%s8 + $0x18] sm:$0xff]
  %v197 = vld [vmem:[%s9] sm:$0x1]
  %v198 = vpack.c.bf16 %v73, %v73
  %v199 = vpack.c.bf16 %v194, %v193
  %v200 = vpack.c.bf16 %v196, %v195
  %v202 = vsel %vm84, %v198, 0
  %204 = vmatprep.subr.bf16.mxu0 0
  %205 = vmatpush1.bf16.msra.mxu0 %v199
  %206 = vmatprep.subr.bf16.mxu0 0
  %207 = vmatpush1.bf16.msra.mxu0 %v200
  %208 = vmatprep.subr.bf16.mxu0 0
  %209 = vmatpush1.bf16.msra.mxu0 0
  %210 = vmatprep.subr.bf16.mxu0 0
  %211 = vmatpush1.bf16.msra.mxu0 0
  %212 = vmatprep.subr.bf16.mxu0 0
  %213 = vmatpush1.bf16.msra.mxu0 0
  %214 = vmatprep.subr.bf16.mxu0 0
  %215 = vmatpush1.bf16.msra.mxu0 0
  %216 = vmatprep.subr.bf16.mxu0 0
  %217 = vmatpush1.bf16.msra.mxu0 0
  %218 = vmatprep.subr.bf16.mxu0 0
  %219 = vmatpush1.bf16.msra.mxu0 0
  %220 = vmatprep.subr.bf16.mxu0 0
  %221 = vmatpush1.bf16.msra.mxu0 0
  %222 = vmatprep.subr.bf16.mxu0 0
  %223 = vmatpush1.bf16.msra.mxu0 0
  %224 = vmatprep.subr.bf16.mxu0 0
  %225 = vmatpush1.bf16.msra.mxu0 0
  %226 = vmatprep.subr.bf16.mxu0 0
  %227 = vmatpush1.bf16.msra.mxu0 0
  %228 = vmatprep.subr.bf16.mxu0 0
  %229 = vmatpush1.bf16.msra.mxu0 0
  %230 = vmatprep.subr.bf16.mxu0 0
  %231 = vmatpush1.bf16.msra.mxu0 0
  %232 = vmatprep.subr.bf16.mxu0 0
  %233 = vmatpush1.bf16.msra.mxu0 0
  %234 = vmatprep.subr.bf16.mxu0 0
  %235 = vmatpush1.bf16.msra.mxu0 0
  %236 = vmatprep.mubr.bf16.mxu0 0
  %237 = vmatmul.mubr.bf16.gmra.mrb[0].mxu0 %v202
  %v238 = vpop.f32.mrb[0].mxu0
  %v239 = vadd.f32 0.0, %v238
  %v240 = vpop.f32.mrb[0].mxu0
  %v241 = vpop.f32.mrb[0].mxu0
  %v242 = vpop.f32.mrb[0].mxu0
  %243 = vdwg.mxu0
  %v244 = vpack.c.bf16 %v192, %v191
  %v245 = vpack.c.bf16 %v239, %v239
  %v247 = vlaneseq
  %v248 = vshrl.u32 %v247, 7
  %v249 = vsub.s32 0, %v248
  %v250 = vrot.slane %v197, %v249
  %v253 = vsel %vm136, %v244, 0
  %v256 = vsel %vm140, %v245, 0
  %258 = vmatprep.subr.bf16.mxu0 0
  %259 = vmatpush1.bf16.msra.mxu0 %v256
  %260 = vmatprep.subr.bf16.mxu0 0
  %261 = vmatpush1.bf16.msra.mxu0 0
  %262 = vmatprep.subr.bf16.mxu0 0
  %263 = vmatpush1.bf16.msra.mxu0 0
  %264 = vmatprep.subr.bf16.mxu0 0
  %265 = vmatpush1.bf16.msra.mxu0 0
  %266 = vmatprep.subr.bf16.mxu0 0
  %267 = vmatpush1.bf16.msra.mxu0 0
  %268 = vmatprep.subr.bf16.mxu0 0
  %269 = vmatpush1.bf16.msra.mxu0 0
  %270 = vmatprep.subr.bf16.mxu0 0
  %271 = vmatpush1.bf16.msra.mxu0 0
  %272 = vmatprep.subr.bf16.mxu0 0
  %273 = vmatpush1.bf16.msra.mxu0 0
  %274 = vmatprep.subr.bf16.mxu0 0
  %275 = vmatpush1.bf16.msra.mxu0 0
  %276 = vmatprep.subr.bf16.mxu0 0
  %277 = vmatpush1.bf16.msra.mxu0 0
  %278 = vmatprep.subr.bf16.mxu0 0
  %279 = vmatpush1.bf16.msra.mxu0 0
  %280 = vmatprep.subr.bf16.mxu0 0
  %281 = vmatpush1.bf16.msra.mxu0 0
  %282 = vmatprep.subr.bf16.mxu0 0
  %283 = vmatpush1.bf16.msra.mxu0 0
  %284 = vmatprep.subr.bf16.mxu0 0
  %285 = vmatpush1.bf16.msra.mxu0 0
  %286 = vmatprep.subr.bf16.mxu0 0
  %287 = vmatpush1.bf16.msra.mxu0 0
  %288 = vmatprep.subr.bf16.mxu0 0
  %289 = vmatpush1.bf16.msra.mxu0 0
  %290 = vmatprep.mubr.bf16.mxu0 0
  %291 = vmatmul.mubr.bf16.gmra.mrb[0].mxu0 %v253
  %v292 = vpop.f32.mrb[0].mxu0
  %v293 = vadd.f32 %v250, %v292
  %v294 = vpop.f32.mrb[0].mxu0
  %v295 = vpop.f32.mrb[0].mxu0
  %v296 = vadd.f32 %v250, %v295
  %v297 = vpop.f32.mrb[0].mxu0
  %298 = vdwg.mxu0
  %vm299 = vcmp.ge.f32.partialorder %v293, 0.0
  %vm300 = vcmp.ge.f32.partialorder %v296, 0.0
  %v301 = vmul.f32 %v293, 0.2
  %v302 = vmul.f32 %v296, 0.2
  %v303 = vsel %vm299, %v293, %v301
  %v304 = vsel %vm300, %v296, %v302
  %v305 = vld [vmem:[%s2] sm:$0xff]
  %v306 = vld [vmem:[%s10] sm:$0xff]
  %v307 = vld [vmem:[%s10 + $0x8] sm:$0xff]
  %v308 = vld [vmem:[%s10 + $0x10] sm:$0xff]
  %v309 = vld [vmem:[%s10 + $0x18] sm:$0xff]
  %v310 = vld [vmem:[%s11] sm:$0x1]
  %v311 = vpack.c.bf16 %v190, %v189
  %v312 = vpack.c.bf16 %v307, %v306
  %v313 = vpack.c.bf16 %v309, %v308
  %v315 = vsel %vm84, %v311, 0
  %317 = vmatprep.subr.bf16.mxu0 0
  %318 = vmatpush1.bf16.msra.mxu0 %v312
  %319 = vmatprep.subr.bf16.mxu0 0
  %320 = vmatpush1.bf16.msra.mxu0 %v313
  %321 = vmatprep.subr.bf16.mxu0 0
  %322 = vmatpush1.bf16.msra.mxu0 0
  %323 = vmatprep.subr.bf16.mxu0 0
  %324 = vmatpush1.bf16.msra.mxu0 0
  %325 = vmatprep.subr.bf16.mxu0 0
  %326 = vmatpush1.bf16.msra.mxu0 0
  %327 = vmatprep.subr.bf16.mxu0 0
  %328 = vmatpush1.bf16.msra.mxu0 0
  %329 = vmatprep.subr.bf16.mxu0 0
  %330 = vmatpush1.bf16.msra.mxu0 0
  %331 = vmatprep.subr.bf16.mxu0 0
  %332 = vmatpush1.bf16.msra.mxu0 0
  %333 = vmatprep.subr.bf16.mxu0 0
  %334 = vmatpush1.bf16.msra.mxu0 0
  %335 = vmatprep.subr.bf16.mxu0 0
  %336 = vmatpush1.bf16.msra.mxu0 0
  %337 = vmatprep.subr.bf16.mxu0 0
  %338 = vmatpush1.bf16.msra.mxu0 0
  %339 = vmatprep.subr.bf16.mxu0 0
  %340 = vmatpush1.bf16.msra.mxu0 0
  %341 = vmatprep.subr.bf16.mxu0 0
  %342 = vmatpush1.bf16.msra.mxu0 0
  %343 = vmatprep.subr.bf16.mxu0 0
  %344 = vmatpush1.bf16.msra.mxu0 0
  %345 = vmatprep.subr.bf16.mxu0 0
  %346 = vmatpush1.bf16.msra.mxu0 0
  %347 = vmatprep.subr.bf16.mxu0 0
  %348 = vmatpush1.bf16.msra.mxu0 0
  %349 = vmatprep.mubr.bf16.mxu0 0
  %350 = vmatmul.mubr.bf16.gmra.mrb[0].mxu0 %v315
  %v351 = vpop.f32.mrb[0].mxu0
  %v352 = vadd.f32 0.0, %v351
  %v353 = vpop.f32.mrb[0].mxu0
  %v354 = vpop.f32.mrb[0].mxu0
  %v355 = vadd.f32 0.0, %v354
  %v356 = vpop.f32.mrb[0].mxu0
  %357 = vdwg.mxu0
  %v358 = vpack.c.bf16 %v305, %v305
  %v359 = vpack.c.bf16 %v355, %v352
  %v361 = vlaneseq
  %v362 = vshrl.u32 %v361, 7
  %v363 = vsub.s32 0, %v362
  %v364 = vrot.slane %v310, %v363
  %vm366 = vcmask 80896
  %v368 = vsel %vm366, %v358, 0
  %vm370 = vcmask 1044480
  %v372 = vsel %vm370, %v359, 0
  %374 = vmatprep.subr.bf16.mxu0 0
  %375 = vmatpush1.bf16.msra.mxu0 %v372
  %376 = vmatprep.subr.bf16.mxu0 0
  %377 = vmatpush1.bf16.msra.mxu0 0
  %378 = vmatprep.subr.bf16.mxu0 0
  %379 = vmatpush1.bf16.msra.mxu0 0
  %380 = vmatprep.subr.bf16.mxu0 0
  %381 = vmatpush1.bf16.msra.mxu0 0
  %382 = vmatprep.subr.bf16.mxu0 0
  %383 = vmatpush1.bf16.msra.mxu0 0
  %384 = vmatprep.subr.bf16.mxu0 0
  %385 = vmatpush1.bf16.msra.mxu0 0
  %386 = vmatprep.subr.bf16.mxu0 0
  %387 = vmatpush1.bf16.msra.mxu0 0
  %388 = vmatprep.subr.bf16.mxu0 0
  %389 = vmatpush1.bf16.msra.mxu0 0
  %390 = vmatprep.subr.bf16.mxu0 0
  %391 = vmatpush1.bf16.msra.mxu0 0
  %392 = vmatprep.subr.bf16.mxu0 0
  %393 = vmatpush1.bf16.msra.mxu0 0
  %394 = vmatprep.subr.bf16.mxu0 0
  %395 = vmatpush1.bf16.msra.mxu0 0
  %396 = vmatprep.subr.bf16.mxu0 0
  %397 = vmatpush1.bf16.msra.mxu0 0
  %398 = vmatprep.subr.bf16.mxu0 0
  %399 = vmatpush1.bf16.msra.mxu0 0
  %400 = vmatprep.subr.bf16.mxu0 0
  %401 = vmatpush1.bf16.msra.mxu0 0
  %402 = vmatprep.subr.bf16.mxu0 0
  %403 = vmatpush1.bf16.msra.mxu0 0
  %404 = vmatprep.subr.bf16.mxu0 0
  %405 = vmatpush1.bf16.msra.mxu0 0
  %406 = vmatprep.mubr.bf16.mxu0 0
  %407 = vmatmul.mubr.bf16.gmra.mrb[0].mxu0 %v368
  %v408 = vpop.f32.mrb[0].mxu0
  %v409 = vadd.f32 %v364, %v408
  %v410 = vpop.f32.mrb[0].mxu0
  %v411 = vpop.f32.mrb[0].mxu0
  %v412 = vpop.f32.mrb[0].mxu0
  %413 = vdwg.mxu0
  %vm414 = vcmp.ge.f32.partialorder %v409, 0.0
  %v415 = vmul.f32 %v409, 0.2
  %v416 = vsel %vm414, %v409, %v415
  %v417 = vld [vmem:[%s4] sm:$0xff]
  %v418 = vld [vmem:[%s12] sm:$0xff]
  %v419 = vld [vmem:[%s12 + $0x8] sm:$0xff]
  %v420 = vld [vmem:[%s12 + $0x10] sm:$0xff]
  %v421 = vld [vmem:[%s12 + $0x18] sm:$0xff]
  %v422 = vld [vmem:[%s13] sm:$0x1]
  %v423 = vpack.c.bf16 %v304, %v303
  %v424 = vpack.c.bf16 %v419, %v418
  %v425 = vpack.c.bf16 %v421, %v420
  %v427 = vsel %vm84, %v423, 0
  %429 = vmatprep.subr.bf16.mxu0 0
  %430 = vmatpush1.bf16.msra.mxu0 %v424
  %431 = vmatprep.subr.bf16.mxu0 0
  %432 = vmatpush1.bf16.msra.mxu0 %v425
  %433 = vmatprep.subr.bf16.mxu0 0
  %434 = vmatpush1.bf16.msra.mxu0 0
  %435 = vmatprep.subr.bf16.mxu0 0
  %436 = vmatpush1.bf16.msra.mxu0 0
  %437 = vmatprep.subr.bf16.mxu0 0
  %438 = vmatpush1.bf16.msra.mxu0 0
  %439 = vmatprep.subr.bf16.mxu0 0
  %440 = vmatpush1.bf16.msra.mxu0 0
  %441 = vmatprep.subr.bf16.mxu0 0
  %442 = vmatpush1.bf16.msra.mxu0 0
  %443 = vmatprep.subr.bf16.mxu0 0
  %444 = vmatpush1.bf16.msra.mxu0 0
  %445 = vmatprep.subr.bf16.mxu0 0
  %446 = vmatpush1.bf16.msra.mxu0 0
  %447 = vmatprep.subr.bf16.mxu0 0
  %448 = vmatpush1.bf16.msra.mxu0 0
  %449 = vmatprep.subr.bf16.mxu0 0
  %450 = vmatpush1.bf16.msra.mxu0 0
  %451 = vmatprep.subr.bf16.mxu0 0
  %452 = vmatpush1.bf16.msra.mxu0 0
  %453 = vmatprep.subr.bf16.mxu0 0
  %454 = vmatpush1.bf16.msra.mxu0 0
  %455 = vmatprep.subr.bf16.mxu0 0
  %456 = vmatpush1.bf16.msra.mxu0 0
  %457 = vmatprep.subr.bf16.mxu0 0
  %458 = vmatpush1.bf16.msra.mxu0 0
  %459 = vmatprep.subr.bf16.mxu0 0
  %460 = vmatpush1.bf16.msra.mxu0 0
  %461 = vmatprep.mubr.bf16.mxu0 0
  %462 = vmatmul.mubr.bf16.gmra.mrb[0].mxu0 %v427
  %v463 = vpop.f32.mrb[0].mxu0
  %v464 = vadd.f32 0.0, %v463
  %v465 = vpop.f32.mrb[0].mxu0
  %v466 = vpop.f32.mrb[0].mxu0
  %v467 = vadd.f32 0.0, %v466
  %v468 = vpop.f32.mrb[0].mxu0
  %469 = vdwg.mxu0
  %v470 = vpack.c.bf16 %v417, %v417
  %v471 = vpack.c.bf16 %v467, %v464
  %v473 = vlaneseq
  %v474 = vshrl.u32 %v473, 7
  %v475 = vsub.s32 0, %v474
  %v476 = vrot.slane %v422, %v475
  %vm478 = vcmask 97280
  %v480 = vsel %vm478, %v470, 0
  %vm482 = vcmask 1045504
  %v484 = vsel %vm482, %v471, 0
  %486 = vmatprep.subr.bf16.mxu0 0
  %487 = vmatpush1.bf16.msra.mxu0 %v484
  %488 = vmatprep.subr.bf16.mxu0 0
  %489 = vmatpush1.bf16.msra.mxu0 0
  %490 = vmatprep.subr.bf16.mxu0 0
  %491 = vmatpush1.bf16.msra.mxu0 0
  %492 = vmatprep.subr.bf16.mxu0 0
  %493 = vmatpush1.bf16.msra.mxu0 0
  %494 = vmatprep.subr.bf16.mxu0 0
  %495 = vmatpush1.bf16.msra.mxu0 0
  %496 = vmatprep.subr.bf16.mxu0 0
  %497 = vmatpush1.bf16.msra.mxu0 0
  %498 = vmatprep.subr.bf16.mxu0 0
  %499 = vmatpush1.bf16.msra.mxu0 0
  %500 = vmatprep.subr.bf16.mxu0 0
  %501 = vmatpush1.bf16.msra.mxu0 0
  %502 = vmatprep.subr.bf16.mxu0 0
  %503 = vmatpush1.bf16.msra.mxu0 0
  %504 = vmatprep.subr.bf16.mxu0 0
  %505 = vmatpush1.bf16.msra.mxu0 0
  %506 = vmatprep.subr.bf16.mxu0 0
  %507 = vmatpush1.bf16.msra.mxu0 0
  %508 = vmatprep.subr.bf16.mxu0 0
  %509 = vmatpush1.bf16.msra.mxu0 0
  %510 = vmatprep.subr.bf16.mxu0 0
  %511 = vmatpush1.bf16.msra.mxu0 0
  %512 = vmatprep.subr.bf16.mxu0 0
  %513 = vmatpush1.bf16.msra.mxu0 0
  %514 = vmatprep.subr.bf16.mxu0 0
  %515 = vmatpush1.bf16.msra.mxu0 0
  %516 = vmatprep.subr.bf16.mxu0 0
  %517 = vmatpush1.bf16.msra.mxu0 0
  %518 = vmatprep.mubr.bf16.mxu0 0
  %519 = vmatmul.mubr.bf16.gmra.mrb[0].mxu0 %v480
  %v520 = vpop.f32.mrb[0].mxu0
  %v521 = vadd.f32 %v476, %v520
  %v522 = vpop.f32.mrb[0].mxu0
  %v523 = vpop.f32.mrb[0].mxu0
  %v524 = vpop.f32.mrb[0].mxu0
  %525 = vdwg.mxu0
  %vm526 = vcmp.ge.f32.partialorder %v521, 0.0
  %v527 = vmul.f32 %v521, 0.2
  %v528 = vsel %vm526, %v521, %v527
  %v529 = vld [vmem:[%s14] sm:$0xff]
  %v530 = vld [vmem:[%s14 + $0x8] sm:$0xff]
  %v531 = vld [vmem:[%s14 + $0x10] sm:$0xff]
  %v532 = vld [vmem:[%s14 + $0x18] sm:$0xff]
  %v533 = vld [vmem:[%s14 + $0x20] sm:$0xff]
  %v534 = vld [vmem:[%s14 + $0x28] sm:$0xff]
  %v535 = vld [vmem:[%s14 + $0x30] sm:$0xff]
  %v536 = vld [vmem:[%s14 + $0x38] sm:$0xff]
  %v537 = vpack.c.bf16 %v416, %v416
  %v538 = vpack.c.bf16 %v530, %v529
  %v539 = vpack.c.bf16 %v532, %v531
  %v540 = vpack.c.bf16 %v534, %v533
  %v541 = vpack.c.bf16 %v536, %v535
  %v542 = vld [vmem:[%s15] sm:$0xff]
  %v543 = vld [vmem:[%s15 + $0x8] sm:$0xff]
  %v544 = vld [vmem:[%s15 + $0x10] sm:$0xff]
  %v545 = vld [vmem:[%s15 + $0x18] sm:$0xff]
  %v546 = vpack.c.bf16 %v543, %v542
  %v547 = vpack.c.bf16 %v545, %v544
  %548 = vmatprep.subr.bf16.mxu0 0
  %549 = vmatpush1.bf16.msra.mxu0 %v546
  %550 = vmatprep.subr.bf16.mxu0 0
  %551 = vmatpush1.bf16.msra.mxu0 %v547
  %552 = vmatprep.subr.bf16.mxu0 0
  %553 = vmatpush1.bf16.msra.mxu0 0
  %554 = vmatprep.subr.bf16.mxu0 0
  %555 = vmatpush1.bf16.msra.mxu0 0
  %556 = vmatprep.subr.bf16.mxu0 0
  %557 = vmatpush1.bf16.msra.mxu0 0
  %558 = vmatprep.subr.bf16.mxu0 0
  %559 = vmatpush1.bf16.msra.mxu0 0
  %560 = vmatprep.subr.bf16.mxu0 0
  %561 = vmatpush1.bf16.msra.mxu0 0
  %562 = vmatprep.subr.bf16.mxu0 0
  %563 = vmatpush1.bf16.msra.mxu0 0
  %564 = vmatprep.subr.bf16.mxu0 0
  %565 = vmatpush1.bf16.msra.mxu0 0
  %566 = vmatprep.subr.bf16.mxu0 0
  %567 = vmatpush1.bf16.msra.mxu0 0
  %568 = vmatprep.subr.bf16.mxu0 0
  %569 = vmatpush1.bf16.msra.mxu0 0
  %570 = vmatprep.subr.bf16.mxu0 0
  %571 = vmatpush1.bf16.msra.mxu0 0
  %572 = vmatprep.subr.bf16.mxu0 0
  %573 = vmatpush1.bf16.msra.mxu0 0
  %574 = vmatprep.subr.bf16.mxu0 0
  %575 = vmatpush1.bf16.msra.mxu0 0
  %576 = vmatprep.subr.bf16.mxu0 0
  %577 = vmatpush1.bf16.msra.mxu0 0
  %578 = vmatprep.subr.bf16.mxu0 0
  %579 = vmatpush1.bf16.msra.mxu0 0
  %580 = vmatprep.mubr.bf16.mxu0 0
  %581 = vmatmul.mubr.bf16.gmra.mrb[0].mxu0 %v86
  %v582 = vpop.f32.mrb[0].mxu0
  %v583 = vadd.f32 0.0, %v582
  %v584 = vpop.f32.mrb[0].mxu0
  %v585 = vpop.f32.mrb[0].mxu0
  %v586 = vpop.f32.mrb[0].mxu0
  %587 = vdwg.mxu0
  %vm588 = vcmask 523264
  %v590 = vsel %vm588, %v537, 0
  %592 = vmatprep.subr.bf16.mxu0 0
  %593 = vmatpush1.bf16.msra.mxu0 %v538
  %594 = vmatprep.subr.bf16.mxu0 0
  %595 = vmatpush1.bf16.msra.mxu0 %v539
  %596 = vmatprep.subr.bf16.mxu0 0
  %597 = vmatpush1.bf16.msra.mxu0 %v540
  %598 = vmatprep.subr.bf16.mxu0 0
  %599 = vmatpush1.bf16.msra.mxu0 %v541
  %600 = vmatprep.subr.bf16.mxu0 0
  %601 = vmatpush1.bf16.msra.mxu0 0
  %602 = vmatprep.subr.bf16.mxu0 0
  %603 = vmatpush1.bf16.msra.mxu0 0
  %604 = vmatprep.subr.bf16.mxu0 0
  %605 = vmatpush1.bf16.msra.mxu0 0
  %606 = vmatprep.subr.bf16.mxu0 0
  %607 = vmatpush1.bf16.msra.mxu0 0
  %608 = vmatprep.subr.bf16.mxu0 0
  %609 = vmatpush1.bf16.msra.mxu0 0
  %610 = vmatprep.subr.bf16.mxu0 0
  %611 = vmatpush1.bf16.msra.mxu0 0
  %612 = vmatprep.subr.bf16.mxu0 0
  %613 = vmatpush1.bf16.msra.mxu0 0
  %614 = vmatprep.subr.bf16.mxu0 0
  %615 = vmatpush1.bf16.msra.mxu0 0
  %616 = vmatprep.subr.bf16.mxu0 0
  %617 = vmatpush1.bf16.msra.mxu0 0
  %618 = vmatprep.subr.bf16.mxu0 0
  %619 = vmatpush1.bf16.msra.mxu0 0
  %620 = vmatprep.subr.bf16.mxu0 0
  %621 = vmatpush1.bf16.msra.mxu0 0
  %622 = vmatprep.subr.bf16.mxu0 0
  %623 = vmatpush1.bf16.msra.mxu0 0
  %624 = vmatprep.mubr.bf16.mxu0 0
  %625 = vmatmul.mubr.bf16.gmra.mrb[0].mxu0 %v590
  %v626 = vpop.f32.mrb[0].mxu0
  %v627 = vadd.f32 %v583, %v626
  %v628 = vpop.f32.mrb[0].mxu0
  %v629 = vpop.f32.mrb[0].mxu0
  %v630 = vpop.f32.mrb[0].mxu0
  %631 = vdwg.mxu0
  %v632 = vld [vmem:[%s16] sm:$0x1]
  %v634 = vlaneseq
  %v635 = vshrl.u32 %v634, 7
  %v636 = vsub.s32 0, %v635
  %v637 = vrot.slane %v632, %v636
  %v639 = vadd.f32 %v627, %v637
  %v640 = vld [vmem:[%s17] sm:$0xff]
  %v641 = vld [vmem:[%s17 + $0x8] sm:$0xff]
  %v642 = vld [vmem:[%s17 + $0x10] sm:$0xff]
  %v643 = vld [vmem:[%s17 + $0x18] sm:$0xff]
  %v644 = vld [vmem:[%s17 + $0x20] sm:$0xff]
  %v645 = vld [vmem:[%s17 + $0x28] sm:$0xff]
  %v646 = vld [vmem:[%s17 + $0x30] sm:$0xff]
  %v647 = vld [vmem:[%s17 + $0x38] sm:$0xff]
  %v648 = vpack.c.bf16 %v528, %v528
  %v649 = vpack.c.bf16 %v641, %v640
  %v650 = vpack.c.bf16 %v643, %v642
  %v651 = vpack.c.bf16 %v645, %v644
  %v652 = vpack.c.bf16 %v647, %v646
  %v653 = vld [vmem:[%s18] sm:$0xff]
  %v654 = vld [vmem:[%s18 + $0x8] sm:$0xff]
  %v655 = vld [vmem:[%s18 + $0x10] sm:$0xff]
  %v656 = vld [vmem:[%s18 + $0x18] sm:$0xff]
  %v657 = vpack.c.bf16 %v654, %v653
  %v658 = vpack.c.bf16 %v656, %v655
  %659 = vmatprep.subr.bf16.mxu0 0
  %660 = vmatpush1.bf16.msra.mxu0 %v657
  %661 = vmatprep.subr.bf16.mxu0 0
  %662 = vmatpush1.bf16.msra.mxu0 %v658
  %663 = vmatprep.subr.bf16.mxu0 0
  %664 = vmatpush1.bf16.msra.mxu0 0
  %665 = vmatprep.subr.bf16.mxu0 0
  %666 = vmatpush1.bf16.msra.mxu0 0
  %667 = vmatprep.subr.bf16.mxu0 0
  %668 = vmatpush1.bf16.msra.mxu0 0
  %669 = vmatprep.subr.bf16.mxu0 0
  %670 = vmatpush1.bf16.msra.mxu0 0
  %671 = vmatprep.subr.bf16.mxu0 0
  %672 = vmatpush1.bf16.msra.mxu0 0
  %673 = vmatprep.subr.bf16.mxu0 0
  %674 = vmatpush1.bf16.msra.mxu0 0
  %675 = vmatprep.subr.bf16.mxu0 0
  %676 = vmatpush1.bf16.msra.mxu0 0
  %677 = vmatprep.subr.bf16.mxu0 0
  %678 = vmatpush1.bf16.msra.mxu0 0
  %679 = vmatprep.subr.bf16.mxu0 0
  %680 = vmatpush1.bf16.msra.mxu0 0
  %681 = vmatprep.subr.bf16.mxu0 0
  %682 = vmatpush1.bf16.msra.mxu0 0
  %683 = vmatprep.subr.bf16.mxu0 0
  %684 = vmatpush1.bf16.msra.mxu0 0
  %685 = vmatprep.subr.bf16.mxu0 0
  %686 = vmatpush1.bf16.msra.mxu0 0
  %687 = vmatprep.subr.bf16.mxu0 0
  %688 = vmatpush1.bf16.msra.mxu0 0
  %689 = vmatprep.subr.bf16.mxu0 0
  %690 = vmatpush1.bf16.msra.mxu0 0
  %691 = vmatprep.mubr.bf16.mxu0 0
  %692 = vmatmul.mubr.bf16.gmra.mrb[0].mxu0 %v202
  %v693 = vpop.f32.mrb[0].mxu0
  %v694 = vadd.f32 0.0, %v693
  %v695 = vpop.f32.mrb[0].mxu0
  %v696 = vpop.f32.mrb[0].mxu0
  %v697 = vpop.f32.mrb[0].mxu0
  %698 = vdwg.mxu0
  %v700 = vsel %vm588, %v648, 0
  %702 = vmatprep.subr.bf16.mxu0 0
  %703 = vmatpush1.bf16.msra.mxu0 %v649
  %704 = vmatprep.subr.bf16.mxu0 0
  %705 = vmatpush1.bf16.msra.mxu0 %v650
  %706 = vmatprep.subr.bf16.mxu0 0
  %707 = vmatpush1.bf16.msra.mxu0 %v651
  %708 = vmatprep.subr.bf16.mxu0 0
  %709 = vmatpush1.bf16.msra.mxu0 %v652
  %710 = vmatprep.subr.bf16.mxu0 0
  %711 = vmatpush1.bf16.msra.mxu0 0
  %712 = vmatprep.subr.bf16.mxu0 0
  %713 = vmatpush1.bf16.msra.mxu0 0
  %714 = vmatprep.subr.bf16.mxu0 0
  %715 = vmatpush1.bf16.msra.mxu0 0
  %716 = vmatprep.subr.bf16.mxu0 0
  %717 = vmatpush1.bf16.msra.mxu0 0
  %718 = vmatprep.subr.bf16.mxu0 0
  %719 = vmatpush1.bf16.msra.mxu0 0
  %720 = vmatprep.subr.bf16.mxu0 0
  %721 = vmatpush1.bf16.msra.mxu0 0
  %722 = vmatprep.subr.bf16.mxu0 0
  %723 = vmatpush1.bf16.msra.mxu0 0
  %724 = vmatprep.subr.bf16.mxu0 0
  %725 = vmatpush1.bf16.msra.mxu0 0
  %726 = vmatprep.subr.bf16.mxu0 0
  %727 = vmatpush1.bf16.msra.mxu0 0
  %728 = vmatprep.subr.bf16.mxu0 0
  %729 = vmatpush1.bf16.msra.mxu0 0
  %730 = vmatprep.subr.bf16.mxu0 0
  %731 = vmatpush1.bf16.msra.mxu0 0
  %732 = vmatprep.subr.bf16.mxu0 0
  %733 = vmatpush1.bf16.msra.mxu0 0
  %734 = vmatprep.mubr.bf16.mxu0 0
  %735 = vmatmul.mubr.bf16.gmra.mrb[0].mxu0 %v700
  %v736 = vpop.f32.mrb[0].mxu0
  %v737 = vadd.f32 %v694, %v736
  %v738 = vpop.f32.mrb[0].mxu0
  %v739 = vpop.f32.mrb[0].mxu0
  %v740 = vpop.f32.mrb[0].mxu0
  %741 = vdwg.mxu0
  %v742 = vld [vmem:[%s19] sm:$0x1]
  %v744 = vlaneseq
  %v745 = vshrl.u32 %v744, 7
  %v746 = vsub.s32 0, %v745
  %v747 = vrot.slane %v742, %v746
  %v749 = vadd.f32 %v737, %v747
  %v750 = vld [vmem:[%s20] sm:$0xff]
  %v751 = vld [vmem:[%s20 + $0x8] sm:$0x1f]
  %v752 = vld [vmem:[%s21] sm:$0xff]
  %v753 = vld [vmem:[%s21 + $0x8] sm:$0x1f]
  %v755 = vsel %vm136, %v752, 0
  %v758 = vsel %vm136, %v753, 0
  %760 = vmatprep.subr.mxu0 0.0
  %761 = vmatpush1.msra.mxu0 %v749
  %762 = vmatprep.subr.mxu0 0.0
  %763 = vmatpush1.msra.mxu0 0.0
  %764 = vmatprep.subr.mxu0 0.0
  %765 = vmatpush1.msra.mxu0 0.0
  %766 = vmatprep.subr.mxu0 0.0
  %767 = vmatpush1.msra.mxu0 0.0
  %768 = vmatprep.subr.mxu0 0.0
  %769 = vmatpush1.msra.mxu0 0.0
  %770 = vmatprep.subr.mxu0 0.0
  %771 = vmatpush1.msra.mxu0 0.0
  %772 = vmatprep.subr.mxu0 0.0
  %773 = vmatpush1.msra.mxu0 0.0
  %774 = vmatprep.subr.mxu0 0.0
  %775 = vmatpush1.msra.mxu0 0.0
  %776 = vmatprep.subr.mxu0 0.0
  %777 = vmatpush1.msra.mxu0 0.0
  %778 = vmatprep.subr.mxu0 0.0
  %779 = vmatpush1.msra.mxu0 0.0
  %780 = vmatprep.subr.mxu0 0.0
  %781 = vmatpush1.msra.mxu0 0.0
  %782 = vmatprep.subr.mxu0 0.0
  %783 = vmatpush1.msra.mxu0 0.0
  %784 = vmatprep.subr.mxu0 0.0
  %785 = vmatpush1.msra.mxu0 0.0
  %786 = vmatprep.subr.mxu0 0.0
  %787 = vmatpush1.msra.mxu0 0.0
  %788 = vmatprep.subr.mxu0 0.0
  %789 = vmatpush1.msra.mxu0 0.0
  %790 = vmatprep.subr.mxu0 0.0
  %791 = vmatpush1.msra.mxu0 0.0
  %792 = vmatprep.subr.mxu0 0.0
  %793 = vmatpush1.msra.mxu0 0.0
  %794 = vmatprep.subr.mxu0 0.0
  %795 = vmatpush1.msra.mxu0 0.0
  %796 = vmatprep.subr.mxu0 0.0
  %797 = vmatpush1.msra.mxu0 0.0
  %798 = vmatprep.subr.mxu0 0.0
  %799 = vmatpush1.msra.mxu0 0.0
  %800 = vmatprep.subr.mxu0 0.0
  %801 = vmatpush1.msra.mxu0 0.0
  %802 = vmatprep.subr.mxu0 0.0
  %803 = vmatpush1.msra.mxu0 0.0
  %804 = vmatprep.subr.mxu0 0.0
  %805 = vmatpush1.msra.mxu0 0.0
  %806 = vmatprep.subr.mxu0 0.0
  %807 = vmatpush1.msra.mxu0 0.0
  %808 = vmatprep.subr.mxu0 0.0
  %809 = vmatpush1.msra.mxu0 0.0
  %810 = vmatprep.subr.mxu0 0.0
  %811 = vmatpush1.msra.mxu0 0.0
  %812 = vmatprep.subr.mxu0 0.0
  %813 = vmatpush1.msra.mxu0 0.0
  %814 = vmatprep.subr.mxu0 0.0
  %815 = vmatpush1.msra.mxu0 0.0
  %816 = vmatprep.subr.mxu0 0.0
  %817 = vmatpush1.msra.mxu0 0.0
  %818 = vmatprep.subr.mxu0 0.0
  %819 = vmatpush1.msra.mxu0 0.0
  %820 = vmatprep.subr.mxu0 0.0
  %821 = vmatpush1.msra.mxu0 0.0
  %822 = vmatprep.subr.mxu0 0.0
  %823 = vmatpush1.msra.mxu0 0.0
  %824 = vmatprep.mubr.f32.mxu0 0.0
  %825 = vmatmul.mubr.f32.gmra.mrb[0].mxu0 %v755
  %v826 = vpop.f32.mrb[0].mxu0
  %v827 = vadd.f32 0.0, %v826
  %v828 = vpop.f32.mrb[0].mxu0
  %829 = vmatprep.mubr.f32.mxu0 0.0
  %830 = vmatmul.mubr.f32.gmra.mrb[0].mxu0 %v758
  %v831 = vpop.f32.mrb[0].mxu0
  %v832 = vadd.f32 0.0, %v831
  %v833 = vpop.f32.mrb[0].mxu0
  %834 = vdwg.mxu0
  %v836 = vsel %vm136, %v750, 0
  %v839 = vsel %vm136, %v751, 0
  %841 = vmatprep.subr.mxu0 0.0
  %842 = vmatpush1.msra.mxu0 %v639
  %843 = vmatprep.subr.mxu0 0.0
  %844 = vmatpush1.msra.mxu0 0.0
  %845 = vmatprep.subr.mxu0 0.0
  %846 = vmatpush1.msra.mxu0 0.0
  %847 = vmatprep.subr.mxu0 0.0
  %848 = vmatpush1.msra.mxu0 0.0
  %849 = vmatprep.subr.mxu0 0.0
  %850 = vmatpush1.msra.mxu0 0.0
  %851 = vmatprep.subr.mxu0 0.0
  %852 = vmatpush1.msra.mxu0 0.0
  %853 = vmatprep.subr.mxu0 0.0
  %854 = vmatpush1.msra.mxu0 0.0
  %855 = vmatprep.subr.mxu0 0.0
  %856 = vmatpush1.msra.mxu0 0.0
  %857 = vmatprep.subr.mxu0 0.0
  %858 = vmatpush1.msra.mxu0 0.0
  %859 = vmatprep.subr.mxu0 0.0
  %860 = vmatpush1.msra.mxu0 0.0
  %861 = vmatprep.subr.mxu0 0.0
  %862 = vmatpush1.msra.mxu0 0.0
  %863 = vmatprep.subr.mxu0 0.0
  %864 = vmatpush1.msra.mxu0 0.0
  %865 = vmatprep.subr.mxu0 0.0
  %866 = vmatpush1.msra.mxu0 0.0
  %867 = vmatprep.subr.mxu0 0.0
  %868 = vmatpush1.msra.mxu0 0.0
  %869 = vmatprep.subr.mxu0 0.0
  %870 = vmatpush1.msra.mxu0 0.0
  %871 = vmatprep.subr.mxu0 0.0
  %872 = vmatpush1.msra.mxu0 0.0
  %873 = vmatprep.subr.mxu0 0.0
  %874 = vmatpush1.msra.mxu0 0.0
  %875 = vmatprep.subr.mxu0 0.0
  %876 = vmatpush1.msra.mxu0 0.0
  %877 = vmatprep.subr.mxu0 0.0
  %878 = vmatpush1.msra.mxu0 0.0
  %879 = vmatprep.subr.mxu0 0.0
  %880 = vmatpush1.msra.mxu0 0.0
  %881 = vmatprep.subr.mxu0 0.0
  %882 = vmatpush1.msra.mxu0 0.0
  %883 = vmatprep.subr.mxu0 0.0
  %884 = vmatpush1.msra.mxu0 0.0
  %885 = vmatprep.subr.mxu0 0.0
  %886 = vmatpush1.msra.mxu0 0.0
  %887 = vmatprep.subr.mxu0 0.0
  %888 = vmatpush1.msra.mxu0 0.0
  %889 = vmatprep.subr.mxu0 0.0
  %890 = vmatpush1.msra.mxu0 0.0
  %891 = vmatprep.subr.mxu0 0.0
  %892 = vmatpush1.msra.mxu0 0.0
  %893 = vmatprep.subr.mxu0 0.0
  %894 = vmatpush1.msra.mxu0 0.0
  %895 = vmatprep.subr.mxu0 0.0
  %896 = vmatpush1.msra.mxu0 0.0
  %897 = vmatprep.subr.mxu0 0.0
  %898 = vmatpush1.msra.mxu0 0.0
  %899 = vmatprep.subr.mxu0 0.0
  %900 = vmatpush1.msra.mxu0 0.0
  %901 = vmatprep.subr.mxu0 0.0
  %902 = vmatpush1.msra.mxu0 0.0
  %903 = vmatprep.subr.mxu0 0.0
  %904 = vmatpush1.msra.mxu0 0.0
  %905 = vmatprep.mubr.f32.mxu0 0.0
  %906 = vmatmul.mubr.f32.gmra.mrb[0].mxu0 %v836
  %v907 = vpop.f32.mrb[0].mxu0
  %v908 = vadd.f32 %v827, %v907
  %v909 = vpop.f32.mrb[0].mxu0
  %910 = vmatprep.mubr.f32.mxu0 0.0
  %911 = vmatmul.mubr.f32.gmra.mrb[0].mxu0 %v839
  %v912 = vpop.f32.mrb[0].mxu0
  %v913 = vadd.f32 %v832, %v912
  %v914 = vpop.f32.mrb[0].mxu0
  %915 = vdwg.mxu0
  %916 = vst.msk [vmem:[%s22] sm:$0xff] %vm588, %v908
  %vm917 = vcmask 520192
  %918 = vst.msk [vmem:[%s22 + $0x8] sm:$0x1f] %vm917, %v913
  // Predicated region
  $region90: #{cross_vbge_forward.5} parent=0 // pred_check
    _
  $region91: #{cross_vbge_forward.5} parent=0 // pred_check_branch
    %920 = sbr.rel (0) target = $region93
  $region92: #{cross_vbge_forward.5} parent=0 // pred_region
    _
  $region93: #{cross_vbge_forward.5} parent=0 // pred_fallthru
    _
  // Predicated region
  $region94: #{cross_vbge_forward.5} parent=0 // pred_check
    _
  $region95: #{cross_vbge_forward.5} parent=0 // pred_check_branch
    %922 = sbr.rel (0) target = $region97
  $region96: #{cross_vbge_forward.5} parent=0 // pred_region
    _
  $region97: #{cross_vbge_forward.5} parent=0 // pred_fallthru
    _

</llo_original>
